<compile_context>
chip_gen: v7x
topology: tpu7x:2x2x1
jax: 0.10.0
libtpu: 0.0.40
codegen_flags: <defaults>
</compile_context>

<pallas_src>
import functools
import math

import numpy as np
import jax
import jax.numpy as jnp
from jax import lax
from jax.experimental import pallas as pl
from jax.experimental.pallas import tpu as pltpu


_INV_SQRT2 = 1.0 / math.sqrt(2.0)


def _round_up(x, m):
    return ((x + m - 1) // m) * m


def _gelu_exact(x):
    # exact (erf-based) GELU, matching torch.nn.GELU() default
    return 0.5 * x * (1.0 + lax.erf(x * jnp.float32(_INV_SQRT2)))


def _fused_double_conv_kernel(x_ref, w1_ref, w2_ref, sh_ref, o_ref, *,
                              k, p, wf, lg2wf, tr, h, w, cpad, compute_dtype):
    """One (batch, row-tile) step of the fused DoubleConv.

    x_ref  : (1, 1, cpad, L_in)  zero-padded frame window, (rows, width) flattened into lanes
    w1_ref : (k*k*cpad, cpad)    layer-1 per-tap weights [tap*cpad + c_out, c_in], BN scale folded in
    w2_ref : (k*k*cpad, cpad)    layer-2 per-tap weights
    sh_ref : (cpad, 2)           per-channel shifts (conv bias + BN folded); col 0 = layer 1, col 1 = layer 2
    o_ref  : (1, 1, cpad, L2)    layer-2 output tile (cols >= W / rows >= H cropped by the wrapper)
    """
    t = pl.program_id(1)
    l1 = (tr + 2 * p) * wf + 2 * p        # flattened layer-1 extent (incl. +dx slack)
    l2 = tr * wf                          # flattened layer-2 output extent

    xt = x_ref[0, 0]                      # (cpad, L_in)

    def conv_taps(src, wref, length):
        # Tap accumulation: k*k small MXU matmuls on statically shifted lane slices
        # (no materialized im2col operand).
        acc = jnp.zeros((cpad, length), jnp.float32)
        for dy in range(k):
            for dx in range(k):
                tap = dy * k + dx
                off = dy * wf + dx
                wt = wref[tap * cpad:(tap + 1) * cpad, :]          # (c_out, c_in)
                acc = acc + jnp.dot(wt, src[:, off:off + length],
                                    preferred_element_type=jnp.float32)
        return acc

    # ---- layer 1: conv (BN scale pre-folded into weights) + shift + exact GELU
    g = _gelu_exact(conv_taps(xt, w1_ref, l1) + sh_ref[:, 0:1])

    # ---- mask everything outside the true image so it acts as layer-2's zero padding.
    # Mask is built in-kernel from a lane iota (wf is a power of two -> shift / and).
    q = lax.broadcasted_iota(jnp.int32, (1, l1), 1)
    row = t * tr + (q >> lg2wf)           # global frame row of this layer-1 output
    col = q & (wf - 1)
    valid = (row >= p) & (row < p + h) & (col >= p) & (col < p + w)
    g = jnp.where(valid, g, 0.0).astype(compute_dtype)

    # ---- layer 2: conv + shift + exact GELU
    y = _gelu_exact(conv_taps(g, w2_ref, l2) + sh_ref[:, 1:2])
    o_ref[...] = y[None, None].astype(o_ref.dtype)


def _fold_bn(p_):
    """Fold conv bias + eval-mode BatchNorm into per-channel (scale, shift)."""
    inv_std = 1.0 / jnp.sqrt(p_["running_var"] + 1e-5)
    scale = p_["gamma"] * inv_std
    shift = p_["beta"] + scale * (p_["b"] - p_["running_mean"])
    return scale.astype(jnp.float32), shift.astype(jnp.float32)


def _tap_weights(w, groups, cpad, scale):
    """torch Conv2d weight (C_out, C_in//groups, k, k) -> per-tap dense (k*k*cpad, cpad).

    Row layout is [tap*cpad + c_out, c_in]; grouping is encoded exactly by the
    block-diagonal structure, the folded BN scale multiplies the c_out rows, and
    padded channels stay exactly zero.
    """
    c_out, cin_g, k, _ = w.shape
    cout_g = c_out // groups
    dense = jnp.zeros((k, k, cpad, cpad), jnp.float32)         # [dy, dx, c_out, c_in]
    for g in range(groups):
        wg = jnp.transpose(w[g * cout_g:(g + 1) * cout_g], (2, 3, 0, 1))  # (k,k,cout_g,cin_g)
        dense = dense.at[:, :,
                         g * cout_g:(g + 1) * cout_g,
                         g * cin_g:(g + 1) * cin_g].set(wg)
    scale_p = jnp.zeros((cpad,), jnp.float32).at[:c_out].set(scale)
    dense = dense * scale_p[None, None, :, None]               # fold BN scale
    return dense.reshape(k * k * cpad, cpad)


def _vmem_budget():
    """(capacity, scoped limit) derived from the actual chip instead of hard-coding v7x."""
    try:
        cap = int(pltpu.get_tpu_info().vmem_capacity_bytes)
    except Exception:
        cap = 64 * 1024 * 1024                 # conservative fallback (v7x physical per core)
    return cap, int(0.75 * cap)                # headroom for compiler internal scratch


def _step_bytes(tr, wf, cpad, p, k, in_item, out_item):
    """Full per-step VMEM working set (review: budget everything, not just the conv operand)."""
    l_in = (tr + 4 * p + 1) * wf
    l1 = (tr + 2 * p) * wf + 2 * p
    l2 = tr * wf
    io = 2 * cpad * l_in * in_item + 2 * cpad * l2 * out_item   # double-buffered in/out tiles
    live = cpad * (l_in + 2 * l1 + 2 * l2) * 4                  # xt + acc1/g + acc2/y (f32 values)
    wts = 2 * 2 * (k * k * cpad * cpad) * in_item + 2 * cpad * 2 * 4
    return io + live + wts


def _pick_tile_rows(h, wf, cpad, p, k, in_item, out_item, row_align, budget):
    max_tr = _round_up(h, row_align)
    best = row_align
    tr = row_align
    while tr <= max_tr:
        if _step_bytes(tr, wf, cpad, p, k, in_item, out_item) <= budget:
            best = tr
        tr += row_align
    return min(best, max_tr)


def double_conv(x_nchw, params, kernel_size, groups, *,
                compute_dtype=jnp.float32, tile_rows=None):
    """Fused (Conv2d('same', grouped) -> BatchNorm2d(eval) -> GELU) x 2.

    x_nchw: (N, C, H, W).  params: list of two dicts with keys
    w, b (conv) and gamma, beta, running_mean, running_var (BN).
    """
    n, c, h, w = x_nchw.shape
    k = kernel_size
    assert k % 2 == 1, "padding='same' implemented for odd kernel sizes"
    p = (k - 1) // 2

    cpad = _round_up(c, 8)                                 # channels -> sublanes (no 128-lane padding)
    wf = max(8, 1 << int(w + 4 * p - 1).bit_length())      # frame width: power of two (mask via shift/and)
    lg2wf = int(math.log2(wf))
    row_align = max(1, 128 // wf)                          # keep tr*wf (output lanes) a multiple of 128

    in_item = jnp.dtype(compute_dtype).itemsize
    out_item = jnp.dtype(x_nchw.dtype).itemsize
    _, vmem_limit = _vmem_budget()
    if tile_rows is None:
        tr = _pick_tile_rows(h, wf, cpad, p, k, in_item, out_item,
                             row_align, int(0.8 * vmem_limit))
    else:
        tr = max(row_align, _round_up(tile_rows, row_align))
    nt = -(-h // tr)
    # v7x has 2 TensorCores: make sure there are at least 2 parallel grid steps.
    while n * nt < 2 and tr > row_align:
        tr = max(row_align, (tr // 2 // row_align) * row_align)
        nt = -(-h // tr)

    r_in = tr + 4 * p + 1                                  # frame rows per (overlapping) tile
    l_in = r_in * wf
    l2 = tr * wf
    r_total = nt * tr + 4 * p + 1

    # --- zero-padded frame, NCHW-native: data at rows/cols [2p, 2p+H/W)
    frame = jnp.zeros((n, cpad, r_total, wf), compute_dtype)
    frame = frame.at[:, :c, 2 * p:2 * p + h, 2 * p:2 * p + w].set(
        x_nchw.astype(compute_dtype))
    # overlapping row windows (halo rows duplicated wrapper-side; no in-kernel concat)
    x_tiles = jnp.stack([frame[:, :, t * tr:t * tr + r_in, :] for t in range(nt)],
                        axis=1).reshape(n, nt, cpad, l_in)

    # --- per-tap weights with BN scale folded in; only per-channel shifts go to the kernel
    s1, t1 = _fold_bn(params[0])
    s2, t2 = _fold_bn(params[1])
    w1 = _tap_weights(params[0]["w"], groups, cpad, s1).astype(compute_dtype)
    w2 = _tap_weights(params[1]["w"], groups, cpad, s2).astype(compute_dtype)
    sh = jnp.zeros((cpad, 2), jnp.float32).at[:c, 0].set(t1).at[:c, 1].set(t2)

    kern = functools.partial(_fused_double_conv_kernel,
                             k=k, p=p, wf=wf, lg2wf=lg2wf, tr=tr, h=h, w=w,
                             cpad=cpad, compute_dtype=compute_dtype)
    out = pl.pallas_call(
        kern,
        out_shape=jax.ShapeDtypeStruct((n, nt, cpad, l2), x_nchw.dtype),
        grid_spec=pltpu.PrefetchScalarGridSpec(
            num_scalar_prefetch=0,
            grid=(n, nt),
            in_specs=[
                pl.BlockSpec((1, 1, cpad, l_in), lambda b, t: (b, t, 0, 0)),   # image tile (+halo)
                pl.BlockSpec((k * k * cpad, cpad), lambda b, t: (0, 0)),       # w1 (grid-invariant)
                pl.BlockSpec((k * k * cpad, cpad), lambda b, t: (0, 0)),       # w2 (grid-invariant)
                pl.BlockSpec((cpad, 2), lambda b, t: (0, 0)),                  # shifts
            ],
            out_specs=pl.BlockSpec((1, 1, cpad, l2), lambda b, t: (b, t, 0, 0)),
        ),
        compiler_params=pltpu.CompilerParams(
            dimension_semantics=("parallel", "parallel"),
            vmem_limit_bytes=vmem_limit),
    )(x_tiles, w1, w2, sh)

    out = out.reshape(n, nt, cpad, tr, wf)
    out = jnp.transpose(out, (0, 2, 1, 3, 4)).reshape(n, cpad, nt * tr, wf)
    return out[:, :c, :h, :w]                              # already NCHW


if __name__ == "__main__":
    key = jax.random.PRNGKey(0)
    n, c, h, w = 2, 4, 16, 16            # batch, num_channels, spatial
    kernel_size, groups = 3, 2

    ks = jax.random.split(key, 13)
    x = jax.random.normal(ks[0], (n, c, h, w), jnp.float32)

    def make_layer(k0, k1, k2, k3, k4, k5):
        fan_in = (c // groups) * kernel_size * kernel_size
        bound = 1.0 / math.sqrt(fan_in)
        return dict(
            w=jax.random.uniform(k0, (c, c // groups, kernel_size, kernel_size),
                                 jnp.float32, -bound, bound),
            b=jax.random.uniform(k1, (c,), jnp.float32, -bound, bound),
            gamma=jax.random.uniform(k2, (c,), jnp.float32, 0.5, 1.5),
            beta=0.1 * jax.random.normal(k3, (c,), jnp.float32),
            running_mean=0.1 * jax.random.normal(k4, (c,), jnp.float32),
            running_var=jax.random.uniform(k5, (c,), jnp.float32, 0.5, 1.5),
        )

    params = [make_layer(*ks[1:7]), make_layer(*ks[7:13])]

    fn = jax.jit(lambda xx, pp: double_conv(xx, pp, kernel_size, groups))
    out = jax.block_until_ready(fn(x, params))
    assert out.shape == (n, c, h, w) and out.dtype == jnp.float32

    # pure-JAX reference (eval-mode BatchNorm, exact GELU)
    def reference(xx, pp):
        y = xx
        for pr in pp:
            y = lax.conv_general_dilated(
                y, pr["w"], window_strides=(1, 1), padding="SAME",
                dimension_numbers=("NCHW", "OIHW", "NCHW"),
                feature_group_count=groups)
            y = y + pr["b"][None, :, None, None]
            inv = 1.0 / jnp.sqrt(pr["running_var"] + 1e-5)
            y = ((y - pr["running_mean"][None, :, None, None])
                 * (pr["gamma"] * inv)[None, :, None, None]
                 + pr["beta"][None, :, None, None])
            y = jax.nn.gelu(y, approximate=False)
        return y

    ref = jax.block_until_ready(reference(x, params))
    err = float(np.max(np.abs(np.asarray(out) - np.asarray(ref))))
    assert np.allclose(np.asarray(out), np.asarray(ref), atol=1e-2, rtol=1e-2), err
    print("KERNEL_OK")
</pallas_src>

<mosaic_0001>
module attributes {stable_mosaic.version = 11 : i64} {
  func.func @_fused_double_conv_kernel(%arg0: i32, %arg1: i32, %arg2: memref<1x1x8x672xf32, #tpu.memory_space<vmem>>, %arg3: memref<72x8xf32, #tpu.memory_space<vmem>>, %arg4: memref<72x8xf32, #tpu.memory_space<vmem>>, %arg5: memref<8x2xf32, #tpu.memory_space<vmem>>, %arg6: memref<1x1x8x512xf32, #tpu.memory_space<vmem>>) attributes {dimension_semantics = [#tpu.dimension_semantics<parallel>, #tpu.dimension_semantics<parallel>], iteration_bounds = array<i64: 2, 1>, scalar_prefetch = 0 : i64, scratch_operands = 0 : i64, tpu.core_type = #tpu.core_type<tc>, window_params = [{transform_indices = @transform_0, window_bounds = array<i64: 1, 1, 8, 672>}, {pipeline_mode = #tpu.pipeline_mode<synchronous>, transform_indices = @transform_1, window_bounds = array<i64: 72, 8>}, {pipeline_mode = #tpu.pipeline_mode<synchronous>, transform_indices = @transform_2, window_bounds = array<i64: 72, 8>}, {pipeline_mode = #tpu.pipeline_mode<synchronous>, transform_indices = @transform_3, window_bounds = array<i64: 8, 2>}, {transform_indices = @transform_4, window_bounds = array<i64: 1, 1, 8, 512>}]} {
    %c0 = arith.constant 0 : index
    %c0_0 = arith.constant 0 : index
    %c0_1 = arith.constant 0 : index
    %c0_2 = arith.constant 0 : index
    %0 = vector.load %arg2[%c0, %c0_0, %c0_1, %c0_2] : memref<1x1x8x672xf32, #tpu.memory_space<vmem>>, vector<1x1x8x672xf32>
    %1 = vector.shape_cast %0 : vector<1x1x8x672xf32> to vector<8x672xf32>
    %cst = arith.constant 0.000000e+00 : f32
    %2 = vector.broadcast %cst : f32 to vector<8x578xf32>
    %c0_3 = arith.constant 0 : index
    %c0_4 = arith.constant 0 : index
    %3 = vector.load %arg3[%c0_3, %c0_4] : memref<72x8xf32, #tpu.memory_space<vmem>>, vector<8x8xf32>
    %4 = vector.extract_strided_slice %1 {offsets = [0, 0], sizes = [8, 578], strides = [1, 1]} : vector<8x672xf32> to vector<8x578xf32>
    %cst_5 = arith.constant dense<0.000000e+00> : vector<8x578xf32>
    %5 = tpu.matmul %3, %4, %cst_5 {dimension_numbers = #tpu.dot_dimension_numbers<[1], [0], [0], [1], [0, 0, 1, 1], [], []>} : vector<8x8xf32>, vector<8x578xf32>, vector<8x578xf32> -> vector<8x578xf32>
    %6 = arith.addf %2, %5 : vector<8x578xf32>
    %c8 = arith.constant 8 : index
    %c0_6 = arith.constant 0 : index
    %7 = vector.load %arg3[%c8, %c0_6] : memref<72x8xf32, #tpu.memory_space<vmem>>, vector<8x8xf32>
    %8 = vector.extract_strided_slice %1 {offsets = [0, 1], sizes = [8, 578], strides = [1, 1]} : vector<8x672xf32> to vector<8x578xf32>
    %cst_7 = arith.constant dense<0.000000e+00> : vector<8x578xf32>
    %9 = tpu.matmul %7, %8, %cst_7 {dimension_numbers = #tpu.dot_dimension_numbers<[1], [0], [0], [1], [0, 0, 1, 1], [], []>} : vector<8x8xf32>, vector<8x578xf32>, vector<8x578xf32> -> vector<8x578xf32>
    %10 = arith.addf %6, %9 : vector<8x578xf32>
    %c16 = arith.constant 16 : index
    %c0_8 = arith.constant 0 : index
    %11 = vector.load %arg3[%c16, %c0_8] : memref<72x8xf32, #tpu.memory_space<vmem>>, vector<8x8xf32>
    %12 = vector.extract_strided_slice %1 {offsets = [0, 2], sizes = [8, 578], strides = [1, 1]} : vector<8x672xf32> to vector<8x578xf32>
    %cst_9 = arith.constant dense<0.000000e+00> : vector<8x578xf32>
    %13 = tpu.matmul %11, %12, %cst_9 {dimension_numbers = #tpu.dot_dimension_numbers<[1], [0], [0], [1], [0, 0, 1, 1], [], []>} : vector<8x8xf32>, vector<8x578xf32>, vector<8x578xf32> -> vector<8x578xf32>
    %14 = arith.addf %10, %13 : vector<8x578xf32>
    %c24 = arith.constant 24 : index
    %c0_10 = arith.constant 0 : index
    %15 = vector.load %arg3[%c24, %c0_10] : memref<72x8xf32, #tpu.memory_space<vmem>>, vector<8x8xf32>
    %16 = vector.extract_strided_slice %1 {offsets = [0, 32], sizes = [8, 578], strides = [1, 1]} : vector<8x672xf32> to vector<8x578xf32>
    %cst_11 = arith.constant dense<0.000000e+00> : vector<8x578xf32>
    %17 = tpu.matmul %15, %16, %cst_11 {dimension_numbers = #tpu.dot_dimension_numbers<[1], [0], [0], [1], [0, 0, 1, 1], [], []>} : vector<8x8xf32>, vector<8x578xf32>, vector<8x578xf32> -> vector<8x578xf32>
    %18 = arith.addf %14, %17 : vector<8x578xf32>
    %c32 = arith.constant 32 : index
    %c0_12 = arith.constant 0 : index
    %19 = vector.load %arg3[%c32, %c0_12] : memref<72x8xf32, #tpu.memory_space<vmem>>, vector<8x8xf32>
    %20 = vector.extract_strided_slice %1 {offsets = [0, 33], sizes = [8, 578], strides = [1, 1]} : vector<8x672xf32> to vector<8x578xf32>
    %cst_13 = arith.constant dense<0.000000e+00> : vector<8x578xf32>
    %21 = tpu.matmul %19, %20, %cst_13 {dimension_numbers = #tpu.dot_dimension_numbers<[1], [0], [0], [1], [0, 0, 1, 1], [], []>} : vector<8x8xf32>, vector<8x578xf32>, vector<8x578xf32> -> vector<8x578xf32>
    %22 = arith.addf %18, %21 : vector<8x578xf32>
    %c40 = arith.constant 40 : index
    %c0_14 = arith.constant 0 : index
    %23 = vector.load %arg3[%c40, %c0_14] : memref<72x8xf32, #tpu.memory_space<vmem>>, vector<8x8xf32>
    %24 = vector.extract_strided_slice %1 {offsets = [0, 34], sizes = [8, 578], strides = [1, 1]} : vector<8x672xf32> to vector<8x578xf32>
    %cst_15 = arith.constant dense<0.000000e+00> : vector<8x578xf32>
    %25 = tpu.matmul %23, %24, %cst_15 {dimension_numbers = #tpu.dot_dimension_numbers<[1], [0], [0], [1], [0, 0, 1, 1], [], []>} : vector<8x8xf32>, vector<8x578xf32>, vector<8x578xf32> -> vector<8x578xf32>
    %26 = arith.addf %22, %25 : vector<8x578xf32>
    %c48 = arith.constant 48 : index
    %c0_16 = arith.constant 0 : index
    %27 = vector.load %arg3[%c48, %c0_16] : memref<72x8xf32, #tpu.memory_space<vmem>>, vector<8x8xf32>
    %28 = vector.extract_strided_slice %1 {offsets = [0, 64], sizes = [8, 578], strides = [1, 1]} : vector<8x672xf32> to vector<8x578xf32>
    %cst_17 = arith.constant dense<0.000000e+00> : vector<8x578xf32>
    %29 = tpu.matmul %27, %28, %cst_17 {dimension_numbers = #tpu.dot_dimension_numbers<[1], [0], [0], [1], [0, 0, 1, 1], [], []>} : vector<8x8xf32>, vector<8x578xf32>, vector<8x578xf32> -> vector<8x578xf32>
    %30 = arith.addf %26, %29 : vector<8x578xf32>
    %c56 = arith.constant 56 : index
    %c0_18 = arith.constant 0 : index
    %31 = vector.load %arg3[%c56, %c0_18] : memref<72x8xf32, #tpu.memory_space<vmem>>, vector<8x8xf32>
    %32 = vector.extract_strided_slice %1 {offsets = [0, 65], sizes = [8, 578], strides = [1, 1]} : vector<8x672xf32> to vector<8x578xf32>
    %cst_19 = arith.constant dense<0.000000e+00> : vector<8x578xf32>
    %33 = tpu.matmul %31, %32, %cst_19 {dimension_numbers = #tpu.dot_dimension_numbers<[1], [0], [0], [1], [0, 0, 1, 1], [], []>} : vector<8x8xf32>, vector<8x578xf32>, vector<8x578xf32> -> vector<8x578xf32>
    %34 = arith.addf %30, %33 : vector<8x578xf32>
    %c64 = arith.constant 64 : index
    %c0_20 = arith.constant 0 : index
    %35 = vector.load %arg3[%c64, %c0_20] : memref<72x8xf32, #tpu.memory_space<vmem>>, vector<8x8xf32>
    %36 = vector.extract_strided_slice %1 {offsets = [0, 66], sizes = [8, 578], strides = [1, 1]} : vector<8x672xf32> to vector<8x578xf32>
    %cst_21 = arith.constant dense<0.000000e+00> : vector<8x578xf32>
    %37 = tpu.matmul %35, %36, %cst_21 {dimension_numbers = #tpu.dot_dimension_numbers<[1], [0], [0], [1], [0, 0, 1, 1], [], []>} : vector<8x8xf32>, vector<8x578xf32>, vector<8x578xf32> -> vector<8x578xf32>
    %38 = arith.addf %34, %37 : vector<8x578xf32>
    %c0_22 = arith.constant 0 : index
    %c0_23 = arith.constant 0 : index
    %39 = vector.load %arg5[%c0_22, %c0_23] : memref<8x2xf32, #tpu.memory_space<vmem>>, vector<8x1xf32>
    %40 = vector.broadcast %39 : vector<8x1xf32> to vector<8x578xf32>
    %41 = arith.addf %38, %40 : vector<8x578xf32>
    %cst_24 = arith.constant 5.000000e-01 : f32
    %42 = vector.broadcast %cst_24 : f32 to vector<8x578xf32>
    %43 = arith.mulf %42, %41 : vector<8x578xf32>
    %cst_25 = arith.constant 0.707106769 : f32
    %44 = vector.broadcast %cst_25 : f32 to vector<8x578xf32>
    %45 = arith.mulf %41, %44 : vector<8x578xf32>
    %46 = math.erf %45 : vector<8x578xf32>
    %cst_26 = arith.constant 1.000000e+00 : f32
    %47 = vector.broadcast %cst_26 : f32 to vector<8x578xf32>
    %48 = arith.addf %47, %46 : vector<8x578xf32>
    %49 = arith.mulf %43, %48 : vector<8x578xf32>
    %50 = tpu.iota {dimensions = array<i32: 1>} : vector<1x578xi32>
    %c16_i32 = arith.constant 16 : i32
    %51 = arith.muli %arg1, %c16_i32 : i32
    %c5_i32 = arith.constant 5 : i32
    %52 = vector.broadcast %c5_i32 : i32 to vector<1x578xi32>
    %53 = arith.shrsi %50, %52 : vector<1x578xi32>
    %54 = vector.broadcast %51 : i32 to vector<1x578xi32>
    %55 = arith.addi %54, %53 : vector<1x578xi32>
    %c31_i32 = arith.constant 31 : i32
    %56 = vector.broadcast %c31_i32 : i32 to vector<1x578xi32>
    %57 = arith.andi %50, %56 : vector<1x578xi32>
    %c1_i32 = arith.constant 1 : i32
    %58 = vector.broadcast %c1_i32 : i32 to vector<1x578xi32>
    %59 = arith.cmpi sge, %55, %58 : vector<1x578xi32>
    %c17_i32 = arith.constant 17 : i32
    %60 = vector.broadcast %c17_i32 : i32 to vector<1x578xi32>
    %61 = arith.cmpi slt, %55, %60 : vector<1x578xi32>
    %62 = arith.andi %59, %61 : vector<1x578xi1>
    %c1_i32_27 = arith.constant 1 : i32
    %63 = vector.broadcast %c1_i32_27 : i32 to vector<1x578xi32>
    %64 = arith.cmpi sge, %57, %63 : vector<1x578xi32>
    %65 = arith.andi %62, %64 : vector<1x578xi1>
    %c17_i32_28 = arith.constant 17 : i32
    %66 = vector.broadcast %c17_i32_28 : i32 to vector<1x578xi32>
    %67 = arith.cmpi slt, %57, %66 : vector<1x578xi32>
    %68 = arith.andi %65, %67 : vector<1x578xi1>
    %cst_29 = arith.constant 0.000000e+00 : f32
    %69 = vector.shape_cast %68 : vector<1x578xi1> to vector<1x578xi1>
    %70 = vector.broadcast %69 : vector<1x578xi1> to vector<8x578xi1>
    %71 = vector.broadcast %cst_29 : f32 to vector<8x578xf32>
    %72 = arith.select %70, %49, %71 : vector<8x578xi1>, vector<8x578xf32>
    %cst_30 = arith.constant 0.000000e+00 : f32
    %73 = vector.broadcast %cst_30 : f32 to vector<8x512xf32>
    %c0_31 = arith.constant 0 : index
    %c0_32 = arith.constant 0 : index
    %74 = vector.load %arg4[%c0_31, %c0_32] : memref<72x8xf32, #tpu.memory_space<vmem>>, vector<8x8xf32>
    %75 = vector.extract_strided_slice %72 {offsets = [0, 0], sizes = [8, 512], strides = [1, 1]} : vector<8x578xf32> to vector<8x512xf32>
    %cst_33 = arith.constant dense<0.000000e+00> : vector<8x512xf32>
    %76 = tpu.matmul %74, %75, %cst_33 {dimension_numbers = #tpu.dot_dimension_numbers<[1], [0], [0], [1], [0, 0, 1, 1], [], []>} : vector<8x8xf32>, vector<8x512xf32>, vector<8x512xf32> -> vector<8x512xf32>
    %77 = arith.addf %73, %76 : vector<8x512xf32>
    %c8_34 = arith.constant 8 : index
    %c0_35 = arith.constant 0 : index
    %78 = vector.load %arg4[%c8_34, %c0_35] : memref<72x8xf32, #tpu.memory_space<vmem>>, vector<8x8xf32>
    %79 = vector.extract_strided_slice %72 {offsets = [0, 1], sizes = [8, 512], strides = [1, 1]} : vector<8x578xf32> to vector<8x512xf32>
    %cst_36 = arith.constant dense<0.000000e+00> : vector<8x512xf32>
    %80 = tpu.matmul %78, %79, %cst_36 {dimension_numbers = #tpu.dot_dimension_numbers<[1], [0], [0], [1], [0, 0, 1, 1], [], []>} : vector<8x8xf32>, vector<8x512xf32>, vector<8x512xf32> -> vector<8x512xf32>
    %81 = arith.addf %77, %80 : vector<8x512xf32>
    %c16_37 = arith.constant 16 : index
    %c0_38 = arith.constant 0 : index
    %82 = vector.load %arg4[%c16_37, %c0_38] : memref<72x8xf32, #tpu.memory_space<vmem>>, vector<8x8xf32>
    %83 = vector.extract_strided_slice %72 {offsets = [0, 2], sizes = [8, 512], strides = [1, 1]} : vector<8x578xf32> to vector<8x512xf32>
    %cst_39 = arith.constant dense<0.000000e+00> : vector<8x512xf32>
    %84 = tpu.matmul %82, %83, %cst_39 {dimension_numbers = #tpu.dot_dimension_numbers<[1], [0], [0], [1], [0, 0, 1, 1], [], []>} : vector<8x8xf32>, vector<8x512xf32>, vector<8x512xf32> -> vector<8x512xf32>
    %85 = arith.addf %81, %84 : vector<8x512xf32>
    %c24_40 = arith.constant 24 : index
    %c0_41 = arith.constant 0 : index
    %86 = vector.load %arg4[%c24_40, %c0_41] : memref<72x8xf32, #tpu.memory_space<vmem>>, vector<8x8xf32>
    %87 = vector.extract_strided_slice %72 {offsets = [0, 32], sizes = [8, 512], strides = [1, 1]} : vector<8x578xf32> to vector<8x512xf32>
    %cst_42 = arith.constant dense<0.000000e+00> : vector<8x512xf32>
    %88 = tpu.matmul %86, %87, %cst_42 {dimension_numbers = #tpu.dot_dimension_numbers<[1], [0], [0], [1], [0, 0, 1, 1], [], []>} : vector<8x8xf32>, vector<8x512xf32>, vector<8x512xf32> -> vector<8x512xf32>
    %89 = arith.addf %85, %88 : vector<8x512xf32>
    %c32_43 = arith.constant 32 : index
    %c0_44 = arith.constant 0 : index
    %90 = vector.load %arg4[%c32_43, %c0_44] : memref<72x8xf32, #tpu.memory_space<vmem>>, vector<8x8xf32>
    %91 = vector.extract_strided_slice %72 {offsets = [0, 33], sizes = [8, 512], strides = [1, 1]} : vector<8x578xf32> to vector<8x512xf32>
    %cst_45 = arith.constant dense<0.000000e+00> : vector<8x512xf32>
    %92 = tpu.matmul %90, %91, %cst_45 {dimension_numbers = #tpu.dot_dimension_numbers<[1], [0], [0], [1], [0, 0, 1, 1], [], []>} : vector<8x8xf32>, vector<8x512xf32>, vector<8x512xf32> -> vector<8x512xf32>
    %93 = arith.addf %89, %92 : vector<8x512xf32>
    %c40_46 = arith.constant 40 : index
    %c0_47 = arith.constant 0 : index
    %94 = vector.load %arg4[%c40_46, %c0_47] : memref<72x8xf32, #tpu.memory_space<vmem>>, vector<8x8xf32>
    %95 = vector.extract_strided_slice %72 {offsets = [0, 34], sizes = [8, 512], strides = [1, 1]} : vector<8x578xf32> to vector<8x512xf32>
    %cst_48 = arith.constant dense<0.000000e+00> : vector<8x512xf32>
    %96 = tpu.matmul %94, %95, %cst_48 {dimension_numbers = #tpu.dot_dimension_numbers<[1], [0], [0], [1], [0, 0, 1, 1], [], []>} : vector<8x8xf32>, vector<8x512xf32>, vector<8x512xf32> -> vector<8x512xf32>
    %97 = arith.addf %93, %96 : vector<8x512xf32>
    %c48_49 = arith.constant 48 : index
    %c0_50 = arith.constant 0 : index
    %98 = vector.load %arg4[%c48_49, %c0_50] : memref<72x8xf32, #tpu.memory_space<vmem>>, vector<8x8xf32>
    %99 = vector.extract_strided_slice %72 {offsets = [0, 64], sizes = [8, 512], strides = [1, 1]} : vector<8x578xf32> to vector<8x512xf32>
    %cst_51 = arith.constant dense<0.000000e+00> : vector<8x512xf32>
    %100 = tpu.matmul %98, %99, %cst_51 {dimension_numbers = #tpu.dot_dimension_numbers<[1], [0], [0], [1], [0, 0, 1, 1], [], []>} : vector<8x8xf32>, vector<8x512xf32>, vector<8x512xf32> -> vector<8x512xf32>
    %101 = arith.addf %97, %100 : vector<8x512xf32>
    %c56_52 = arith.constant 56 : index
    %c0_53 = arith.constant 0 : index
    %102 = vector.load %arg4[%c56_52, %c0_53] : memref<72x8xf32, #tpu.memory_space<vmem>>, vector<8x8xf32>
    %103 = vector.extract_strided_slice %72 {offsets = [0, 65], sizes = [8, 512], strides = [1, 1]} : vector<8x578xf32> to vector<8x512xf32>
    %cst_54 = arith.constant dense<0.000000e+00> : vector<8x512xf32>
    %104 = tpu.matmul %102, %103, %cst_54 {dimension_numbers = #tpu.dot_dimension_numbers<[1], [0], [0], [1], [0, 0, 1, 1], [], []>} : vector<8x8xf32>, vector<8x512xf32>, vector<8x512xf32> -> vector<8x512xf32>
    %105 = arith.addf %101, %104 : vector<8x512xf32>
    %c64_55 = arith.constant 64 : index
    %c0_56 = arith.constant 0 : index
    %106 = vector.load %arg4[%c64_55, %c0_56] : memref<72x8xf32, #tpu.memory_space<vmem>>, vector<8x8xf32>
    %107 = vector.extract_strided_slice %72 {offsets = [0, 66], sizes = [8, 512], strides = [1, 1]} : vector<8x578xf32> to vector<8x512xf32>
    %cst_57 = arith.constant dense<0.000000e+00> : vector<8x512xf32>
    %108 = tpu.matmul %106, %107, %cst_57 {dimension_numbers = #tpu.dot_dimension_numbers<[1], [0], [0], [1], [0, 0, 1, 1], [], []>} : vector<8x8xf32>, vector<8x512xf32>, vector<8x512xf32> -> vector<8x512xf32>
    %109 = arith.addf %105, %108 : vector<8x512xf32>
    %c0_58 = arith.constant 0 : index
    %c1 = arith.constant 1 : index
    %110 = vector.load %arg5[%c0_58, %c1] : memref<8x2xf32, #tpu.memory_space<vmem>>, vector<8x1xf32>
    %111 = vector.broadcast %110 : vector<8x1xf32> to vector<8x512xf32>
    %112 = arith.addf %109, %111 : vector<8x512xf32>
    %cst_59 = arith.constant 5.000000e-01 : f32
    %113 = vector.broadcast %cst_59 : f32 to vector<8x512xf32>
    %114 = arith.mulf %113, %112 : vector<8x512xf32>
    %cst_60 = arith.constant 0.707106769 : f32
    %115 = vector.broadcast %cst_60 : f32 to vector<8x512xf32>
    %116 = arith.mulf %112, %115 : vector<8x512xf32>
    %117 = math.erf %116 : vector<8x512xf32>
    %cst_61 = arith.constant 1.000000e+00 : f32
    %118 = vector.broadcast %cst_61 : f32 to vector<8x512xf32>
    %119 = arith.addf %118, %117 : vector<8x512xf32>
    %120 = arith.mulf %114, %119 : vector<8x512xf32>
    %121 = vector.shape_cast %120 : vector<8x512xf32> to vector<1x1x8x512xf32>
    %c0_62 = arith.constant 0 : index
    %c0_63 = arith.constant 0 : index
    %c0_64 = arith.constant 0 : index
    %c0_65 = arith.constant 0 : index
    %122 = vector.load %arg6[%c0_62, %c0_63, %c0_64, %c0_65] : memref<1x1x8x512xf32, #tpu.memory_space<vmem>>, vector<1x1x8x512xf32>
    tpu.vector_store %arg6[%c0_62, %c0_63, %c0_64, %c0_65], %121 {strides = array<i32>} : memref<1x1x8x512xf32, #tpu.memory_space<vmem>>, vector<1x1x8x512xf32>,
    return
  }
  func.func @transform_0(%arg0: i32, %arg1: i32) -> (i32, i32, i32, i32) {
    %c0_i32 = arith.constant 0 : i32
    %c0_i32_0 = arith.constant 0 : i32
    %c0_i32_1 = arith.constant 0 : i32
    return %arg0, %arg1, %c0_i32, %c0_i32_0 : i32, i32, i32, i32
  }
  func.func @transform_1(%arg0: i32, %arg1: i32) -> (i32, i32) {
    %c0_i32 = arith.constant 0 : i32
    %c0_i32_0 = arith.constant 0 : i32
    %c0_i32_1 = arith.constant 0 : i32
    return %c0_i32, %c0_i32_0 : i32, i32
  }
  func.func @transform_2(%arg0: i32, %arg1: i32) -> (i32, i32) {
    %c0_i32 = arith.constant 0 : i32
    %c0_i32_0 = arith.constant 0 : i32
    %c0_i32_1 = arith.constant 0 : i32
    return %c0_i32, %c0_i32_0 : i32, i32
  }
  func.func @transform_3(%arg0: i32, %arg1: i32) -> (i32, i32) {
    %c0_i32 = arith.constant 0 : i32
    %c0_i32_0 = arith.constant 0 : i32
    %c0_i32_1 = arith.constant 0 : i32
    return %c0_i32, %c0_i32_0 : i32, i32
  }
  func.func @transform_4(%arg0: i32, %arg1: i32) -> (i32, i32, i32, i32) {
    %c0_i32 = arith.constant 0 : i32
    %c0_i32_0 = arith.constant 0 : i32
    %c0_i32_1 = arith.constant 0 : i32
    return %arg0, %arg1, %c0_i32, %c0_i32_0 : i32, i32, i32, i32
  }
}

</mosaic_0001>

<llo_original>
// kernel: _lambda_.1
$region0: #{_lambda_.1}
  #allocation0 [shape = 'u32[]', space=smem, size = 0x4, offset = 0x4, fixed_abs, tag = 'smem constant byte address 0x4 - core index']
  #allocation1 [shape = 'u32[144,128]{1,0:T(1,128)}', space=vmem, size = 0x12000, scoped, tag = 'internal scratch']
  %s0 = inlined_call_operand.vmem [shape: f32[2,1,8,672], index: 0, kind: input, shape index: {}]
  %s1 = inlined_call_operand.vmem [shape: f32[72,8], index: 1, kind: input, shape index: {}]
  %s2 = inlined_call_operand.vmem [shape: f32[72,8], index: 2, kind: input, shape index: {}]
  %s3 = inlined_call_operand.vmem [shape: f32[8,2], index: 3, kind: input, shape index: {}]
  %s4 = inlined_call_operand.vmem [shape: f32[2,1,8,512], index: 4, kind: output, shape index: {}]
  %s5 = sld [smem:[#allocation0]]
  $region49: #{_lambda_.1} parent=0
    _
  %s7 = ssub.s32 1, %s5
  %s8 = scalar_select 0, %s7, %s5
  loop: start=0, step=1, limit=4
  $region2: #{_lambda_.1} parent=0 // loop_pre_header
    _
  $region3: #{_lambda_.1} parent=0 // loop_header
    %s10 = sphi 0, %s14
    %p11 = scmp.ge.s32.totalorder %s10, 4
    %s17 = sphi 0, %s29
    %s18 = sphi 0, %s25
    %s19 = sphi 0, %s17
    %s20 = sphi 0, %s18
    %s21 = sphi 0, %s19
    %s22 = sphi 0, %s20
    %s34 = sphi 0, %s36
    %s37 = sphi 0, %s34
    %s38 = sphi 0, %s37
    %s54 = sphi 0, %s38
    %s58 = sphi 0, %s58
    %s60 = sphi 0, %s58
    %s61 = sphi 0, %s60
    %s75 = sphi 0, %s61
    %s79 = sphi 0, %s79
    %s81 = sphi 0, %s79
    %s82 = sphi 0, %s81
    %s96 = sphi 0, %s82
    %s100 = sphi 0, %s100
    %s102 = sphi 0, %s100
    %s103 = sphi 0, %s102
    %s117 = sphi 0, %s103
    %s125 = sphi 0, %s127
    %s128 = sphi 0, %s125
    %s129 = sphi 0, %s128
    %s145 = sphi 0, %s129
  $region4: #{_lambda_.1} parent=0 // loop_header_branch
    %13 = sbr.rel (%p11) target = $region8
  $region5: #{_lambda_.1} parent=0 // loop_body
    %s15 = ssub.s32 %s10, 1
    %s16 = ssub.s32 %s10, 2
    %s23 = sadd.s32 1, %s18
    %p24 = scmp.ge.s32.totalorder %s23, 1
    %s25 = scalar_select %p24, 0, %s23
    %s26 = sadd.s32 1, %s17
    %s27 = scalar_select %p24, %s26, %s17
    %p28 = scmp.ge.s32.totalorder %s27, 2
    %s29 = scalar_select %p28, 0, %s27
    %s30 = ssub.s32 %s17, %s29
    %s31 = ssub.s32 %s18, %s25
    %s32 = sor.u32 %s30, %s31
    %p33 = scmp.eq.s32.totalorder %s32, 0
    %s35 = sadd.s32 %s34, 1
    %s36 = scalar_select %p33, %s34, %s35
    %p39 = pneg %p33
    %p40 = scmp.eq.s32.totalorder %s10, 1
    %p41 = por %p39, %p40
    %p42 = scmp.ne.s32.totalorder %s34, %s37
    %p43 = scmp.eq.s32.totalorder %s10, 0
    %p44 = por %p42, %p43
    %p45 = scmp.ne.s32.totalorder %s34, %s37
    %p46 = scmp.eq.s32.totalorder %s15, 1
    %p47 = por %p45, %p46
    %p48 = scmp.ne.s32.totalorder %s37, %s38
    %p49 = scmp.eq.s32.totalorder %s15, 0
    %p50 = por %p48, %p49
    %p51 = scmp.ne.s32.totalorder %s37, %s38
    %p52 = scmp.eq.s32.totalorder %s16, 1
    %p53 = por %p51, %p52
    %p55 = scmp.ne.s32.totalorder %s38, %s54
    %p56 = scmp.eq.s32.totalorder %s16, 0
    %p57 = por %p55, %p56
    %s59 = sadd.s32 %s58, 1
    %p62 = scmp.eq.s32.totalorder %s10, 1
    %p63 = scmp.ne.s32.totalorder %s58, %s60
    %p64 = scmp.eq.s32.totalorder %s10, 0
    %p65 = por %p63, %p64
    %p66 = scmp.ne.s32.totalorder %s58, %s60
    %p67 = scmp.eq.s32.totalorder %s15, 1
    %p68 = por %p66, %p67
    %p69 = scmp.ne.s32.totalorder %s60, %s61
    %p70 = scmp.eq.s32.totalorder %s15, 0
    %p71 = por %p69, %p70
    %p72 = scmp.ne.s32.totalorder %s60, %s61
    %p73 = scmp.eq.s32.totalorder %s16, 1
    %p74 = por %p72, %p73
    %p76 = scmp.ne.s32.totalorder %s61, %s75
    %p77 = scmp.eq.s32.totalorder %s16, 0
    %p78 = por %p76, %p77
    %s80 = sadd.s32 %s79, 1
    %p83 = scmp.eq.s32.totalorder %s10, 1
    %p84 = scmp.ne.s32.totalorder %s79, %s81
    %p85 = scmp.eq.s32.totalorder %s10, 0
    %p86 = por %p84, %p85
    %p87 = scmp.ne.s32.totalorder %s79, %s81
    %p88 = scmp.eq.s32.totalorder %s15, 1
    %p89 = por %p87, %p88
    %p90 = scmp.ne.s32.totalorder %s81, %s82
    %p91 = scmp.eq.s32.totalorder %s15, 0
    %p92 = por %p90, %p91
    %p93 = scmp.ne.s32.totalorder %s81, %s82
    %p94 = scmp.eq.s32.totalorder %s16, 1
    %p95 = por %p93, %p94
    %p97 = scmp.ne.s32.totalorder %s82, %s96
    %p98 = scmp.eq.s32.totalorder %s16, 0
    %p99 = por %p97, %p98
    %s101 = sadd.s32 %s100, 1
    %p104 = scmp.eq.s32.totalorder %s10, 1
    %p105 = scmp.ne.s32.totalorder %s100, %s102
    %p106 = scmp.eq.s32.totalorder %s10, 0
    %p107 = por %p105, %p106
    %p108 = scmp.ne.s32.totalorder %s100, %s102
    %p109 = scmp.eq.s32.totalorder %s15, 1
    %p110 = por %p108, %p109
    %p111 = scmp.ne.s32.totalorder %s102, %s103
    %p112 = scmp.eq.s32.totalorder %s15, 0
    %p113 = por %p111, %p112
    %p114 = scmp.ne.s32.totalorder %s102, %s103
    %p115 = scmp.eq.s32.totalorder %s16, 1
    %p116 = por %p114, %p115
    %p118 = scmp.ne.s32.totalorder %s103, %s117
    %p119 = scmp.eq.s32.totalorder %s16, 0
    %p120 = por %p118, %p119
    %s121 = ssub.s32 %s17, %s29
    %s122 = ssub.s32 %s18, %s25
    %s123 = sor.u32 %s121, %s122
    %p124 = scmp.eq.s32.totalorder %s123, 0
    %s126 = sadd.s32 %s125, 1
    %s127 = scalar_select %p124, %s125, %s126
    %p130 = pneg %p124
    %p131 = scmp.eq.s32.totalorder %s10, 1
    %p132 = por %p130, %p131
    %p133 = scmp.ne.s32.totalorder %s125, %s128
    %p134 = scmp.eq.s32.totalorder %s10, 0
    %p135 = por %p133, %p134
    %p136 = scmp.ne.s32.totalorder %s125, %s128
    %p137 = scmp.eq.s32.totalorder %s15, 1
    %p138 = por %p136, %p137
    %p139 = scmp.ne.s32.totalorder %s128, %s129
    %p140 = scmp.eq.s32.totalorder %s15, 0
    %p141 = por %p139, %p140
    %p142 = scmp.ne.s32.totalorder %s128, %s129
    %p143 = scmp.eq.s32.totalorder %s16, 1
    %p144 = por %p142, %p143
    %p146 = scmp.ne.s32.totalorder %s129, %s145
    %p147 = scmp.eq.s32.totalorder %s16, 0
    %p148 = por %p146, %p147
    %p149 = scmp.le.s32.totalorder 1, %s10
    %p150 = scmp.lt.s32.totalorder %s10, 3
    %p151 = pnand %p149, %p150
    %p152 = pneg %p151
    // Predicated region
    $region9: #{_lambda_.1} parent=5 // pred_check
      _
    $region10: #{_lambda_.1} parent=5 // pred_check_branch
      %154 = sbr.rel (%p151) target = $region12
    $region11: #{_lambda_.1} parent=5 // pred_region
      %s155 = ssub.s32 %s10, 1
      // Predicated region
      $region13: #{_lambda_.1} parent=11 // pred_check
        %p156 = pneg %p71
      $region14: #{_lambda_.1} parent=11 // pred_check_branch
        %158 = sbr.rel (%p156) target = $region16
      $region15: #{_lambda_.1} parent=11 // pred_region
        _
      $region16: #{_lambda_.1} parent=11 // pred_fallthru
        _
      // Predicated region
      $region17: #{_lambda_.1} parent=11 // pred_check
        %p159 = pneg %p92
      $region18: #{_lambda_.1} parent=11 // pred_check_branch
        %161 = sbr.rel (%p159) target = $region20
      $region19: #{_lambda_.1} parent=11 // pred_region
        _
      $region20: #{_lambda_.1} parent=11 // pred_fallthru
        _
      // Predicated region
      $region21: #{_lambda_.1} parent=11 // pred_check
        %p162 = pneg %p113
      $region22: #{_lambda_.1} parent=11 // pred_check_branch
        %164 = sbr.rel (%p162) target = $region24
      $region23: #{_lambda_.1} parent=11 // pred_region
        _
      $region24: #{_lambda_.1} parent=11 // pred_fallthru
        _
    $region12: #{_lambda_.1} parent=5 // pred_fallthru
      _
    %p165 = scmp.lt.s32.totalorder %s10, 2
    // Predicated region
    $region25: #{_lambda_.1} parent=5 // pred_check
      %p166 = pneg %p165
    $region26: #{_lambda_.1} parent=5 // pred_check_branch
      %168 = sbr.rel (%p166) target = $region28
    $region27: #{_lambda_.1} parent=5 // pred_region
      // Predicated region
      $region29: #{_lambda_.1} parent=27 // pred_check
        %p169 = pneg %p44
      $region30: #{_lambda_.1} parent=27 // pred_check_branch
        %171 = sbr.rel (%p169) target = $region32
      $region31: #{_lambda_.1} parent=27 // pred_region
        %p172 = scmp.lt.s32.totalorder %s17, 1
        %s173 = scalar_select %p172, %s17, 1
        %p174 = scmp.lt.s32.totalorder %s18, 0
        %s175 = scalar_select %p174, %s18, 0
        %s176 = smul.addr %s175, 6
        %s177 = smul.addr %s173, 6
        %s178 = sadd.s32 %s176, %s177
        %s179 = smul.addr %s178, 8
        %s180 = scalar_lea.vmem %s0, %s179
      $region32: #{_lambda_.1} parent=27 // pred_fallthru
        _
    $region28: #{_lambda_.1} parent=5 // pred_fallthru
      _
    %p181 = scmp.le.s32.totalorder 1, %s10
    %p182 = scmp.lt.s32.totalorder %s10, 3
    %p183 = pnand %p181, %p182
    %p184 = pneg %p183
    // Predicated region
    $region33: #{_lambda_.1} parent=5 // pred_check
      _
    $region34: #{_lambda_.1} parent=5 // pred_check_branch
      %186 = sbr.rel (%p183) target = $region36
    $region35: #{_lambda_.1} parent=5 // pred_region
      %s187 = ssub.s32 %s10, 1
      %p188 = scmp.lt.s32.totalorder %s19, 1
      %s189 = scalar_select %p188, %s19, 1
      %p190 = scmp.lt.s32.totalorder %s20, 0
      %s191 = scalar_select %p190, %s20, 0
      %s192 = smul.addr %s191, 6
      %s193 = smul.addr %s189, 6
      %s194 = sadd.s32 %s192, %s193
      %s195 = smul.addr %s194, 8
      %s196 = scalar_lea.vmem %s0, %s195
      %p197 = pneg %p50
      %p198 = pneg %p47
      %p199 = pneg %p71
      %p200 = pneg %p68
      %p201 = pneg %p92
      %p202 = pneg %p89
      %p203 = pneg %p113
      %p204 = pneg %p110
      %p205 = pneg %p141
      %p206 = pneg %p138
      %p207 = scmp.lt.s32.totalorder %s19, 1
      %s208 = scalar_select %p207, %s19, 1
      %p209 = scmp.lt.s32.totalorder %s20, 0
      %s210 = scalar_select %p209, %s20, 0
      %s211 = smul.addr %s210, 4
      %s212 = smul.addr %s208, 4
      %s213 = sadd.s32 %s211, %s212
      %s214 = smul.addr %s213, 8
      %s215 = scalar_lea.vmem %s4, %s214
      %p216 = scmp.lt.s32.totalorder %s19, 1
      %s217 = scalar_select %p216, %s19, 1
      %p218 = scmp.lt.s32.totalorder %s20, 0
      %s219 = scalar_select %p218, %s20, 0
      %s220 = smul.addr %s219, 6
      %s221 = smul.addr %s217, 6
      %s222 = sadd.s32 %s220, %s221
      %s223 = smul.addr %s222, 8
      %s224 = scalar_lea.vmem %s0, %s223
      %p225 = scmp.lt.s32.totalorder %s19, 1
      %s226 = scalar_select %p225, %s19, 1
      %p227 = scmp.lt.s32.totalorder %s20, 0
      %s228 = scalar_select %p227, %s20, 0
      %s229 = smul.addr %s228, 4
      %s230 = smul.addr %s226, 4
      %s231 = sadd.s32 %s229, %s230
      %s232 = smul.addr %s231, 8
      %s233 = scalar_lea.vmem %s4, %s232
      %v234 = vld [vmem:[%s224] sm:$0xff]
      %v235 = vld [vmem:[%s224 + $0x8] sm:$0xff]
      %v236 = vld [vmem:[%s224 + $0x10] sm:$0xff]
      %v237 = vld [vmem:[%s224 + $0x18] sm:$0xff]
      %v238 = vld [vmem:[%s224 + $0x20] sm:$0xff]
      %v239 = vld [vmem:[%s224 + $0x28] sm:$0xff]
      %v240 = vld [vmem:[%s1] sm:$0xff]
      %v241 = vld [vmem:[%s1 + $0x8] sm:$0xff]
      %247 = vrot.lane.b32.xlu0 %v234, 127
      %v248 = vpop.permute.xlu0 %247
      %249 = vrot.lane.b32.xlu0 %v235, 127
      %v250 = vpop.permute.xlu0 %249
      %251 = vrot.lane.b32.xlu0 %v236, 127
      %v252 = vpop.permute.xlu0 %251
      %253 = vrot.lane.b32.xlu0 %v237, 127
      %v254 = vpop.permute.xlu0 %253
      %255 = vrot.lane.b32.xlu0 %v238, 127
      %v256 = vpop.permute.xlu0 %255
      %vm257 = vcmask 1039360
      %v258 = vsel %vm257, %v248, %v250
      %v259 = vsel %vm257, %v250, %v252
      %v260 = vsel %vm257, %v252, %v254
      %v261 = vsel %vm257, %v254, %v256
      %vm267 = vcmask 64512
      %v269 = vsel %vm267, %v241, 0
      %271 = vmatprep.subr.mxu0 %v259
      %272 = vmatpush1.msra.mxu0 %v258
      %273 = vmatprep.subr.mxu0 0.0
      %274 = vmatpush1.msra.mxu0 0.0
      %275 = vmatprep.subr.mxu0 0.0
      %276 = vmatpush1.msra.mxu0 0.0
      %277 = vmatprep.subr.mxu0 0.0
      %278 = vmatpush1.msra.mxu0 0.0
      %279 = vmatprep.subr.mxu0 0.0
      %280 = vmatpush1.msra.mxu0 0.0
      %281 = vmatprep.subr.mxu0 0.0
      %282 = vmatpush1.msra.mxu0 0.0
      %283 = vmatprep.subr.mxu0 0.0
      %284 = vmatpush1.msra.mxu0 0.0
      %285 = vmatprep.subr.mxu0 0.0
      %286 = vmatpush1.msra.mxu0 0.0
      %287 = vmatprep.subr.mxu0 0.0
      %288 = vmatpush1.msra.mxu0 0.0
      %289 = vmatprep.subr.mxu0 0.0
      %290 = vmatpush1.msra.mxu0 0.0
      %291 = vmatprep.subr.mxu0 0.0
      %292 = vmatpush1.msra.mxu0 0.0
      %293 = vmatprep.subr.mxu0 0.0
      %294 = vmatpush1.msra.mxu0 0.0
      %295 = vmatprep.subr.mxu0 0.0
      %296 = vmatpush1.msra.mxu0 0.0
      %297 = vmatprep.subr.mxu0 0.0
      %298 = vmatpush1.msra.mxu0 0.0
      %299 = vmatprep.subr.mxu0 0.0
      %300 = vmatpush1.msra.mxu0 0.0
      %301 = vmatprep.subr.mxu0 0.0
      %302 = vmatpush1.msra.mxu0 0.0
      %303 = vmatprep.subr.mxu0 0.0
      %304 = vmatpush1.msra.mxu0 0.0
      %305 = vmatprep.subr.mxu0 0.0
      %306 = vmatpush1.msra.mxu0 0.0
      %307 = vmatprep.subr.mxu0 0.0
      %308 = vmatpush1.msra.mxu0 0.0
      %309 = vmatprep.subr.mxu0 0.0
      %310 = vmatpush1.msra.mxu0 0.0
      %311 = vmatprep.subr.mxu0 0.0
      %312 = vmatpush1.msra.mxu0 0.0
      %313 = vmatprep.subr.mxu0 0.0
      %314 = vmatpush1.msra.mxu0 0.0
      %315 = vmatprep.subr.mxu0 0.0
      %316 = vmatpush1.msra.mxu0 0.0
      %317 = vmatprep.subr.mxu0 0.0
      %318 = vmatpush1.msra.mxu0 0.0
      %319 = vmatprep.subr.mxu0 0.0
      %320 = vmatpush1.msra.mxu0 0.0
      %321 = vmatprep.subr.mxu0 0.0
      %322 = vmatpush1.msra.mxu0 0.0
      %323 = vmatprep.subr.mxu0 0.0
      %324 = vmatpush1.msra.mxu0 0.0
      %325 = vmatprep.subr.mxu0 0.0
      %326 = vmatpush1.msra.mxu0 0.0
      %327 = vmatprep.subr.mxu0 0.0
      %328 = vmatpush1.msra.mxu0 0.0
      %329 = vmatprep.subr.mxu0 0.0
      %330 = vmatpush1.msra.mxu0 0.0
      %331 = vmatprep.subr.mxu0 0.0
      %332 = vmatpush1.msra.mxu0 0.0
      %333 = vmatprep.subr.mxu0 0.0
      %334 = vmatpush1.msra.mxu0 0.0
      %335 = vmatprep.mubr.f32.mxu0 0.0
      %336 = vmatmul.mubr.f32.gmra.mrb[0].mxu0 %v269
      %v337 = vpop.f32.mrb[0].mxu0
      %v338 = vadd.f32 0.0, %v337
      %v339 = vpop.f32.mrb[0].mxu0
      %v340 = vadd.f32 0.0, %v339
      %341 = vdwg.mxu0
      %342 = vmatprep.subr.mxu0 %v261
      %343 = vmatpush1.msra.mxu0 %v260
      %344 = vmatprep.subr.mxu0 0.0
      %345 = vmatpush1.msra.mxu0 0.0
      %346 = vmatprep.subr.mxu0 0.0
      %347 = vmatpush1.msra.mxu0 0.0
      %348 = vmatprep.subr.mxu0 0.0
      %349 = vmatpush1.msra.mxu0 0.0
      %350 = vmatprep.subr.mxu0 0.0
      %351 = vmatpush1.msra.mxu0 0.0
      %352 = vmatprep.subr.mxu0 0.0
      %353 = vmatpush1.msra.mxu0 0.0
      %354 = vmatprep.subr.mxu0 0.0
      %355 = vmatpush1.msra.mxu0 0.0
      %356 = vmatprep.subr.mxu0 0.0
      %357 = vmatpush1.msra.mxu0 0.0
      %358 = vmatprep.subr.mxu0 0.0
      %359 = vmatpush1.msra.mxu0 0.0
      %360 = vmatprep.subr.mxu0 0.0
      %361 = vmatpush1.msra.mxu0 0.0
      %362 = vmatprep.subr.mxu0 0.0
      %363 = vmatpush1.msra.mxu0 0.0
      %364 = vmatprep.subr.mxu0 0.0
      %365 = vmatpush1.msra.mxu0 0.0
      %366 = vmatprep.subr.mxu0 0.0
      %367 = vmatpush1.msra.mxu0 0.0
      %368 = vmatprep.subr.mxu0 0.0
      %369 = vmatpush1.msra.mxu0 0.0
      %370 = vmatprep.subr.mxu0 0.0
      %371 = vmatpush1.msra.mxu0 0.0
      %372 = vmatprep.subr.mxu0 0.0
      %373 = vmatpush1.msra.mxu0 0.0
      %374 = vmatprep.subr.mxu0 0.0
      %375 = vmatpush1.msra.mxu0 0.0
      %376 = vmatprep.subr.mxu0 0.0
      %377 = vmatpush1.msra.mxu0 0.0
      %378 = vmatprep.subr.mxu0 0.0
      %379 = vmatpush1.msra.mxu0 0.0
      %380 = vmatprep.subr.mxu0 0.0
      %381 = vmatpush1.msra.mxu0 0.0
      %382 = vmatprep.subr.mxu0 0.0
      %383 = vmatpush1.msra.mxu0 0.0
      %384 = vmatprep.subr.mxu0 0.0
      %385 = vmatpush1.msra.mxu0 0.0
      %386 = vmatprep.subr.mxu0 0.0
      %387 = vmatpush1.msra.mxu0 0.0
      %388 = vmatprep.subr.mxu0 0.0
      %389 = vmatpush1.msra.mxu0 0.0
      %390 = vmatprep.subr.mxu0 0.0
      %391 = vmatpush1.msra.mxu0 0.0
      %392 = vmatprep.subr.mxu0 0.0
      %393 = vmatpush1.msra.mxu0 0.0
      %394 = vmatprep.subr.mxu0 0.0
      %395 = vmatpush1.msra.mxu0 0.0
      %396 = vmatprep.subr.mxu0 0.0
      %397 = vmatpush1.msra.mxu0 0.0
      %398 = vmatprep.subr.mxu0 0.0
      %399 = vmatpush1.msra.mxu0 0.0
      %400 = vmatprep.subr.mxu0 0.0
      %401 = vmatpush1.msra.mxu0 0.0
      %402 = vmatprep.subr.mxu0 0.0
      %403 = vmatpush1.msra.mxu0 0.0
      %404 = vmatprep.subr.mxu0 0.0
      %405 = vmatpush1.msra.mxu0 0.0
      %406 = vmatprep.mubr.f32.mxu0 0.0
      %407 = vmatmul.mubr.f32.gmra.mrb[0].mxu0 %v269
      %v408 = vpop.f32.mrb[0].mxu0
      %v409 = vadd.f32 0.0, %v408
      %v410 = vpop.f32.mrb[0].mxu0
      %v411 = vadd.f32 0.0, %v410
      %412 = vdwg.mxu0
      %413 = vmatprep.subr.mxu0 0.0
      %414 = vmatpush1.msra.mxu0 %v256
      %415 = vmatprep.subr.mxu0 0.0
      %416 = vmatpush1.msra.mxu0 0.0
      %417 = vmatprep.subr.mxu0 0.0
      %418 = vmatpush1.msra.mxu0 0.0
      %419 = vmatprep.subr.mxu0 0.0
      %420 = vmatpush1.msra.mxu0 0.0
      %421 = vmatprep.subr.mxu0 0.0
      %422 = vmatpush1.msra.mxu0 0.0
      %423 = vmatprep.subr.mxu0 0.0
      %424 = vmatpush1.msra.mxu0 0.0
      %425 = vmatprep.subr.mxu0 0.0
      %426 = vmatpush1.msra.mxu0 0.0
      %427 = vmatprep.subr.mxu0 0.0
      %428 = vmatpush1.msra.mxu0 0.0
      %429 = vmatprep.subr.mxu0 0.0
      %430 = vmatpush1.msra.mxu0 0.0
      %431 = vmatprep.subr.mxu0 0.0
      %432 = vmatpush1.msra.mxu0 0.0
      %433 = vmatprep.subr.mxu0 0.0
      %434 = vmatpush1.msra.mxu0 0.0
      %435 = vmatprep.subr.mxu0 0.0
      %436 = vmatpush1.msra.mxu0 0.0
      %437 = vmatprep.subr.mxu0 0.0
      %438 = vmatpush1.msra.mxu0 0.0
      %439 = vmatprep.subr.mxu0 0.0
      %440 = vmatpush1.msra.mxu0 0.0
      %441 = vmatprep.subr.mxu0 0.0
      %442 = vmatpush1.msra.mxu0 0.0
      %443 = vmatprep.subr.mxu0 0.0
      %444 = vmatpush1.msra.mxu0 0.0
      %445 = vmatprep.subr.mxu0 0.0
      %446 = vmatpush1.msra.mxu0 0.0
      %447 = vmatprep.subr.mxu0 0.0
      %448 = vmatpush1.msra.mxu0 0.0
      %449 = vmatprep.subr.mxu0 0.0
      %450 = vmatpush1.msra.mxu0 0.0
      %451 = vmatprep.subr.mxu0 0.0
      %452 = vmatpush1.msra.mxu0 0.0
      %453 = vmatprep.subr.mxu0 0.0
      %454 = vmatpush1.msra.mxu0 0.0
      %455 = vmatprep.subr.mxu0 0.0
      %456 = vmatpush1.msra.mxu0 0.0
      %457 = vmatprep.subr.mxu0 0.0
      %458 = vmatpush1.msra.mxu0 0.0
      %459 = vmatprep.subr.mxu0 0.0
      %460 = vmatpush1.msra.mxu0 0.0
      %461 = vmatprep.subr.mxu0 0.0
      %462 = vmatpush1.msra.mxu0 0.0
      %463 = vmatprep.subr.mxu0 0.0
      %464 = vmatpush1.msra.mxu0 0.0
      %465 = vmatprep.subr.mxu0 0.0
      %466 = vmatpush1.msra.mxu0 0.0
      %467 = vmatprep.subr.mxu0 0.0
      %468 = vmatpush1.msra.mxu0 0.0
      %469 = vmatprep.subr.mxu0 0.0
      %470 = vmatpush1.msra.mxu0 0.0
      %471 = vmatprep.subr.mxu0 0.0
      %472 = vmatpush1.msra.mxu0 0.0
      %473 = vmatprep.subr.mxu0 0.0
      %474 = vmatpush1.msra.mxu0 0.0
      %475 = vmatprep.subr.mxu0 0.0
      %476 = vmatpush1.msra.mxu0 0.0
      %477 = vmatprep.mubr.f32.mxu0 0.0
      %478 = vmatmul.mubr.f32.gmra.mrb[0].mxu0 %v269
      %v479 = vpop.f32.mrb[0].mxu0
      %v480 = vadd.f32 0.0, %v479
      %v481 = vpop.f32.mrb[0].mxu0
      %482 = vdwg.mxu0
      %v484 = vsel %vm267, %v240, 0
      %486 = vmatprep.subr.mxu0 %v235
      %487 = vmatpush1.msra.mxu0 %v234
      %488 = vmatprep.subr.mxu0 0.0
      %489 = vmatpush1.msra.mxu0 0.0
      %490 = vmatprep.subr.mxu0 0.0
      %491 = vmatpush1.msra.mxu0 0.0
      %492 = vmatprep.subr.mxu0 0.0
      %493 = vmatpush1.msra.mxu0 0.0
      %494 = vmatprep.subr.mxu0 0.0
      %495 = vmatpush1.msra.mxu0 0.0
      %496 = vmatprep.subr.mxu0 0.0
      %497 = vmatpush1.msra.mxu0 0.0
      %498 = vmatprep.subr.mxu0 0.0
      %499 = vmatpush1.msra.mxu0 0.0
      %500 = vmatprep.subr.mxu0 0.0
      %501 = vmatpush1.msra.mxu0 0.0
      %502 = vmatprep.subr.mxu0 0.0
      %503 = vmatpush1.msra.mxu0 0.0
      %504 = vmatprep.subr.mxu0 0.0
      %505 = vmatpush1.msra.mxu0 0.0
      %506 = vmatprep.subr.mxu0 0.0
      %507 = vmatpush1.msra.mxu0 0.0
      %508 = vmatprep.subr.mxu0 0.0
      %509 = vmatpush1.msra.mxu0 0.0
      %510 = vmatprep.subr.mxu0 0.0
      %511 = vmatpush1.msra.mxu0 0.0
      %512 = vmatprep.subr.mxu0 0.0
      %513 = vmatpush1.msra.mxu0 0.0
      %514 = vmatprep.subr.mxu0 0.0
      %515 = vmatpush1.msra.mxu0 0.0
      %516 = vmatprep.subr.mxu0 0.0
      %517 = vmatpush1.msra.mxu0 0.0
      %518 = vmatprep.subr.mxu0 0.0
      %519 = vmatpush1.msra.mxu0 0.0
      %520 = vmatprep.subr.mxu0 0.0
      %521 = vmatpush1.msra.mxu0 0.0
      %522 = vmatprep.subr.mxu0 0.0
      %523 = vmatpush1.msra.mxu0 0.0
      %524 = vmatprep.subr.mxu0 0.0
      %525 = vmatpush1.msra.mxu0 0.0
      %526 = vmatprep.subr.mxu0 0.0
      %527 = vmatpush1.msra.mxu0 0.0
      %528 = vmatprep.subr.mxu0 0.0
      %529 = vmatpush1.msra.mxu0 0.0
      %530 = vmatprep.subr.mxu0 0.0
      %531 = vmatpush1.msra.mxu0 0.0
      %532 = vmatprep.subr.mxu0 0.0
      %533 = vmatpush1.msra.mxu0 0.0
      %534 = vmatprep.subr.mxu0 0.0
      %535 = vmatpush1.msra.mxu0 0.0
      %536 = vmatprep.subr.mxu0 0.0
      %537 = vmatpush1.msra.mxu0 0.0
      %538 = vmatprep.subr.mxu0 0.0
      %539 = vmatpush1.msra.mxu0 0.0
      %540 = vmatprep.subr.mxu0 0.0
      %541 = vmatpush1.msra.mxu0 0.0
      %542 = vmatprep.subr.mxu0 0.0
      %543 = vmatpush1.msra.mxu0 0.0
      %544 = vmatprep.subr.mxu0 0.0
      %545 = vmatpush1.msra.mxu0 0.0
      %546 = vmatprep.subr.mxu0 0.0
      %547 = vmatpush1.msra.mxu0 0.0
      %548 = vmatprep.subr.mxu0 0.0
      %549 = vmatpush1.msra.mxu0 0.0
      %550 = vmatprep.mubr.f32.mxu0 0.0
      %551 = vmatmul.mubr.f32.gmra.mrb[0].mxu0 %v484
      %v552 = vpop.f32.mrb[0].mxu0
      %v553 = vadd.f32 %v338, %v552
      %v554 = vpop.f32.mrb[0].mxu0
      %v555 = vadd.f32 %v340, %v554
      %556 = vdwg.mxu0
      %557 = vmatprep.subr.mxu0 %v237
      %558 = vmatpush1.msra.mxu0 %v236
      %559 = vmatprep.subr.mxu0 0.0
      %560 = vmatpush1.msra.mxu0 0.0
      %561 = vmatprep.subr.mxu0 0.0
      %562 = vmatpush1.msra.mxu0 0.0
      %563 = vmatprep.subr.mxu0 0.0
      %564 = vmatpush1.msra.mxu0 0.0
      %565 = vmatprep.subr.mxu0 0.0
      %566 = vmatpush1.msra.mxu0 0.0
      %567 = vmatprep.subr.mxu0 0.0
      %568 = vmatpush1.msra.mxu0 0.0
      %569 = vmatprep.subr.mxu0 0.0
      %570 = vmatpush1.msra.mxu0 0.0
      %571 = vmatprep.subr.mxu0 0.0
      %572 = vmatpush1.msra.mxu0 0.0
      %573 = vmatprep.subr.mxu0 0.0
      %574 = vmatpush1.msra.mxu0 0.0
      %575 = vmatprep.subr.mxu0 0.0
      %576 = vmatpush1.msra.mxu0 0.0
      %577 = vmatprep.subr.mxu0 0.0
      %578 = vmatpush1.msra.mxu0 0.0
      %579 = vmatprep.subr.mxu0 0.0
      %580 = vmatpush1.msra.mxu0 0.0
      %581 = vmatprep.subr.mxu0 0.0
      %582 = vmatpush1.msra.mxu0 0.0
      %583 = vmatprep.subr.mxu0 0.0
      %584 = vmatpush1.msra.mxu0 0.0
      %585 = vmatprep.subr.mxu0 0.0
      %586 = vmatpush1.msra.mxu0 0.0
      %587 = vmatprep.subr.mxu0 0.0
      %588 = vmatpush1.msra.mxu0 0.0
      %589 = vmatprep.subr.mxu0 0.0
      %590 = vmatpush1.msra.mxu0 0.0
      %591 = vmatprep.subr.mxu0 0.0
      %592 = vmatpush1.msra.mxu0 0.0
      %593 = vmatprep.subr.mxu0 0.0
      %594 = vmatpush1.msra.mxu0 0.0
      %595 = vmatprep.subr.mxu0 0.0
      %596 = vmatpush1.msra.mxu0 0.0
      %597 = vmatprep.subr.mxu0 0.0
      %598 = vmatpush1.msra.mxu0 0.0
      %599 = vmatprep.subr.mxu0 0.0
      %600 = vmatpush1.msra.mxu0 0.0
      %601 = vmatprep.subr.mxu0 0.0
      %602 = vmatpush1.msra.mxu0 0.0
      %603 = vmatprep.subr.mxu0 0.0
      %604 = vmatpush1.msra.mxu0 0.0
      %605 = vmatprep.subr.mxu0 0.0
      %606 = vmatpush1.msra.mxu0 0.0
      %607 = vmatprep.subr.mxu0 0.0
      %608 = vmatpush1.msra.mxu0 0.0
      %609 = vmatprep.subr.mxu0 0.0
      %610 = vmatpush1.msra.mxu0 0.0
      %611 = vmatprep.subr.mxu0 0.0
      %612 = vmatpush1.msra.mxu0 0.0
      %613 = vmatprep.subr.mxu0 0.0
      %614 = vmatpush1.msra.mxu0 0.0
      %615 = vmatprep.subr.mxu0 0.0
      %616 = vmatpush1.msra.mxu0 0.0
      %617 = vmatprep.subr.mxu0 0.0
      %618 = vmatpush1.msra.mxu0 0.0
      %619 = vmatprep.subr.mxu0 0.0
      %620 = vmatpush1.msra.mxu0 0.0
      %621 = vmatprep.mubr.f32.mxu0 0.0
      %622 = vmatmul.mubr.f32.gmra.mrb[0].mxu0 %v484
      %v623 = vpop.f32.mrb[0].mxu0
      %v624 = vadd.f32 %v409, %v623
      %v625 = vpop.f32.mrb[0].mxu0
      %v626 = vadd.f32 %v411, %v625
      %627 = vdwg.mxu0
      %628 = vmatprep.subr.mxu0 0.0
      %629 = vmatpush1.msra.mxu0 %v238
      %630 = vmatprep.subr.mxu0 0.0
      %631 = vmatpush1.msra.mxu0 0.0
      %632 = vmatprep.subr.mxu0 0.0
      %633 = vmatpush1.msra.mxu0 0.0
      %634 = vmatprep.subr.mxu0 0.0
      %635 = vmatpush1.msra.mxu0 0.0
      %636 = vmatprep.subr.mxu0 0.0
      %637 = vmatpush1.msra.mxu0 0.0
      %638 = vmatprep.subr.mxu0 0.0
      %639 = vmatpush1.msra.mxu0 0.0
      %640 = vmatprep.subr.mxu0 0.0
      %641 = vmatpush1.msra.mxu0 0.0
      %642 = vmatprep.subr.mxu0 0.0
      %643 = vmatpush1.msra.mxu0 0.0
      %644 = vmatprep.subr.mxu0 0.0
      %645 = vmatpush1.msra.mxu0 0.0
      %646 = vmatprep.subr.mxu0 0.0
      %647 = vmatpush1.msra.mxu0 0.0
      %648 = vmatprep.subr.mxu0 0.0
      %649 = vmatpush1.msra.mxu0 0.0
      %650 = vmatprep.subr.mxu0 0.0
      %651 = vmatpush1.msra.mxu0 0.0
      %652 = vmatprep.subr.mxu0 0.0
      %653 = vmatpush1.msra.mxu0 0.0
      %654 = vmatprep.subr.mxu0 0.0
      %655 = vmatpush1.msra.mxu0 0.0
      %656 = vmatprep.subr.mxu0 0.0
      %657 = vmatpush1.msra.mxu0 0.0
      %658 = vmatprep.subr.mxu0 0.0
      %659 = vmatpush1.msra.mxu0 0.0
      %660 = vmatprep.subr.mxu0 0.0
      %661 = vmatpush1.msra.mxu0 0.0
      %662 = vmatprep.subr.mxu0 0.0
      %663 = vmatpush1.msra.mxu0 0.0
      %664 = vmatprep.subr.mxu0 0.0
      %665 = vmatpush1.msra.mxu0 0.0
      %666 = vmatprep.subr.mxu0 0.0
      %667 = vmatpush1.msra.mxu0 0.0
      %668 = vmatprep.subr.mxu0 0.0
      %669 = vmatpush1.msra.mxu0 0.0
      %670 = vmatprep.subr.mxu0 0.0
      %671 = vmatpush1.msra.mxu0 0.0
      %672 = vmatprep.subr.mxu0 0.0
      %673 = vmatpush1.msra.mxu0 0.0
      %674 = vmatprep.subr.mxu0 0.0
      %675 = vmatpush1.msra.mxu0 0.0
      %676 = vmatprep.subr.mxu0 0.0
      %677 = vmatpush1.msra.mxu0 0.0
      %678 = vmatprep.subr.mxu0 0.0
      %679 = vmatpush1.msra.mxu0 0.0
      %680 = vmatprep.subr.mxu0 0.0
      %681 = vmatpush1.msra.mxu0 0.0
      %682 = vmatprep.subr.mxu0 0.0
      %683 = vmatpush1.msra.mxu0 0.0
      %684 = vmatprep.subr.mxu0 0.0
      %685 = vmatpush1.msra.mxu0 0.0
      %686 = vmatprep.subr.mxu0 0.0
      %687 = vmatpush1.msra.mxu0 0.0
      %688 = vmatprep.subr.mxu0 0.0
      %689 = vmatpush1.msra.mxu0 0.0
      %690 = vmatprep.subr.mxu0 0.0
      %691 = vmatpush1.msra.mxu0 0.0
      %692 = vmatprep.mubr.f32.mxu0 0.0
      %693 = vmatmul.mubr.f32.gmra.mrb[0].mxu0 %v484
      %v694 = vpop.f32.mrb[0].mxu0
      %v695 = vadd.f32 %v480, %v694
      %v696 = vpop.f32.mrb[0].mxu0
      %697 = vdwg.mxu0
      %v698 = vld [vmem:[%s1 + $0x10] sm:$0xff]
      %699 = vrot.lane.b32.xlu0 %v234, 126
      %v700 = vpop.permute.xlu0 %699
      %701 = vrot.lane.b32.xlu0 %v235, 126
      %v702 = vpop.permute.xlu0 %701
      %703 = vrot.lane.b32.xlu0 %v236, 126
      %v704 = vpop.permute.xlu0 %703
      %705 = vrot.lane.b32.xlu0 %v237, 126
      %v706 = vpop.permute.xlu0 %705
      %707 = vrot.lane.b32.xlu0 %v238, 126
      %v708 = vpop.permute.xlu0 %707
      %vm709 = vcmask 1031168
      %v710 = vsel %vm709, %v700, %v702
      %v711 = vsel %vm709, %v702, %v704
      %v712 = vsel %vm709, %v704, %v706
      %v713 = vsel %vm709, %v706, %v708
      %v720 = vsel %vm267, %v698, 0
      %722 = vmatprep.subr.mxu0 %v711
      %723 = vmatpush1.msra.mxu0 %v710
      %724 = vmatprep.subr.mxu0 0.0
      %725 = vmatpush1.msra.mxu0 0.0
      %726 = vmatprep.subr.mxu0 0.0
      %727 = vmatpush1.msra.mxu0 0.0
      %728 = vmatprep.subr.mxu0 0.0
      %729 = vmatpush1.msra.mxu0 0.0
      %730 = vmatprep.subr.mxu0 0.0
      %731 = vmatpush1.msra.mxu0 0.0
      %732 = vmatprep.subr.mxu0 0.0
      %733 = vmatpush1.msra.mxu0 0.0
      %734 = vmatprep.subr.mxu0 0.0
      %735 = vmatpush1.msra.mxu0 0.0
      %736 = vmatprep.subr.mxu0 0.0
      %737 = vmatpush1.msra.mxu0 0.0
      %738 = vmatprep.subr.mxu0 0.0
      %739 = vmatpush1.msra.mxu0 0.0
      %740 = vmatprep.subr.mxu0 0.0
      %741 = vmatpush1.msra.mxu0 0.0
      %742 = vmatprep.subr.mxu0 0.0
      %743 = vmatpush1.msra.mxu0 0.0
      %744 = vmatprep.subr.mxu0 0.0
      %745 = vmatpush1.msra.mxu0 0.0
      %746 = vmatprep.subr.mxu0 0.0
      %747 = vmatpush1.msra.mxu0 0.0
      %748 = vmatprep.subr.mxu0 0.0
      %749 = vmatpush1.msra.mxu0 0.0
      %750 = vmatprep.subr.mxu0 0.0
      %751 = vmatpush1.msra.mxu0 0.0
      %752 = vmatprep.subr.mxu0 0.0
      %753 = vmatpush1.msra.mxu0 0.0
      %754 = vmatprep.subr.mxu0 0.0
      %755 = vmatpush1.msra.mxu0 0.0
      %756 = vmatprep.subr.mxu0 0.0
      %757 = vmatpush1.msra.mxu0 0.0
      %758 = vmatprep.subr.mxu0 0.0
      %759 = vmatpush1.msra.mxu0 0.0
      %760 = vmatprep.subr.mxu0 0.0
      %761 = vmatpush1.msra.mxu0 0.0
      %762 = vmatprep.subr.mxu0 0.0
      %763 = vmatpush1.msra.mxu0 0.0
      %764 = vmatprep.subr.mxu0 0.0
      %765 = vmatpush1.msra.mxu0 0.0
      %766 = vmatprep.subr.mxu0 0.0
      %767 = vmatpush1.msra.mxu0 0.0
      %768 = vmatprep.subr.mxu0 0.0
      %769 = vmatpush1.msra.mxu0 0.0
      %770 = vmatprep.subr.mxu0 0.0
      %771 = vmatpush1.msra.mxu0 0.0
      %772 = vmatprep.subr.mxu0 0.0
      %773 = vmatpush1.msra.mxu0 0.0
      %774 = vmatprep.subr.mxu0 0.0
      %775 = vmatpush1.msra.mxu0 0.0
      %776 = vmatprep.subr.mxu0 0.0
      %777 = vmatpush1.msra.mxu0 0.0
      %778 = vmatprep.subr.mxu0 0.0
      %779 = vmatpush1.msra.mxu0 0.0
      %780 = vmatprep.subr.mxu0 0.0
      %781 = vmatpush1.msra.mxu0 0.0
      %782 = vmatprep.subr.mxu0 0.0
      %783 = vmatpush1.msra.mxu0 0.0
      %784 = vmatprep.subr.mxu0 0.0
      %785 = vmatpush1.msra.mxu0 0.0
      %786 = vmatprep.mubr.f32.mxu0 0.0
      %787 = vmatmul.mubr.f32.gmra.mrb[0].mxu0 %v720
      %v788 = vpop.f32.mrb[0].mxu0
      %v789 = vadd.f32 0.0, %v788
      %v790 = vpop.f32.mrb[0].mxu0
      %v791 = vadd.f32 0.0, %v790
      %792 = vdwg.mxu0
      %793 = vmatprep.subr.mxu0 %v713
      %794 = vmatpush1.msra.mxu0 %v712
      %795 = vmatprep.subr.mxu0 0.0
      %796 = vmatpush1.msra.mxu0 0.0
      %797 = vmatprep.subr.mxu0 0.0
      %798 = vmatpush1.msra.mxu0 0.0
      %799 = vmatprep.subr.mxu0 0.0
      %800 = vmatpush1.msra.mxu0 0.0
      %801 = vmatprep.subr.mxu0 0.0
      %802 = vmatpush1.msra.mxu0 0.0
      %803 = vmatprep.subr.mxu0 0.0
      %804 = vmatpush1.msra.mxu0 0.0
      %805 = vmatprep.subr.mxu0 0.0
      %806 = vmatpush1.msra.mxu0 0.0
      %807 = vmatprep.subr.mxu0 0.0
      %808 = vmatpush1.msra.mxu0 0.0
      %809 = vmatprep.subr.mxu0 0.0
      %810 = vmatpush1.msra.mxu0 0.0
      %811 = vmatprep.subr.mxu0 0.0
      %812 = vmatpush1.msra.mxu0 0.0
      %813 = vmatprep.subr.mxu0 0.0
      %814 = vmatpush1.msra.mxu0 0.0
      %815 = vmatprep.subr.mxu0 0.0
      %816 = vmatpush1.msra.mxu0 0.0
      %817 = vmatprep.subr.mxu0 0.0
      %818 = vmatpush1.msra.mxu0 0.0
      %819 = vmatprep.subr.mxu0 0.0
      %820 = vmatpush1.msra.mxu0 0.0
      %821 = vmatprep.subr.mxu0 0.0
      %822 = vmatpush1.msra.mxu0 0.0
      %823 = vmatprep.subr.mxu0 0.0
      %824 = vmatpush1.msra.mxu0 0.0
      %825 = vmatprep.subr.mxu0 0.0
      %826 = vmatpush1.msra.mxu0 0.0
      %827 = vmatprep.subr.mxu0 0.0
      %828 = vmatpush1.msra.mxu0 0.0
      %829 = vmatprep.subr.mxu0 0.0
      %830 = vmatpush1.msra.mxu0 0.0
      %831 = vmatprep.subr.mxu0 0.0
      %832 = vmatpush1.msra.mxu0 0.0
      %833 = vmatprep.subr.mxu0 0.0
      %834 = vmatpush1.msra.mxu0 0.0
      %835 = vmatprep.subr.mxu0 0.0
      %836 = vmatpush1.msra.mxu0 0.0
      %837 = vmatprep.subr.mxu0 0.0
      %838 = vmatpush1.msra.mxu0 0.0
      %839 = vmatprep.subr.mxu0 0.0
      %840 = vmatpush1.msra.mxu0 0.0
      %841 = vmatprep.subr.mxu0 0.0
      %842 = vmatpush1.msra.mxu0 0.0
      %843 = vmatprep.subr.mxu0 0.0
      %844 = vmatpush1.msra.mxu0 0.0
      %845 = vmatprep.subr.mxu0 0.0
      %846 = vmatpush1.msra.mxu0 0.0
      %847 = vmatprep.subr.mxu0 0.0
      %848 = vmatpush1.msra.mxu0 0.0
      %849 = vmatprep.subr.mxu0 0.0
      %850 = vmatpush1.msra.mxu0 0.0
      %851 = vmatprep.subr.mxu0 0.0
      %852 = vmatpush1.msra.mxu0 0.0
      %853 = vmatprep.subr.mxu0 0.0
      %854 = vmatpush1.msra.mxu0 0.0
      %855 = vmatprep.subr.mxu0 0.0
      %856 = vmatpush1.msra.mxu0 0.0
      %857 = vmatprep.mubr.f32.mxu0 0.0
      %858 = vmatmul.mubr.f32.gmra.mrb[0].mxu0 %v720
      %v859 = vpop.f32.mrb[0].mxu0
      %v860 = vadd.f32 0.0, %v859
      %v861 = vpop.f32.mrb[0].mxu0
      %v862 = vadd.f32 0.0, %v861
      %863 = vdwg.mxu0
      %864 = vmatprep.subr.mxu0 0.0
      %865 = vmatpush1.msra.mxu0 %v708
      %866 = vmatprep.subr.mxu0 0.0
      %867 = vmatpush1.msra.mxu0 0.0
      %868 = vmatprep.subr.mxu0 0.0
      %869 = vmatpush1.msra.mxu0 0.0
      %870 = vmatprep.subr.mxu0 0.0
      %871 = vmatpush1.msra.mxu0 0.0
      %872 = vmatprep.subr.mxu0 0.0
      %873 = vmatpush1.msra.mxu0 0.0
      %874 = vmatprep.subr.mxu0 0.0
      %875 = vmatpush1.msra.mxu0 0.0
      %876 = vmatprep.subr.mxu0 0.0
      %877 = vmatpush1.msra.mxu0 0.0
      %878 = vmatprep.subr.mxu0 0.0
      %879 = vmatpush1.msra.mxu0 0.0
      %880 = vmatprep.subr.mxu0 0.0
      %881 = vmatpush1.msra.mxu0 0.0
      %882 = vmatprep.subr.mxu0 0.0
      %883 = vmatpush1.msra.mxu0 0.0
      %884 = vmatprep.subr.mxu0 0.0
      %885 = vmatpush1.msra.mxu0 0.0
      %886 = vmatprep.subr.mxu0 0.0
      %887 = vmatpush1.msra.mxu0 0.0
      %888 = vmatprep.subr.mxu0 0.0
      %889 = vmatpush1.msra.mxu0 0.0
      %890 = vmatprep.subr.mxu0 0.0
      %891 = vmatpush1.msra.mxu0 0.0
      %892 = vmatprep.subr.mxu0 0.0
      %893 = vmatpush1.msra.mxu0 0.0
      %894 = vmatprep.subr.mxu0 0.0
      %895 = vmatpush1.msra.mxu0 0.0
      %896 = vmatprep.subr.mxu0 0.0
      %897 = vmatpush1.msra.mxu0 0.0
      %898 = vmatprep.subr.mxu0 0.0
      %899 = vmatpush1.msra.mxu0 0.0
      %900 = vmatprep.subr.mxu0 0.0
      %901 = vmatpush1.msra.mxu0 0.0
      %902 = vmatprep.subr.mxu0 0.0
      %903 = vmatpush1.msra.mxu0 0.0
      %904 = vmatprep.subr.mxu0 0.0
      %905 = vmatpush1.msra.mxu0 0.0
      %906 = vmatprep.subr.mxu0 0.0
      %907 = vmatpush1.msra.mxu0 0.0
      %908 = vmatprep.subr.mxu0 0.0
      %909 = vmatpush1.msra.mxu0 0.0
      %910 = vmatprep.subr.mxu0 0.0
      %911 = vmatpush1.msra.mxu0 0.0
      %912 = vmatprep.subr.mxu0 0.0
      %913 = vmatpush1.msra.mxu0 0.0
      %914 = vmatprep.subr.mxu0 0.0
      %915 = vmatpush1.msra.mxu0 0.0
      %916 = vmatprep.subr.mxu0 0.0
      %917 = vmatpush1.msra.mxu0 0.0
      %918 = vmatprep.subr.mxu0 0.0
      %919 = vmatpush1.msra.mxu0 0.0
      %920 = vmatprep.subr.mxu0 0.0
      %921 = vmatpush1.msra.mxu0 0.0
      %922 = vmatprep.subr.mxu0 0.0
      %923 = vmatpush1.msra.mxu0 0.0
      %924 = vmatprep.subr.mxu0 0.0
      %925 = vmatpush1.msra.mxu0 0.0
      %926 = vmatprep.subr.mxu0 0.0
      %927 = vmatpush1.msra.mxu0 0.0
      %928 = vmatprep.mubr.f32.mxu0 0.0
      %929 = vmatmul.mubr.f32.gmra.mrb[0].mxu0 %v720
      %v930 = vpop.f32.mrb[0].mxu0
      %v931 = vadd.f32 0.0, %v930
      %v932 = vpop.f32.mrb[0].mxu0
      %933 = vdwg.mxu0
      %v934 = vadd.f32 %v553, %v789
      %v935 = vadd.f32 %v555, %v791
      %v936 = vadd.f32 %v624, %v860
      %v937 = vadd.f32 %v626, %v862
      %v938 = vadd.f32 %v695, %v931
      %v939 = vld [vmem:[%s1 + $0x18] sm:$0xff]
      %940 = vrot.lane.b32.xlu0 %v234, 96
      %v941 = vpop.permute.xlu0 %940
      %942 = vrot.lane.b32.xlu0 %v235, 96
      %v943 = vpop.permute.xlu0 %942
      %944 = vrot.lane.b32.xlu0 %v236, 96
      %v945 = vpop.permute.xlu0 %944
      %946 = vrot.lane.b32.xlu0 %v237, 96
      %v947 = vpop.permute.xlu0 %946
      %948 = vrot.lane.b32.xlu0 %v238, 96
      %v949 = vpop.permute.xlu0 %948
      %vm950 = vcmask 785408
      %v951 = vsel %vm950, %v941, %v943
      %v952 = vsel %vm950, %v943, %v945
      %v953 = vsel %vm950, %v945, %v947
      %v954 = vsel %vm950, %v947, %v949
      %v961 = vsel %vm267, %v939, 0
      %963 = vmatprep.subr.mxu0 %v952
      %964 = vmatpush1.msra.mxu0 %v951
      %965 = vmatprep.subr.mxu0 0.0
      %966 = vmatpush1.msra.mxu0 0.0
      %967 = vmatprep.subr.mxu0 0.0
      %968 = vmatpush1.msra.mxu0 0.0
      %969 = vmatprep.subr.mxu0 0.0
      %970 = vmatpush1.msra.mxu0 0.0
      %971 = vmatprep.subr.mxu0 0.0
      %972 = vmatpush1.msra.mxu0 0.0
      %973 = vmatprep.subr.mxu0 0.0
      %974 = vmatpush1.msra.mxu0 0.0
      %975 = vmatprep.subr.mxu0 0.0
      %976 = vmatpush1.msra.mxu0 0.0
      %977 = vmatprep.subr.mxu0 0.0
      %978 = vmatpush1.msra.mxu0 0.0
      %979 = vmatprep.subr.mxu0 0.0
      %980 = vmatpush1.msra.mxu0 0.0
      %981 = vmatprep.subr.mxu0 0.0
      %982 = vmatpush1.msra.mxu0 0.0
      %983 = vmatprep.subr.mxu0 0.0
      %984 = vmatpush1.msra.mxu0 0.0
      %985 = vmatprep.subr.mxu0 0.0
      %986 = vmatpush1.msra.mxu0 0.0
      %987 = vmatprep.subr.mxu0 0.0
      %988 = vmatpush1.msra.mxu0 0.0
      %989 = vmatprep.subr.mxu0 0.0
      %990 = vmatpush1.msra.mxu0 0.0
      %991 = vmatprep.subr.mxu0 0.0
      %992 = vmatpush1.msra.mxu0 0.0
      %993 = vmatprep.subr.mxu0 0.0
      %994 = vmatpush1.msra.mxu0 0.0
      %995 = vmatprep.subr.mxu0 0.0
      %996 = vmatpush1.msra.mxu0 0.0
      %997 = vmatprep.subr.mxu0 0.0
      %998 = vmatpush1.msra.mxu0 0.0
      %999 = vmatprep.subr.mxu0 0.0
      %1000 = vmatpush1.msra.mxu0 0.0
      %1001 = vmatprep.subr.mxu0 0.0
      %1002 = vmatpush1.msra.mxu0 0.0
      %1003 = vmatprep.subr.mxu0 0.0
      %1004 = vmatpush1.msra.mxu0 0.0
      %1005 = vmatprep.subr.mxu0 0.0
      %1006 = vmatpush1.msra.mxu0 0.0
      %1007 = vmatprep.subr.mxu0 0.0
      %1008 = vmatpush1.msra.mxu0 0.0
      %1009 = vmatprep.subr.mxu0 0.0
      %1010 = vmatpush1.msra.mxu0 0.0
      %1011 = vmatprep.subr.mxu0 0.0
      %1012 = vmatpush1.msra.mxu0 0.0
      %1013 = vmatprep.subr.mxu0 0.0
      %1014 = vmatpush1.msra.mxu0 0.0
      %1015 = vmatprep.subr.mxu0 0.0
      %1016 = vmatpush1.msra.mxu0 0.0
      %1017 = vmatprep.subr.mxu0 0.0
      %1018 = vmatpush1.msra.mxu0 0.0
      %1019 = vmatprep.subr.mxu0 0.0
      %1020 = vmatpush1.msra.mxu0 0.0
      %1021 = vmatprep.subr.mxu0 0.0
      %1022 = vmatpush1.msra.mxu0 0.0
      %1023 = vmatprep.subr.mxu0 0.0
      %1024 = vmatpush1.msra.mxu0 0.0
      %1025 = vmatprep.subr.mxu0 0.0
      %1026 = vmatpush1.msra.mxu0 0.0
      %1027 = vmatprep.mubr.f32.mxu0 0.0
      %1028 = vmatmul.mubr.f32.gmra.mrb[0].mxu0 %v961
      %v1029 = vpop.f32.mrb[0].mxu0
      %v1030 = vadd.f32 0.0, %v1029
      %v1031 = vpop.f32.mrb[0].mxu0
      %v1032 = vadd.f32 0.0, %v1031
      %1033 = vdwg.mxu0
      %1034 = vmatprep.subr.mxu0 %v954
      %1035 = vmatpush1.msra.mxu0 %v953
      %1036 = vmatprep.subr.mxu0 0.0
      %1037 = vmatpush1.msra.mxu0 0.0
      %1038 = vmatprep.subr.mxu0 0.0
      %1039 = vmatpush1.msra.mxu0 0.0
      %1040 = vmatprep.subr.mxu0 0.0
      %1041 = vmatpush1.msra.mxu0 0.0
      %1042 = vmatprep.subr.mxu0 0.0
      %1043 = vmatpush1.msra.mxu0 0.0
      %1044 = vmatprep.subr.mxu0 0.0
      %1045 = vmatpush1.msra.mxu0 0.0
      %1046 = vmatprep.subr.mxu0 0.0
      %1047 = vmatpush1.msra.mxu0 0.0
      %1048 = vmatprep.subr.mxu0 0.0
      %1049 = vmatpush1.msra.mxu0 0.0
      %1050 = vmatprep.subr.mxu0 0.0
      %1051 = vmatpush1.msra.mxu0 0.0
      %1052 = vmatprep.subr.mxu0 0.0
      %1053 = vmatpush1.msra.mxu0 0.0
      %1054 = vmatprep.subr.mxu0 0.0
      %1055 = vmatpush1.msra.mxu0 0.0
      %1056 = vmatprep.subr.mxu0 0.0
      %1057 = vmatpush1.msra.mxu0 0.0
      %1058 = vmatprep.subr.mxu0 0.0
      %1059 = vmatpush1.msra.mxu0 0.0
      %1060 = vmatprep.subr.mxu0 0.0
      %1061 = vmatpush1.msra.mxu0 0.0
      %1062 = vmatprep.subr.mxu0 0.0
      %1063 = vmatpush1.msra.mxu0 0.0
      %1064 = vmatprep.subr.mxu0 0.0
      %1065 = vmatpush1.msra.mxu0 0.0
      %1066 = vmatprep.subr.mxu0 0.0
      %1067 = vmatpush1.msra.mxu0 0.0
      %1068 = vmatprep.subr.mxu0 0.0
      %1069 = vmatpush1.msra.mxu0 0.0
      %1070 = vmatprep.subr.mxu0 0.0
      %1071 = vmatpush1.msra.mxu0 0.0
      %1072 = vmatprep.subr.mxu0 0.0
      %1073 = vmatpush1.msra.mxu0 0.0
      %1074 = vmatprep.subr.mxu0 0.0
      %1075 = vmatpush1.msra.mxu0 0.0
      %1076 = vmatprep.subr.mxu0 0.0
      %1077 = vmatpush1.msra.mxu0 0.0
      %1078 = vmatprep.subr.mxu0 0.0
      %1079 = vmatpush1.msra.mxu0 0.0
      %1080 = vmatprep.subr.mxu0 0.0
      %1081 = vmatpush1.msra.mxu0 0.0
      %1082 = vmatprep.subr.mxu0 0.0
      %1083 = vmatpush1.msra.mxu0 0.0
      %1084 = vmatprep.subr.mxu0 0.0
      %1085 = vmatpush1.msra.mxu0 0.0
      %1086 = vmatprep.subr.mxu0 0.0
      %1087 = vmatpush1.msra.mxu0 0.0
      %1088 = vmatprep.subr.mxu0 0.0
      %1089 = vmatpush1.msra.mxu0 0.0
      %1090 = vmatprep.subr.mxu0 0.0
      %1091 = vmatpush1.msra.mxu0 0.0
      %1092 = vmatprep.subr.mxu0 0.0
      %1093 = vmatpush1.msra.mxu0 0.0
      %1094 = vmatprep.subr.mxu0 0.0
      %1095 = vmatpush1.msra.mxu0 0.0
      %1096 = vmatprep.subr.mxu0 0.0
      %1097 = vmatpush1.msra.mxu0 0.0
      %1098 = vmatprep.mubr.f32.mxu0 0.0
      %1099 = vmatmul.mubr.f32.gmra.mrb[0].mxu0 %v961
      %v1100 = vpop.f32.mrb[0].mxu0
      %v1101 = vadd.f32 0.0, %v1100
      %v1102 = vpop.f32.mrb[0].mxu0
      %v1103 = vadd.f32 0.0, %v1102
      %1104 = vdwg.mxu0
      %1105 = vmatprep.subr.mxu0 0.0
      %1106 = vmatpush1.msra.mxu0 %v949
      %1107 = vmatprep.subr.mxu0 0.0
      %1108 = vmatpush1.msra.mxu0 0.0
      %1109 = vmatprep.subr.mxu0 0.0
      %1110 = vmatpush1.msra.mxu0 0.0
      %1111 = vmatprep.subr.mxu0 0.0
      %1112 = vmatpush1.msra.mxu0 0.0
      %1113 = vmatprep.subr.mxu0 0.0
      %1114 = vmatpush1.msra.mxu0 0.0
      %1115 = vmatprep.subr.mxu0 0.0
      %1116 = vmatpush1.msra.mxu0 0.0
      %1117 = vmatprep.subr.mxu0 0.0
      %1118 = vmatpush1.msra.mxu0 0.0
      %1119 = vmatprep.subr.mxu0 0.0
      %1120 = vmatpush1.msra.mxu0 0.0
      %1121 = vmatprep.subr.mxu0 0.0
      %1122 = vmatpush1.msra.mxu0 0.0
      %1123 = vmatprep.subr.mxu0 0.0
      %1124 = vmatpush1.msra.mxu0 0.0
      %1125 = vmatprep.subr.mxu0 0.0
      %1126 = vmatpush1.msra.mxu0 0.0
      %1127 = vmatprep.subr.mxu0 0.0
      %1128 = vmatpush1.msra.mxu0 0.0
      %1129 = vmatprep.subr.mxu0 0.0
      %1130 = vmatpush1.msra.mxu0 0.0
      %1131 = vmatprep.subr.mxu0 0.0
      %1132 = vmatpush1.msra.mxu0 0.0
      %1133 = vmatprep.subr.mxu0 0.0
      %1134 = vmatpush1.msra.mxu0 0.0
      %1135 = vmatprep.subr.mxu0 0.0
      %1136 = vmatpush1.msra.mxu0 0.0
      %1137 = vmatprep.subr.mxu0 0.0
      %1138 = vmatpush1.msra.mxu0 0.0
      %1139 = vmatprep.subr.mxu0 0.0
      %1140 = vmatpush1.msra.mxu0 0.0
      %1141 = vmatprep.subr.mxu0 0.0
      %1142 = vmatpush1.msra.mxu0 0.0
      %1143 = vmatprep.subr.mxu0 0.0
      %1144 = vmatpush1.msra.mxu0 0.0
      %1145 = vmatprep.subr.mxu0 0.0
      %1146 = vmatpush1.msra.mxu0 0.0
      %1147 = vmatprep.subr.mxu0 0.0
      %1148 = vmatpush1.msra.mxu0 0.0
      %1149 = vmatprep.subr.mxu0 0.0
      %1150 = vmatpush1.msra.mxu0 0.0
      %1151 = vmatprep.subr.mxu0 0.0
      %1152 = vmatpush1.msra.mxu0 0.0
      %1153 = vmatprep.subr.mxu0 0.0
      %1154 = vmatpush1.msra.mxu0 0.0
      %1155 = vmatprep.subr.mxu0 0.0
      %1156 = vmatpush1.msra.mxu0 0.0
      %1157 = vmatprep.subr.mxu0 0.0
      %1158 = vmatpush1.msra.mxu0 0.0
      %1159 = vmatprep.subr.mxu0 0.0
      %1160 = vmatpush1.msra.mxu0 0.0
      %1161 = vmatprep.subr.mxu0 0.0
      %1162 = vmatpush1.msra.mxu0 0.0
      %1163 = vmatprep.subr.mxu0 0.0
      %1164 = vmatpush1.msra.mxu0 0.0
      %1165 = vmatprep.subr.mxu0 0.0
      %1166 = vmatpush1.msra.mxu0 0.0
      %1167 = vmatprep.subr.mxu0 0.0
      %1168 = vmatpush1.msra.mxu0 0.0
      %1169 = vmatprep.mubr.f32.mxu0 0.0
      %1170 = vmatmul.mubr.f32.gmra.mrb[0].mxu0 %v961
      %v1171 = vpop.f32.mrb[0].mxu0
      %v1172 = vadd.f32 0.0, %v1171
      %v1173 = vpop.f32.mrb[0].mxu0
      %1174 = vdwg.mxu0
      %v1175 = vadd.f32 %v934, %v1030
      %v1176 = vadd.f32 %v935, %v1032
      %v1177 = vadd.f32 %v936, %v1101
      %v1178 = vadd.f32 %v937, %v1103
      %v1179 = vadd.f32 %v938, %v1172
      %v1180 = vld [vmem:[%s1 + $0x20] sm:$0xff]
      %1181 = vrot.lane.b32.xlu0 %v234, 95
      %v1182 = vpop.permute.xlu0 %1181
      %1183 = vrot.lane.b32.xlu0 %v235, 95
      %v1184 = vpop.permute.xlu0 %1183
      %1185 = vrot.lane.b32.xlu0 %v236, 95
      %v1186 = vpop.permute.xlu0 %1185
      %1187 = vrot.lane.b32.xlu0 %v237, 95
      %v1188 = vpop.permute.xlu0 %1187
      %1189 = vrot.lane.b32.xlu0 %v238, 95
      %v1190 = vpop.permute.xlu0 %1189
      %vm1191 = vcmask 777216
      %v1192 = vsel %vm1191, %v1182, %v1184
      %v1193 = vsel %vm1191, %v1184, %v1186
      %v1194 = vsel %vm1191, %v1186, %v1188
      %v1195 = vsel %vm1191, %v1188, %v1190
      %v1202 = vsel %vm267, %v1180, 0
      %1204 = vmatprep.subr.mxu0 %v1193
      %1205 = vmatpush1.msra.mxu0 %v1192
      %1206 = vmatprep.subr.mxu0 0.0
      %1207 = vmatpush1.msra.mxu0 0.0
      %1208 = vmatprep.subr.mxu0 0.0
      %1209 = vmatpush1.msra.mxu0 0.0
      %1210 = vmatprep.subr.mxu0 0.0
      %1211 = vmatpush1.msra.mxu0 0.0
      %1212 = vmatprep.subr.mxu0 0.0
      %1213 = vmatpush1.msra.mxu0 0.0
      %1214 = vmatprep.subr.mxu0 0.0
      %1215 = vmatpush1.msra.mxu0 0.0
      %1216 = vmatprep.subr.mxu0 0.0
      %1217 = vmatpush1.msra.mxu0 0.0
      %1218 = vmatprep.subr.mxu0 0.0
      %1219 = vmatpush1.msra.mxu0 0.0
      %1220 = vmatprep.subr.mxu0 0.0
      %1221 = vmatpush1.msra.mxu0 0.0
      %1222 = vmatprep.subr.mxu0 0.0
      %1223 = vmatpush1.msra.mxu0 0.0
      %1224 = vmatprep.subr.mxu0 0.0
      %1225 = vmatpush1.msra.mxu0 0.0
      %1226 = vmatprep.subr.mxu0 0.0
      %1227 = vmatpush1.msra.mxu0 0.0
      %1228 = vmatprep.subr.mxu0 0.0
      %1229 = vmatpush1.msra.mxu0 0.0
      %1230 = vmatprep.subr.mxu0 0.0
      %1231 = vmatpush1.msra.mxu0 0.0
      %1232 = vmatprep.subr.mxu0 0.0
      %1233 = vmatpush1.msra.mxu0 0.0
      %1234 = vmatprep.subr.mxu0 0.0
      %1235 = vmatpush1.msra.mxu0 0.0
      %1236 = vmatprep.subr.mxu0 0.0
      %1237 = vmatpush1.msra.mxu0 0.0
      %1238 = vmatprep.subr.mxu0 0.0
      %1239 = vmatpush1.msra.mxu0 0.0
      %1240 = vmatprep.subr.mxu0 0.0
      %1241 = vmatpush1.msra.mxu0 0.0
      %1242 = vmatprep.subr.mxu0 0.0
      %1243 = vmatpush1.msra.mxu0 0.0
      %1244 = vmatprep.subr.mxu0 0.0
      %1245 = vmatpush1.msra.mxu0 0.0
      %1246 = vmatprep.subr.mxu0 0.0
      %1247 = vmatpush1.msra.mxu0 0.0
      %1248 = vmatprep.subr.mxu0 0.0
      %1249 = vmatpush1.msra.mxu0 0.0
      %1250 = vmatprep.subr.mxu0 0.0
      %1251 = vmatpush1.msra.mxu0 0.0
      %1252 = vmatprep.subr.mxu0 0.0
      %1253 = vmatpush1.msra.mxu0 0.0
      %1254 = vmatprep.subr.mxu0 0.0
      %1255 = vmatpush1.msra.mxu0 0.0
      %1256 = vmatprep.subr.mxu0 0.0
      %1257 = vmatpush1.msra.mxu0 0.0
      %1258 = vmatprep.subr.mxu0 0.0
      %1259 = vmatpush1.msra.mxu0 0.0
      %1260 = vmatprep.subr.mxu0 0.0
      %1261 = vmatpush1.msra.mxu0 0.0
      %1262 = vmatprep.subr.mxu0 0.0
      %1263 = vmatpush1.msra.mxu0 0.0
      %1264 = vmatprep.subr.mxu0 0.0
      %1265 = vmatpush1.msra.mxu0 0.0
      %1266 = vmatprep.subr.mxu0 0.0
      %1267 = vmatpush1.msra.mxu0 0.0
      %1268 = vmatprep.mubr.f32.mxu0 0.0
      %1269 = vmatmul.mubr.f32.gmra.mrb[0].mxu0 %v1202
      %v1270 = vpop.f32.mrb[0].mxu0
      %v1271 = vadd.f32 0.0, %v1270
      %v1272 = vpop.f32.mrb[0].mxu0
      %v1273 = vadd.f32 0.0, %v1272
      %1274 = vdwg.mxu0
      %1275 = vmatprep.subr.mxu0 %v1195
      %1276 = vmatpush1.msra.mxu0 %v1194
      %1277 = vmatprep.subr.mxu0 0.0
      %1278 = vmatpush1.msra.mxu0 0.0
      %1279 = vmatprep.subr.mxu0 0.0
      %1280 = vmatpush1.msra.mxu0 0.0
      %1281 = vmatprep.subr.mxu0 0.0
      %1282 = vmatpush1.msra.mxu0 0.0
      %1283 = vmatprep.subr.mxu0 0.0
      %1284 = vmatpush1.msra.mxu0 0.0
      %1285 = vmatprep.subr.mxu0 0.0
      %1286 = vmatpush1.msra.mxu0 0.0
      %1287 = vmatprep.subr.mxu0 0.0
      %1288 = vmatpush1.msra.mxu0 0.0
      %1289 = vmatprep.subr.mxu0 0.0
      %1290 = vmatpush1.msra.mxu0 0.0
      %1291 = vmatprep.subr.mxu0 0.0
      %1292 = vmatpush1.msra.mxu0 0.0
      %1293 = vmatprep.subr.mxu0 0.0
      %1294 = vmatpush1.msra.mxu0 0.0
      %1295 = vmatprep.subr.mxu0 0.0
      %1296 = vmatpush1.msra.mxu0 0.0
      %1297 = vmatprep.subr.mxu0 0.0
      %1298 = vmatpush1.msra.mxu0 0.0
      %1299 = vmatprep.subr.mxu0 0.0
      %1300 = vmatpush1.msra.mxu0 0.0
      %1301 = vmatprep.subr.mxu0 0.0
      %1302 = vmatpush1.msra.mxu0 0.0
      %1303 = vmatprep.subr.mxu0 0.0
      %1304 = vmatpush1.msra.mxu0 0.0
      %1305 = vmatprep.subr.mxu0 0.0
      %1306 = vmatpush1.msra.mxu0 0.0
      %1307 = vmatprep.subr.mxu0 0.0
      %1308 = vmatpush1.msra.mxu0 0.0
      %1309 = vmatprep.subr.mxu0 0.0
      %1310 = vmatpush1.msra.mxu0 0.0
      %1311 = vmatprep.subr.mxu0 0.0
      %1312 = vmatpush1.msra.mxu0 0.0
      %1313 = vmatprep.subr.mxu0 0.0
      %1314 = vmatpush1.msra.mxu0 0.0
      %1315 = vmatprep.subr.mxu0 0.0
      %1316 = vmatpush1.msra.mxu0 0.0
      %1317 = vmatprep.subr.mxu0 0.0
      %1318 = vmatpush1.msra.mxu0 0.0
      %1319 = vmatprep.subr.mxu0 0.0
      %1320 = vmatpush1.msra.mxu0 0.0
      %1321 = vmatprep.subr.mxu0 0.0
      %1322 = vmatpush1.msra.mxu0 0.0
      %1323 = vmatprep.subr.mxu0 0.0
      %1324 = vmatpush1.msra.mxu0 0.0
      %1325 = vmatprep.subr.mxu0 0.0
      %1326 = vmatpush1.msra.mxu0 0.0
      %1327 = vmatprep.subr.mxu0 0.0
      %1328 = vmatpush1.msra.mxu0 0.0
      %1329 = vmatprep.subr.mxu0 0.0
      %1330 = vmatpush1.msra.mxu0 0.0
      %1331 = vmatprep.subr.mxu0 0.0
      %1332 = vmatpush1.msra.mxu0 0.0
      %1333 = vmatprep.subr.mxu0 0.0
      %1334 = vmatpush1.msra.mxu0 0.0
      %1335 = vmatprep.subr.mxu0 0.0
      %1336 = vmatpush1.msra.mxu0 0.0
      %1337 = vmatprep.subr.mxu0 0.0
      %1338 = vmatpush1.msra.mxu0 0.0
      %1339 = vmatprep.mubr.f32.mxu0 0.0
      %1340 = vmatmul.mubr.f32.gmra.mrb[0].mxu0 %v1202
      %v1341 = vpop.f32.mrb[0].mxu0
      %v1342 = vadd.f32 0.0, %v1341
      %v1343 = vpop.f32.mrb[0].mxu0
      %v1344 = vadd.f32 0.0, %v1343
      %1345 = vdwg.mxu0
      %1346 = vmatprep.subr.mxu0 0.0
      %1347 = vmatpush1.msra.mxu0 %v1190
      %1348 = vmatprep.subr.mxu0 0.0
      %1349 = vmatpush1.msra.mxu0 0.0
      %1350 = vmatprep.subr.mxu0 0.0
      %1351 = vmatpush1.msra.mxu0 0.0
      %1352 = vmatprep.subr.mxu0 0.0
      %1353 = vmatpush1.msra.mxu0 0.0
      %1354 = vmatprep.subr.mxu0 0.0
      %1355 = vmatpush1.msra.mxu0 0.0
      %1356 = vmatprep.subr.mxu0 0.0
      %1357 = vmatpush1.msra.mxu0 0.0
      %1358 = vmatprep.subr.mxu0 0.0
      %1359 = vmatpush1.msra.mxu0 0.0
      %1360 = vmatprep.subr.mxu0 0.0
      %1361 = vmatpush1.msra.mxu0 0.0
      %1362 = vmatprep.subr.mxu0 0.0
      %1363 = vmatpush1.msra.mxu0 0.0
      %1364 = vmatprep.subr.mxu0 0.0
      %1365 = vmatpush1.msra.mxu0 0.0
      %1366 = vmatprep.subr.mxu0 0.0
      %1367 = vmatpush1.msra.mxu0 0.0
      %1368 = vmatprep.subr.mxu0 0.0
      %1369 = vmatpush1.msra.mxu0 0.0
      %1370 = vmatprep.subr.mxu0 0.0
      %1371 = vmatpush1.msra.mxu0 0.0
      %1372 = vmatprep.subr.mxu0 0.0
      %1373 = vmatpush1.msra.mxu0 0.0
      %1374 = vmatprep.subr.mxu0 0.0
      %1375 = vmatpush1.msra.mxu0 0.0
      %1376 = vmatprep.subr.mxu0 0.0
      %1377 = vmatpush1.msra.mxu0 0.0
      %1378 = vmatprep.subr.mxu0 0.0
      %1379 = vmatpush1.msra.mxu0 0.0
      %1380 = vmatprep.subr.mxu0 0.0
      %1381 = vmatpush1.msra.mxu0 0.0
      %1382 = vmatprep.subr.mxu0 0.0
      %1383 = vmatpush1.msra.mxu0 0.0
      %1384 = vmatprep.subr.mxu0 0.0
      %1385 = vmatpush1.msra.mxu0 0.0
      %1386 = vmatprep.subr.mxu0 0.0
      %1387 = vmatpush1.msra.mxu0 0.0
      %1388 = vmatprep.subr.mxu0 0.0
      %1389 = vmatpush1.msra.mxu0 0.0
      %1390 = vmatprep.subr.mxu0 0.0
      %1391 = vmatpush1.msra.mxu0 0.0
      %1392 = vmatprep.subr.mxu0 0.0
      %1393 = vmatpush1.msra.mxu0 0.0
      %1394 = vmatprep.subr.mxu0 0.0
      %1395 = vmatpush1.msra.mxu0 0.0
      %1396 = vmatprep.subr.mxu0 0.0
      %1397 = vmatpush1.msra.mxu0 0.0
      %1398 = vmatprep.subr.mxu0 0.0
      %1399 = vmatpush1.msra.mxu0 0.0
      %1400 = vmatprep.subr.mxu0 0.0
      %1401 = vmatpush1.msra.mxu0 0.0
      %1402 = vmatprep.subr.mxu0 0.0
      %1403 = vmatpush1.msra.mxu0 0.0
      %1404 = vmatprep.subr.mxu0 0.0
      %1405 = vmatpush1.msra.mxu0 0.0
      %1406 = vmatprep.subr.mxu0 0.0
      %1407 = vmatpush1.msra.mxu0 0.0
      %1408 = vmatprep.subr.mxu0 0.0
      %1409 = vmatpush1.msra.mxu0 0.0
      %1410 = vmatprep.mubr.f32.mxu0 0.0
      %1411 = vmatmul.mubr.f32.gmra.mrb[0].mxu0 %v1202
      %v1412 = vpop.f32.mrb[0].mxu0
      %v1413 = vadd.f32 0.0, %v1412
      %v1414 = vpop.f32.mrb[0].mxu0
      %1415 = vdwg.mxu0
      %v1416 = vadd.f32 %v1175, %v1271
      %v1417 = vadd.f32 %v1176, %v1273
      %v1418 = vadd.f32 %v1177, %v1342
      %v1419 = vadd.f32 %v1178, %v1344
      %v1420 = vadd.f32 %v1179, %v1413
      %v1421 = vld [vmem:[%s1 + $0x28] sm:$0xff]
      %1422 = vrot.lane.b32.xlu0 %v234, 94
      %v1423 = vpop.permute.xlu0 %1422
      %1424 = vrot.lane.b32.xlu0 %v235, 94
      %v1425 = vpop.permute.xlu0 %1424
      %1426 = vrot.lane.b32.xlu0 %v236, 94
      %v1427 = vpop.permute.xlu0 %1426
      %1428 = vrot.lane.b32.xlu0 %v237, 94
      %v1429 = vpop.permute.xlu0 %1428
      %1430 = vrot.lane.b32.xlu0 %v238, 94
      %v1431 = vpop.permute.xlu0 %1430
      %vm1432 = vcmask 769024
      %v1433 = vsel %vm1432, %v1423, %v1425
      %v1434 = vsel %vm1432, %v1425, %v1427
      %v1435 = vsel %vm1432, %v1427, %v1429
      %v1436 = vsel %vm1432, %v1429, %v1431
      %v1443 = vsel %vm267, %v1421, 0
      %1445 = vmatprep.subr.mxu0 %v1434
      %1446 = vmatpush1.msra.mxu0 %v1433
      %1447 = vmatprep.subr.mxu0 0.0
      %1448 = vmatpush1.msra.mxu0 0.0
      %1449 = vmatprep.subr.mxu0 0.0
      %1450 = vmatpush1.msra.mxu0 0.0
      %1451 = vmatprep.subr.mxu0 0.0
      %1452 = vmatpush1.msra.mxu0 0.0
      %1453 = vmatprep.subr.mxu0 0.0
      %1454 = vmatpush1.msra.mxu0 0.0
      %1455 = vmatprep.subr.mxu0 0.0
      %1456 = vmatpush1.msra.mxu0 0.0
      %1457 = vmatprep.subr.mxu0 0.0
      %1458 = vmatpush1.msra.mxu0 0.0
      %1459 = vmatprep.subr.mxu0 0.0
      %1460 = vmatpush1.msra.mxu0 0.0
      %1461 = vmatprep.subr.mxu0 0.0
      %1462 = vmatpush1.msra.mxu0 0.0
      %1463 = vmatprep.subr.mxu0 0.0
      %1464 = vmatpush1.msra.mxu0 0.0
      %1465 = vmatprep.subr.mxu0 0.0
      %1466 = vmatpush1.msra.mxu0 0.0
      %1467 = vmatprep.subr.mxu0 0.0
      %1468 = vmatpush1.msra.mxu0 0.0
      %1469 = vmatprep.subr.mxu0 0.0
      %1470 = vmatpush1.msra.mxu0 0.0
      %1471 = vmatprep.subr.mxu0 0.0
      %1472 = vmatpush1.msra.mxu0 0.0
      %1473 = vmatprep.subr.mxu0 0.0
      %1474 = vmatpush1.msra.mxu0 0.0
      %1475 = vmatprep.subr.mxu0 0.0
      %1476 = vmatpush1.msra.mxu0 0.0
      %1477 = vmatprep.subr.mxu0 0.0
      %1478 = vmatpush1.msra.mxu0 0.0
      %1479 = vmatprep.subr.mxu0 0.0
      %1480 = vmatpush1.msra.mxu0 0.0
      %1481 = vmatprep.subr.mxu0 0.0
      %1482 = vmatpush1.msra.mxu0 0.0
      %1483 = vmatprep.subr.mxu0 0.0
      %1484 = vmatpush1.msra.mxu0 0.0
      %1485 = vmatprep.subr.mxu0 0.0
      %1486 = vmatpush1.msra.mxu0 0.0
      %1487 = vmatprep.subr.mxu0 0.0
      %1488 = vmatpush1.msra.mxu0 0.0
      %1489 = vmatprep.subr.mxu0 0.0
      %1490 = vmatpush1.msra.mxu0 0.0
      %1491 = vmatprep.subr.mxu0 0.0
      %1492 = vmatpush1.msra.mxu0 0.0
      %1493 = vmatprep.subr.mxu0 0.0
      %1494 = vmatpush1.msra.mxu0 0.0
      %1495 = vmatprep.subr.mxu0 0.0
      %1496 = vmatpush1.msra.mxu0 0.0
      %1497 = vmatprep.subr.mxu0 0.0
      %1498 = vmatpush1.msra.mxu0 0.0
      %1499 = vmatprep.subr.mxu0 0.0
      %1500 = vmatpush1.msra.mxu0 0.0
      %1501 = vmatprep.subr.mxu0 0.0
      %1502 = vmatpush1.msra.mxu0 0.0
      %1503 = vmatprep.subr.mxu0 0.0
      %1504 = vmatpush1.msra.mxu0 0.0
      %1505 = vmatprep.subr.mxu0 0.0
      %1506 = vmatpush1.msra.mxu0 0.0
      %1507 = vmatprep.subr.mxu0 0.0
      %1508 = vmatpush1.msra.mxu0 0.0
      %1509 = vmatprep.mubr.f32.mxu0 0.0
      %1510 = vmatmul.mubr.f32.gmra.mrb[0].mxu0 %v1443
      %v1511 = vpop.f32.mrb[0].mxu0
      %v1512 = vadd.f32 0.0, %v1511
      %v1513 = vpop.f32.mrb[0].mxu0
      %v1514 = vadd.f32 0.0, %v1513
      %1515 = vdwg.mxu0
      %1516 = vmatprep.subr.mxu0 %v1436
      %1517 = vmatpush1.msra.mxu0 %v1435
      %1518 = vmatprep.subr.mxu0 0.0
      %1519 = vmatpush1.msra.mxu0 0.0
      %1520 = vmatprep.subr.mxu0 0.0
      %1521 = vmatpush1.msra.mxu0 0.0
      %1522 = vmatprep.subr.mxu0 0.0
      %1523 = vmatpush1.msra.mxu0 0.0
      %1524 = vmatprep.subr.mxu0 0.0
      %1525 = vmatpush1.msra.mxu0 0.0
      %1526 = vmatprep.subr.mxu0 0.0
      %1527 = vmatpush1.msra.mxu0 0.0
      %1528 = vmatprep.subr.mxu0 0.0
      %1529 = vmatpush1.msra.mxu0 0.0
      %1530 = vmatprep.subr.mxu0 0.0
      %1531 = vmatpush1.msra.mxu0 0.0
      %1532 = vmatprep.subr.mxu0 0.0
      %1533 = vmatpush1.msra.mxu0 0.0
      %1534 = vmatprep.subr.mxu0 0.0
      %1535 = vmatpush1.msra.mxu0 0.0
      %1536 = vmatprep.subr.mxu0 0.0
      %1537 = vmatpush1.msra.mxu0 0.0
      %1538 = vmatprep.subr.mxu0 0.0
      %1539 = vmatpush1.msra.mxu0 0.0
      %1540 = vmatprep.subr.mxu0 0.0
      %1541 = vmatpush1.msra.mxu0 0.0
      %1542 = vmatprep.subr.mxu0 0.0
      %1543 = vmatpush1.msra.mxu0 0.0
      %1544 = vmatprep.subr.mxu0 0.0
      %1545 = vmatpush1.msra.mxu0 0.0
      %1546 = vmatprep.subr.mxu0 0.0
      %1547 = vmatpush1.msra.mxu0 0.0
      %1548 = vmatprep.subr.mxu0 0.0
      %1549 = vmatpush1.msra.mxu0 0.0
      %1550 = vmatprep.subr.mxu0 0.0
      %1551 = vmatpush1.msra.mxu0 0.0
      %1552 = vmatprep.subr.mxu0 0.0
      %1553 = vmatpush1.msra.mxu0 0.0
      %1554 = vmatprep.subr.mxu0 0.0
      %1555 = vmatpush1.msra.mxu0 0.0
      %1556 = vmatprep.subr.mxu0 0.0
      %1557 = vmatpush1.msra.mxu0 0.0
      %1558 = vmatprep.subr.mxu0 0.0
      %1559 = vmatpush1.msra.mxu0 0.0
      %1560 = vmatprep.subr.mxu0 0.0
      %1561 = vmatpush1.msra.mxu0 0.0
      %1562 = vmatprep.subr.mxu0 0.0
      %1563 = vmatpush1.msra.mxu0 0.0
      %1564 = vmatprep.subr.mxu0 0.0
      %1565 = vmatpush1.msra.mxu0 0.0
      %1566 = vmatprep.subr.mxu0 0.0
      %1567 = vmatpush1.msra.mxu0 0.0
      %1568 = vmatprep.subr.mxu0 0.0
      %1569 = vmatpush1.msra.mxu0 0.0
      %1570 = vmatprep.subr.mxu0 0.0
      %1571 = vmatpush1.msra.mxu0 0.0
      %1572 = vmatprep.subr.mxu0 0.0
      %1573 = vmatpush1.msra.mxu0 0.0
      %1574 = vmatprep.subr.mxu0 0.0
      %1575 = vmatpush1.msra.mxu0 0.0
      %1576 = vmatprep.subr.mxu0 0.0
      %1577 = vmatpush1.msra.mxu0 0.0
      %1578 = vmatprep.subr.mxu0 0.0
      %1579 = vmatpush1.msra.mxu0 0.0
      %1580 = vmatprep.mubr.f32.mxu0 0.0
      %1581 = vmatmul.mubr.f32.gmra.mrb[0].mxu0 %v1443
      %v1582 = vpop.f32.mrb[0].mxu0
      %v1583 = vadd.f32 0.0, %v1582
      %v1584 = vpop.f32.mrb[0].mxu0
      %v1585 = vadd.f32 0.0, %v1584
      %1586 = vdwg.mxu0
      %1587 = vmatprep.subr.mxu0 0.0
      %1588 = vmatpush1.msra.mxu0 %v1431
      %1589 = vmatprep.subr.mxu0 0.0
      %1590 = vmatpush1.msra.mxu0 0.0
      %1591 = vmatprep.subr.mxu0 0.0
      %1592 = vmatpush1.msra.mxu0 0.0
      %1593 = vmatprep.subr.mxu0 0.0
      %1594 = vmatpush1.msra.mxu0 0.0
      %1595 = vmatprep.subr.mxu0 0.0
      %1596 = vmatpush1.msra.mxu0 0.0
      %1597 = vmatprep.subr.mxu0 0.0
      %1598 = vmatpush1.msra.mxu0 0.0
      %1599 = vmatprep.subr.mxu0 0.0
      %1600 = vmatpush1.msra.mxu0 0.0
      %1601 = vmatprep.subr.mxu0 0.0
      %1602 = vmatpush1.msra.mxu0 0.0
      %1603 = vmatprep.subr.mxu0 0.0
      %1604 = vmatpush1.msra.mxu0 0.0
      %1605 = vmatprep.subr.mxu0 0.0
      %1606 = vmatpush1.msra.mxu0 0.0
      %1607 = vmatprep.subr.mxu0 0.0
      %1608 = vmatpush1.msra.mxu0 0.0
      %1609 = vmatprep.subr.mxu0 0.0
      %1610 = vmatpush1.msra.mxu0 0.0
      %1611 = vmatprep.subr.mxu0 0.0
      %1612 = vmatpush1.msra.mxu0 0.0
      %1613 = vmatprep.subr.mxu0 0.0
      %1614 = vmatpush1.msra.mxu0 0.0
      %1615 = vmatprep.subr.mxu0 0.0
      %1616 = vmatpush1.msra.mxu0 0.0
      %1617 = vmatprep.subr.mxu0 0.0
      %1618 = vmatpush1.msra.mxu0 0.0
      %1619 = vmatprep.subr.mxu0 0.0
      %1620 = vmatpush1.msra.mxu0 0.0
      %1621 = vmatprep.subr.mxu0 0.0
      %1622 = vmatpush1.msra.mxu0 0.0
      %1623 = vmatprep.subr.mxu0 0.0
      %1624 = vmatpush1.msra.mxu0 0.0
      %1625 = vmatprep.subr.mxu0 0.0
      %1626 = vmatpush1.msra.mxu0 0.0
      %1627 = vmatprep.subr.mxu0 0.0
      %1628 = vmatpush1.msra.mxu0 0.0
      %1629 = vmatprep.subr.mxu0 0.0
      %1630 = vmatpush1.msra.mxu0 0.0
      %1631 = vmatprep.subr.mxu0 0.0
      %1632 = vmatpush1.msra.mxu0 0.0
      %1633 = vmatprep.subr.mxu0 0.0
      %1634 = vmatpush1.msra.mxu0 0.0
      %1635 = vmatprep.subr.mxu0 0.0
      %1636 = vmatpush1.msra.mxu0 0.0
      %1637 = vmatprep.subr.mxu0 0.0
      %1638 = vmatpush1.msra.mxu0 0.0
      %1639 = vmatprep.subr.mxu0 0.0
      %1640 = vmatpush1.msra.mxu0 0.0
      %1641 = vmatprep.subr.mxu0 0.0
      %1642 = vmatpush1.msra.mxu0 0.0
      %1643 = vmatprep.subr.mxu0 0.0
      %1644 = vmatpush1.msra.mxu0 0.0
      %1645 = vmatprep.subr.mxu0 0.0
      %1646 = vmatpush1.msra.mxu0 0.0
      %1647 = vmatprep.subr.mxu0 0.0
      %1648 = vmatpush1.msra.mxu0 0.0
      %1649 = vmatprep.subr.mxu0 0.0
      %1650 = vmatpush1.msra.mxu0 0.0
      %1651 = vmatprep.mubr.f32.mxu0 0.0
      %1652 = vmatmul.mubr.f32.gmra.mrb[0].mxu0 %v1443
      %v1653 = vpop.f32.mrb[0].mxu0
      %v1654 = vadd.f32 0.0, %v1653
      %v1655 = vpop.f32.mrb[0].mxu0
      %1656 = vdwg.mxu0
      %v1657 = vadd.f32 %v1416, %v1512
      %v1658 = vadd.f32 %v1417, %v1514
      %v1659 = vadd.f32 %v1418, %v1583
      %v1660 = vadd.f32 %v1419, %v1585
      %v1661 = vadd.f32 %v1420, %v1654
      %v1662 = vld [vmem:[%s1 + $0x30] sm:$0xff]
      %1664 = vrot.lane.b32.xlu0 %v234, 64
      %v1665 = vpop.permute.xlu0 %1664
      %1666 = vrot.lane.b32.xlu0 %v235, 64
      %v1667 = vpop.permute.xlu0 %1666
      %1668 = vrot.lane.b32.xlu0 %v236, 64
      %v1669 = vpop.permute.xlu0 %1668
      %1670 = vrot.lane.b32.xlu0 %v237, 64
      %v1671 = vpop.permute.xlu0 %1670
      %1672 = vrot.lane.b32.xlu0 %v238, 64
      %v1673 = vpop.permute.xlu0 %1672
      %1674 = vrot.lane.b32.xlu0 %v239, 64
      %v1675 = vpop.permute.xlu0 %1674
      %vm1676 = vcmask 523264
      %v1677 = vsel %vm1676, %v1665, %v1667
      %v1678 = vsel %vm1676, %v1667, %v1669
      %v1679 = vsel %vm1676, %v1669, %v1671
      %v1680 = vsel %vm1676, %v1671, %v1673
      %v1681 = vsel %vm1676, %v1673, %v1675
      %v1688 = vsel %vm267, %v1662, 0
      %1690 = vmatprep.subr.mxu0 %v1678
      %1691 = vmatpush1.msra.mxu0 %v1677
      %1692 = vmatprep.subr.mxu0 0.0
      %1693 = vmatpush1.msra.mxu0 0.0
      %1694 = vmatprep.subr.mxu0 0.0
      %1695 = vmatpush1.msra.mxu0 0.0
      %1696 = vmatprep.subr.mxu0 0.0
      %1697 = vmatpush1.msra.mxu0 0.0
      %1698 = vmatprep.subr.mxu0 0.0
      %1699 = vmatpush1.msra.mxu0 0.0
      %1700 = vmatprep.subr.mxu0 0.0
      %1701 = vmatpush1.msra.mxu0 0.0
      %1702 = vmatprep.subr.mxu0 0.0
      %1703 = vmatpush1.msra.mxu0 0.0
      %1704 = vmatprep.subr.mxu0 0.0
      %1705 = vmatpush1.msra.mxu0 0.0
      %1706 = vmatprep.subr.mxu0 0.0
      %1707 = vmatpush1.msra.mxu0 0.0
      %1708 = vmatprep.subr.mxu0 0.0
      %1709 = vmatpush1.msra.mxu0 0.0
      %1710 = vmatprep.subr.mxu0 0.0
      %1711 = vmatpush1.msra.mxu0 0.0
      %1712 = vmatprep.subr.mxu0 0.0
      %1713 = vmatpush1.msra.mxu0 0.0
      %1714 = vmatprep.subr.mxu0 0.0
      %1715 = vmatpush1.msra.mxu0 0.0
      %1716 = vmatprep.subr.mxu0 0.0
      %1717 = vmatpush1.msra.mxu0 0.0
      %1718 = vmatprep.subr.mxu0 0.0
      %1719 = vmatpush1.msra.mxu0 0.0
      %1720 = vmatprep.subr.mxu0 0.0
      %1721 = vmatpush1.msra.mxu0 0.0
      %1722 = vmatprep.subr.mxu0 0.0
      %1723 = vmatpush1.msra.mxu0 0.0
      %1724 = vmatprep.subr.mxu0 0.0
      %1725 = vmatpush1.msra.mxu0 0.0
      %1726 = vmatprep.subr.mxu0 0.0
      %1727 = vmatpush1.msra.mxu0 0.0
      %1728 = vmatprep.subr.mxu0 0.0
      %1729 = vmatpush1.msra.mxu0 0.0
      %1730 = vmatprep.subr.mxu0 0.0
      %1731 = vmatpush1.msra.mxu0 0.0
      %1732 = vmatprep.subr.mxu0 0.0
      %1733 = vmatpush1.msra.mxu0 0.0
      %1734 = vmatprep.subr.mxu0 0.0
      %1735 = vmatpush1.msra.mxu0 0.0
      %1736 = vmatprep.subr.mxu0 0.0
      %1737 = vmatpush1.msra.mxu0 0.0
      %1738 = vmatprep.subr.mxu0 0.0
      %1739 = vmatpush1.msra.mxu0 0.0
      %1740 = vmatprep.subr.mxu0 0.0
      %1741 = vmatpush1.msra.mxu0 0.0
      %1742 = vmatprep.subr.mxu0 0.0
      %1743 = vmatpush1.msra.mxu0 0.0
      %1744 = vmatprep.subr.mxu0 0.0
      %1745 = vmatpush1.msra.mxu0 0.0
      %1746 = vmatprep.subr.mxu0 0.0
      %1747 = vmatpush1.msra.mxu0 0.0
      %1748 = vmatprep.subr.mxu0 0.0
      %1749 = vmatpush1.msra.mxu0 0.0
      %1750 = vmatprep.subr.mxu0 0.0
      %1751 = vmatpush1.msra.mxu0 0.0
      %1752 = vmatprep.subr.mxu0 0.0
      %1753 = vmatpush1.msra.mxu0 0.0
      %1754 = vmatprep.mubr.f32.mxu0 0.0
      %1755 = vmatmul.mubr.f32.gmra.mrb[0].mxu0 %v1688
      %v1756 = vpop.f32.mrb[0].mxu0
      %v1757 = vadd.f32 0.0, %v1756
      %v1758 = vpop.f32.mrb[0].mxu0
      %v1759 = vadd.f32 0.0, %v1758
      %1760 = vdwg.mxu0
      %1761 = vmatprep.subr.mxu0 %v1680
      %1762 = vmatpush1.msra.mxu0 %v1679
      %1763 = vmatprep.subr.mxu0 0.0
      %1764 = vmatpush1.msra.mxu0 0.0
      %1765 = vmatprep.subr.mxu0 0.0
      %1766 = vmatpush1.msra.mxu0 0.0
      %1767 = vmatprep.subr.mxu0 0.0
      %1768 = vmatpush1.msra.mxu0 0.0
      %1769 = vmatprep.subr.mxu0 0.0
      %1770 = vmatpush1.msra.mxu0 0.0
      %1771 = vmatprep.subr.mxu0 0.0
      %1772 = vmatpush1.msra.mxu0 0.0
      %1773 = vmatprep.subr.mxu0 0.0
      %1774 = vmatpush1.msra.mxu0 0.0
      %1775 = vmatprep.subr.mxu0 0.0
      %1776 = vmatpush1.msra.mxu0 0.0
      %1777 = vmatprep.subr.mxu0 0.0
      %1778 = vmatpush1.msra.mxu0 0.0
      %1779 = vmatprep.subr.mxu0 0.0
      %1780 = vmatpush1.msra.mxu0 0.0
      %1781 = vmatprep.subr.mxu0 0.0
      %1782 = vmatpush1.msra.mxu0 0.0
      %1783 = vmatprep.subr.mxu0 0.0
      %1784 = vmatpush1.msra.mxu0 0.0
      %1785 = vmatprep.subr.mxu0 0.0
      %1786 = vmatpush1.msra.mxu0 0.0
      %1787 = vmatprep.subr.mxu0 0.0
      %1788 = vmatpush1.msra.mxu0 0.0
      %1789 = vmatprep.subr.mxu0 0.0
      %1790 = vmatpush1.msra.mxu0 0.0
      %1791 = vmatprep.subr.mxu0 0.0
      %1792 = vmatpush1.msra.mxu0 0.0
      %1793 = vmatprep.subr.mxu0 0.0
      %1794 = vmatpush1.msra.mxu0 0.0
      %1795 = vmatprep.subr.mxu0 0.0
      %1796 = vmatpush1.msra.mxu0 0.0
      %1797 = vmatprep.subr.mxu0 0.0
      %1798 = vmatpush1.msra.mxu0 0.0
      %1799 = vmatprep.subr.mxu0 0.0
      %1800 = vmatpush1.msra.mxu0 0.0
      %1801 = vmatprep.subr.mxu0 0.0
      %1802 = vmatpush1.msra.mxu0 0.0
      %1803 = vmatprep.subr.mxu0 0.0
      %1804 = vmatpush1.msra.mxu0 0.0
      %1805 = vmatprep.subr.mxu0 0.0
      %1806 = vmatpush1.msra.mxu0 0.0
      %1807 = vmatprep.subr.mxu0 0.0
      %1808 = vmatpush1.msra.mxu0 0.0
      %1809 = vmatprep.subr.mxu0 0.0
      %1810 = vmatpush1.msra.mxu0 0.0
      %1811 = vmatprep.subr.mxu0 0.0
      %1812 = vmatpush1.msra.mxu0 0.0
      %1813 = vmatprep.subr.mxu0 0.0
      %1814 = vmatpush1.msra.mxu0 0.0
      %1815 = vmatprep.subr.mxu0 0.0
      %1816 = vmatpush1.msra.mxu0 0.0
      %1817 = vmatprep.subr.mxu0 0.0
      %1818 = vmatpush1.msra.mxu0 0.0
      %1819 = vmatprep.subr.mxu0 0.0
      %1820 = vmatpush1.msra.mxu0 0.0
      %1821 = vmatprep.subr.mxu0 0.0
      %1822 = vmatpush1.msra.mxu0 0.0
      %1823 = vmatprep.subr.mxu0 0.0
      %1824 = vmatpush1.msra.mxu0 0.0
      %1825 = vmatprep.mubr.f32.mxu0 0.0
      %1826 = vmatmul.mubr.f32.gmra.mrb[0].mxu0 %v1688
      %v1827 = vpop.f32.mrb[0].mxu0
      %v1828 = vadd.f32 0.0, %v1827
      %v1829 = vpop.f32.mrb[0].mxu0
      %v1830 = vadd.f32 0.0, %v1829
      %1831 = vdwg.mxu0
      %1832 = vmatprep.subr.mxu0 0.0
      %1833 = vmatpush1.msra.mxu0 %v1681
      %1834 = vmatprep.subr.mxu0 0.0
      %1835 = vmatpush1.msra.mxu0 0.0
      %1836 = vmatprep.subr.mxu0 0.0
      %1837 = vmatpush1.msra.mxu0 0.0
      %1838 = vmatprep.subr.mxu0 0.0
      %1839 = vmatpush1.msra.mxu0 0.0
      %1840 = vmatprep.subr.mxu0 0.0
      %1841 = vmatpush1.msra.mxu0 0.0
      %1842 = vmatprep.subr.mxu0 0.0
      %1843 = vmatpush1.msra.mxu0 0.0
      %1844 = vmatprep.subr.mxu0 0.0
      %1845 = vmatpush1.msra.mxu0 0.0
      %1846 = vmatprep.subr.mxu0 0.0
      %1847 = vmatpush1.msra.mxu0 0.0
      %1848 = vmatprep.subr.mxu0 0.0
      %1849 = vmatpush1.msra.mxu0 0.0
      %1850 = vmatprep.subr.mxu0 0.0
      %1851 = vmatpush1.msra.mxu0 0.0
      %1852 = vmatprep.subr.mxu0 0.0
      %1853 = vmatpush1.msra.mxu0 0.0
      %1854 = vmatprep.subr.mxu0 0.0
      %1855 = vmatpush1.msra.mxu0 0.0
      %1856 = vmatprep.subr.mxu0 0.0
      %1857 = vmatpush1.msra.mxu0 0.0
      %1858 = vmatprep.subr.mxu0 0.0
      %1859 = vmatpush1.msra.mxu0 0.0
      %1860 = vmatprep.subr.mxu0 0.0
      %1861 = vmatpush1.msra.mxu0 0.0
      %1862 = vmatprep.subr.mxu0 0.0
      %1863 = vmatpush1.msra.mxu0 0.0
      %1864 = vmatprep.subr.mxu0 0.0
      %1865 = vmatpush1.msra.mxu0 0.0
      %1866 = vmatprep.subr.mxu0 0.0
      %1867 = vmatpush1.msra.mxu0 0.0
      %1868 = vmatprep.subr.mxu0 0.0
      %1869 = vmatpush1.msra.mxu0 0.0
      %1870 = vmatprep.subr.mxu0 0.0
      %1871 = vmatpush1.msra.mxu0 0.0
      %1872 = vmatprep.subr.mxu0 0.0
      %1873 = vmatpush1.msra.mxu0 0.0
      %1874 = vmatprep.subr.mxu0 0.0
      %1875 = vmatpush1.msra.mxu0 0.0
      %1876 = vmatprep.subr.mxu0 0.0
      %1877 = vmatpush1.msra.mxu0 0.0
      %1878 = vmatprep.subr.mxu0 0.0
      %1879 = vmatpush1.msra.mxu0 0.0
      %1880 = vmatprep.subr.mxu0 0.0
      %1881 = vmatpush1.msra.mxu0 0.0
      %1882 = vmatprep.subr.mxu0 0.0
      %1883 = vmatpush1.msra.mxu0 0.0
      %1884 = vmatprep.subr.mxu0 0.0
      %1885 = vmatpush1.msra.mxu0 0.0
      %1886 = vmatprep.subr.mxu0 0.0
      %1887 = vmatpush1.msra.mxu0 0.0
      %1888 = vmatprep.subr.mxu0 0.0
      %1889 = vmatpush1.msra.mxu0 0.0
      %1890 = vmatprep.subr.mxu0 0.0
      %1891 = vmatpush1.msra.mxu0 0.0
      %1892 = vmatprep.subr.mxu0 0.0
      %1893 = vmatpush1.msra.mxu0 0.0
      %1894 = vmatprep.subr.mxu0 0.0
      %1895 = vmatpush1.msra.mxu0 0.0
      %1896 = vmatprep.mubr.f32.mxu0 0.0
      %1897 = vmatmul.mubr.f32.gmra.mrb[0].mxu0 %v1688
      %v1898 = vpop.f32.mrb[0].mxu0
      %v1899 = vadd.f32 0.0, %v1898
      %v1900 = vpop.f32.mrb[0].mxu0
      %1901 = vdwg.mxu0
      %v1902 = vadd.f32 %v1657, %v1757
      %v1903 = vadd.f32 %v1658, %v1759
      %v1904 = vadd.f32 %v1659, %v1828
      %v1905 = vadd.f32 %v1660, %v1830
      %v1906 = vadd.f32 %v1661, %v1899
      %v1907 = vld [vmem:[%s1 + $0x38] sm:$0xff]
      %1908 = vrot.lane.b32.xlu0 %v234, 63
      %v1909 = vpop.permute.xlu0 %1908
      %1910 = vrot.lane.b32.xlu0 %v235, 63
      %v1911 = vpop.permute.xlu0 %1910
      %1912 = vrot.lane.b32.xlu0 %v236, 63
      %v1913 = vpop.permute.xlu0 %1912
      %1914 = vrot.lane.b32.xlu0 %v237, 63
      %v1915 = vpop.permute.xlu0 %1914
      %1916 = vrot.lane.b32.xlu0 %v238, 63
      %v1917 = vpop.permute.xlu0 %1916
      %1918 = vrot.lane.b32.xlu0 %v239, 63
      %v1919 = vpop.permute.xlu0 %1918
      %vm1920 = vcmask 515072
      %v1921 = vsel %vm1920, %v1909, %v1911
      %v1922 = vsel %vm1920, %v1911, %v1913
      %v1923 = vsel %vm1920, %v1913, %v1915
      %v1924 = vsel %vm1920, %v1915, %v1917
      %v1925 = vsel %vm1920, %v1917, %v1919
      %v1932 = vsel %vm267, %v1907, 0
      %1934 = vmatprep.subr.mxu0 %v1922
      %1935 = vmatpush1.msra.mxu0 %v1921
      %1936 = vmatprep.subr.mxu0 0.0
      %1937 = vmatpush1.msra.mxu0 0.0
      %1938 = vmatprep.subr.mxu0 0.0
      %1939 = vmatpush1.msra.mxu0 0.0
      %1940 = vmatprep.subr.mxu0 0.0
      %1941 = vmatpush1.msra.mxu0 0.0
      %1942 = vmatprep.subr.mxu0 0.0
      %1943 = vmatpush1.msra.mxu0 0.0
      %1944 = vmatprep.subr.mxu0 0.0
      %1945 = vmatpush1.msra.mxu0 0.0
      %1946 = vmatprep.subr.mxu0 0.0
      %1947 = vmatpush1.msra.mxu0 0.0
      %1948 = vmatprep.subr.mxu0 0.0
      %1949 = vmatpush1.msra.mxu0 0.0
      %1950 = vmatprep.subr.mxu0 0.0
      %1951 = vmatpush1.msra.mxu0 0.0
      %1952 = vmatprep.subr.mxu0 0.0
      %1953 = vmatpush1.msra.mxu0 0.0
      %1954 = vmatprep.subr.mxu0 0.0
      %1955 = vmatpush1.msra.mxu0 0.0
      %1956 = vmatprep.subr.mxu0 0.0
      %1957 = vmatpush1.msra.mxu0 0.0
      %1958 = vmatprep.subr.mxu0 0.0
      %1959 = vmatpush1.msra.mxu0 0.0
      %1960 = vmatprep.subr.mxu0 0.0
      %1961 = vmatpush1.msra.mxu0 0.0
      %1962 = vmatprep.subr.mxu0 0.0
      %1963 = vmatpush1.msra.mxu0 0.0
      %1964 = vmatprep.subr.mxu0 0.0
      %1965 = vmatpush1.msra.mxu0 0.0
      %1966 = vmatprep.subr.mxu0 0.0
      %1967 = vmatpush1.msra.mxu0 0.0
      %1968 = vmatprep.subr.mxu0 0.0
      %1969 = vmatpush1.msra.mxu0 0.0
      %1970 = vmatprep.subr.mxu0 0.0
      %1971 = vmatpush1.msra.mxu0 0.0
      %1972 = vmatprep.subr.mxu0 0.0
      %1973 = vmatpush1.msra.mxu0 0.0
      %1974 = vmatprep.subr.mxu0 0.0
      %1975 = vmatpush1.msra.mxu0 0.0
      %1976 = vmatprep.subr.mxu0 0.0
      %1977 = vmatpush1.msra.mxu0 0.0
      %1978 = vmatprep.subr.mxu0 0.0
      %1979 = vmatpush1.msra.mxu0 0.0
      %1980 = vmatprep.subr.mxu0 0.0
      %1981 = vmatpush1.msra.mxu0 0.0
      %1982 = vmatprep.subr.mxu0 0.0
      %1983 = vmatpush1.msra.mxu0 0.0
      %1984 = vmatprep.subr.mxu0 0.0
      %1985 = vmatpush1.msra.mxu0 0.0
      %1986 = vmatprep.subr.mxu0 0.0
      %1987 = vmatpush1.msra.mxu0 0.0
      %1988 = vmatprep.subr.mxu0 0.0
      %1989 = vmatpush1.msra.mxu0 0.0
      %1990 = vmatprep.subr.mxu0 0.0
      %1991 = vmatpush1.msra.mxu0 0.0
      %1992 = vmatprep.subr.mxu0 0.0
      %1993 = vmatpush1.msra.mxu0 0.0
      %1994 = vmatprep.subr.mxu0 0.0
      %1995 = vmatpush1.msra.mxu0 0.0
      %1996 = vmatprep.subr.mxu0 0.0
      %1997 = vmatpush1.msra.mxu0 0.0
      %1998 = vmatprep.mubr.f32.mxu0 0.0
      %1999 = vmatmul.mubr.f32.gmra.mrb[0].mxu0 %v1932
      %v2000 = vpop.f32.mrb[0].mxu0
      %v2001 = vadd.f32 0.0, %v2000
      %v2002 = vpop.f32.mrb[0].mxu0
      %v2003 = vadd.f32 0.0, %v2002
      %2004 = vdwg.mxu0
      %2005 = vmatprep.subr.mxu0 %v1924
      %2006 = vmatpush1.msra.mxu0 %v1923
      %2007 = vmatprep.subr.mxu0 0.0
      %2008 = vmatpush1.msra.mxu0 0.0
      %2009 = vmatprep.subr.mxu0 0.0
      %2010 = vmatpush1.msra.mxu0 0.0
      %2011 = vmatprep.subr.mxu0 0.0
      %2012 = vmatpush1.msra.mxu0 0.0
      %2013 = vmatprep.subr.mxu0 0.0
      %2014 = vmatpush1.msra.mxu0 0.0
      %2015 = vmatprep.subr.mxu0 0.0
      %2016 = vmatpush1.msra.mxu0 0.0
      %2017 = vmatprep.subr.mxu0 0.0
      %2018 = vmatpush1.msra.mxu0 0.0
      %2019 = vmatprep.subr.mxu0 0.0
      %2020 = vmatpush1.msra.mxu0 0.0
      %2021 = vmatprep.subr.mxu0 0.0
      %2022 = vmatpush1.msra.mxu0 0.0
      %2023 = vmatprep.subr.mxu0 0.0
      %2024 = vmatpush1.msra.mxu0 0.0
      %2025 = vmatprep.subr.mxu0 0.0
      %2026 = vmatpush1.msra.mxu0 0.0
      %2027 = vmatprep.subr.mxu0 0.0
      %2028 = vmatpush1.msra.mxu0 0.0
      %2029 = vmatprep.subr.mxu0 0.0
      %2030 = vmatpush1.msra.mxu0 0.0
      %2031 = vmatprep.subr.mxu0 0.0
      %2032 = vmatpush1.msra.mxu0 0.0
      %2033 = vmatprep.subr.mxu0 0.0
      %2034 = vmatpush1.msra.mxu0 0.0
      %2035 = vmatprep.subr.mxu0 0.0
      %2036 = vmatpush1.msra.mxu0 0.0
      %2037 = vmatprep.subr.mxu0 0.0
      %2038 = vmatpush1.msra.mxu0 0.0
      %2039 = vmatprep.subr.mxu0 0.0
      %2040 = vmatpush1.msra.mxu0 0.0
      %2041 = vmatprep.subr.mxu0 0.0
      %2042 = vmatpush1.msra.mxu0 0.0
      %2043 = vmatprep.subr.mxu0 0.0
      %2044 = vmatpush1.msra.mxu0 0.0
      %2045 = vmatprep.subr.mxu0 0.0
      %2046 = vmatpush1.msra.mxu0 0.0
      %2047 = vmatprep.subr.mxu0 0.0
      %2048 = vmatpush1.msra.mxu0 0.0
      %2049 = vmatprep.subr.mxu0 0.0
      %2050 = vmatpush1.msra.mxu0 0.0
      %2051 = vmatprep.subr.mxu0 0.0
      %2052 = vmatpush1.msra.mxu0 0.0
      %2053 = vmatprep.subr.mxu0 0.0
      %2054 = vmatpush1.msra.mxu0 0.0
      %2055 = vmatprep.subr.mxu0 0.0
      %2056 = vmatpush1.msra.mxu0 0.0
      %2057 = vmatprep.subr.mxu0 0.0
      %2058 = vmatpush1.msra.mxu0 0.0
      %2059 = vmatprep.subr.mxu0 0.0
      %2060 = vmatpush1.msra.mxu0 0.0
      %2061 = vmatprep.subr.mxu0 0.0
      %2062 = vmatpush1.msra.mxu0 0.0
      %2063 = vmatprep.subr.mxu0 0.0
      %2064 = vmatpush1.msra.mxu0 0.0
      %2065 = vmatprep.subr.mxu0 0.0
      %2066 = vmatpush1.msra.mxu0 0.0
      %2067 = vmatprep.subr.mxu0 0.0
      %2068 = vmatpush1.msra.mxu0 0.0
      %2069 = vmatprep.mubr.f32.mxu0 0.0
      %2070 = vmatmul.mubr.f32.gmra.mrb[0].mxu0 %v1932
      %v2071 = vpop.f32.mrb[0].mxu0
      %v2072 = vadd.f32 0.0, %v2071
      %v2073 = vpop.f32.mrb[0].mxu0
      %v2074 = vadd.f32 0.0, %v2073
      %2075 = vdwg.mxu0
      %2076 = vmatprep.subr.mxu0 0.0
      %2077 = vmatpush1.msra.mxu0 %v1925
      %2078 = vmatprep.subr.mxu0 0.0
      %2079 = vmatpush1.msra.mxu0 0.0
      %2080 = vmatprep.subr.mxu0 0.0
      %2081 = vmatpush1.msra.mxu0 0.0
      %2082 = vmatprep.subr.mxu0 0.0
      %2083 = vmatpush1.msra.mxu0 0.0
      %2084 = vmatprep.subr.mxu0 0.0
      %2085 = vmatpush1.msra.mxu0 0.0
      %2086 = vmatprep.subr.mxu0 0.0
      %2087 = vmatpush1.msra.mxu0 0.0
      %2088 = vmatprep.subr.mxu0 0.0
      %2089 = vmatpush1.msra.mxu0 0.0
      %2090 = vmatprep.subr.mxu0 0.0
      %2091 = vmatpush1.msra.mxu0 0.0
      %2092 = vmatprep.subr.mxu0 0.0
      %2093 = vmatpush1.msra.mxu0 0.0
      %2094 = vmatprep.subr.mxu0 0.0
      %2095 = vmatpush1.msra.mxu0 0.0
      %2096 = vmatprep.subr.mxu0 0.0
      %2097 = vmatpush1.msra.mxu0 0.0
      %2098 = vmatprep.subr.mxu0 0.0
      %2099 = vmatpush1.msra.mxu0 0.0
      %2100 = vmatprep.subr.mxu0 0.0
      %2101 = vmatpush1.msra.mxu0 0.0
      %2102 = vmatprep.subr.mxu0 0.0
      %2103 = vmatpush1.msra.mxu0 0.0
      %2104 = vmatprep.subr.mxu0 0.0
      %2105 = vmatpush1.msra.mxu0 0.0
      %2106 = vmatprep.subr.mxu0 0.0
      %2107 = vmatpush1.msra.mxu0 0.0
      %2108 = vmatprep.subr.mxu0 0.0
      %2109 = vmatpush1.msra.mxu0 0.0
      %2110 = vmatprep.subr.mxu0 0.0
      %2111 = vmatpush1.msra.mxu0 0.0
      %2112 = vmatprep.subr.mxu0 0.0
      %2113 = vmatpush1.msra.mxu0 0.0
      %2114 = vmatprep.subr.mxu0 0.0
      %2115 = vmatpush1.msra.mxu0 0.0
      %2116 = vmatprep.subr.mxu0 0.0
      %2117 = vmatpush1.msra.mxu0 0.0
      %2118 = vmatprep.subr.mxu0 0.0
      %2119 = vmatpush1.msra.mxu0 0.0
      %2120 = vmatprep.subr.mxu0 0.0
      %2121 = vmatpush1.msra.mxu0 0.0
      %2122 = vmatprep.subr.mxu0 0.0
      %2123 = vmatpush1.msra.mxu0 0.0
      %2124 = vmatprep.subr.mxu0 0.0
      %2125 = vmatpush1.msra.mxu0 0.0
      %2126 = vmatprep.subr.mxu0 0.0
      %2127 = vmatpush1.msra.mxu0 0.0
      %2128 = vmatprep.subr.mxu0 0.0
      %2129 = vmatpush1.msra.mxu0 0.0
      %2130 = vmatprep.subr.mxu0 0.0
      %2131 = vmatpush1.msra.mxu0 0.0
      %2132 = vmatprep.subr.mxu0 0.0
      %2133 = vmatpush1.msra.mxu0 0.0
      %2134 = vmatprep.subr.mxu0 0.0
      %2135 = vmatpush1.msra.mxu0 0.0
      %2136 = vmatprep.subr.mxu0 0.0
      %2137 = vmatpush1.msra.mxu0 0.0
      %2138 = vmatprep.subr.mxu0 0.0
      %2139 = vmatpush1.msra.mxu0 0.0
      %2140 = vmatprep.mubr.f32.mxu0 0.0
      %2141 = vmatmul.mubr.f32.gmra.mrb[0].mxu0 %v1932
      %v2142 = vpop.f32.mrb[0].mxu0
      %v2143 = vadd.f32 0.0, %v2142
      %v2144 = vpop.f32.mrb[0].mxu0
      %2145 = vdwg.mxu0
      %v2146 = vadd.f32 %v1902, %v2001
      %v2147 = vadd.f32 %v1903, %v2003
      %v2148 = vadd.f32 %v1904, %v2072
      %v2149 = vadd.f32 %v1905, %v2074
      %v2150 = vadd.f32 %v1906, %v2143
      %v2151 = vld [vmem:[%s1 + $0x40] sm:$0xff]
      %2152 = vrot.lane.b32.xlu0 %v234, 62
      %v2153 = vpop.permute.xlu0 %2152
      %2154 = vrot.lane.b32.xlu0 %v235, 62
      %v2155 = vpop.permute.xlu0 %2154
      %2156 = vrot.lane.b32.xlu0 %v236, 62
      %v2157 = vpop.permute.xlu0 %2156
      %2158 = vrot.lane.b32.xlu0 %v237, 62
      %v2159 = vpop.permute.xlu0 %2158
      %2160 = vrot.lane.b32.xlu0 %v238, 62
      %v2161 = vpop.permute.xlu0 %2160
      %2162 = vrot.lane.b32.xlu0 %v239, 62
      %v2163 = vpop.permute.xlu0 %2162
      %vm2164 = vcmask 506880
      %v2165 = vsel %vm2164, %v2153, %v2155
      %v2166 = vsel %vm2164, %v2155, %v2157
      %v2167 = vsel %vm2164, %v2157, %v2159
      %v2168 = vsel %vm2164, %v2159, %v2161
      %v2169 = vsel %vm2164, %v2161, %v2163
      %v2176 = vsel %vm267, %v2151, 0
      %2178 = vmatprep.subr.mxu0 %v2166
      %2179 = vmatpush1.msra.mxu0 %v2165
      %2180 = vmatprep.subr.mxu0 0.0
      %2181 = vmatpush1.msra.mxu0 0.0
      %2182 = vmatprep.subr.mxu0 0.0
      %2183 = vmatpush1.msra.mxu0 0.0
      %2184 = vmatprep.subr.mxu0 0.0
      %2185 = vmatpush1.msra.mxu0 0.0
      %2186 = vmatprep.subr.mxu0 0.0
      %2187 = vmatpush1.msra.mxu0 0.0
      %2188 = vmatprep.subr.mxu0 0.0
      %2189 = vmatpush1.msra.mxu0 0.0
      %2190 = vmatprep.subr.mxu0 0.0
      %2191 = vmatpush1.msra.mxu0 0.0
      %2192 = vmatprep.subr.mxu0 0.0
      %2193 = vmatpush1.msra.mxu0 0.0
      %2194 = vmatprep.subr.mxu0 0.0
      %2195 = vmatpush1.msra.mxu0 0.0
      %2196 = vmatprep.subr.mxu0 0.0
      %2197 = vmatpush1.msra.mxu0 0.0
      %2198 = vmatprep.subr.mxu0 0.0
      %2199 = vmatpush1.msra.mxu0 0.0
      %2200 = vmatprep.subr.mxu0 0.0
      %2201 = vmatpush1.msra.mxu0 0.0
      %2202 = vmatprep.subr.mxu0 0.0
      %2203 = vmatpush1.msra.mxu0 0.0
      %2204 = vmatprep.subr.mxu0 0.0
      %2205 = vmatpush1.msra.mxu0 0.0
      %2206 = vmatprep.subr.mxu0 0.0
      %2207 = vmatpush1.msra.mxu0 0.0
      %2208 = vmatprep.subr.mxu0 0.0
      %2209 = vmatpush1.msra.mxu0 0.0
      %2210 = vmatprep.subr.mxu0 0.0
      %2211 = vmatpush1.msra.mxu0 0.0
      %2212 = vmatprep.subr.mxu0 0.0
      %2213 = vmatpush1.msra.mxu0 0.0
      %2214 = vmatprep.subr.mxu0 0.0
      %2215 = vmatpush1.msra.mxu0 0.0
      %2216 = vmatprep.subr.mxu0 0.0
      %2217 = vmatpush1.msra.mxu0 0.0
      %2218 = vmatprep.subr.mxu0 0.0
      %2219 = vmatpush1.msra.mxu0 0.0
      %2220 = vmatprep.subr.mxu0 0.0
      %2221 = vmatpush1.msra.mxu0 0.0
      %2222 = vmatprep.subr.mxu0 0.0
      %2223 = vmatpush1.msra.mxu0 0.0
      %2224 = vmatprep.subr.mxu0 0.0
      %2225 = vmatpush1.msra.mxu0 0.0
      %2226 = vmatprep.subr.mxu0 0.0
      %2227 = vmatpush1.msra.mxu0 0.0
      %2228 = vmatprep.subr.mxu0 0.0
      %2229 = vmatpush1.msra.mxu0 0.0
      %2230 = vmatprep.subr.mxu0 0.0
      %2231 = vmatpush1.msra.mxu0 0.0
      %2232 = vmatprep.subr.mxu0 0.0
      %2233 = vmatpush1.msra.mxu0 0.0
      %2234 = vmatprep.subr.mxu0 0.0
      %2235 = vmatpush1.msra.mxu0 0.0
      %2236 = vmatprep.subr.mxu0 0.0
      %2237 = vmatpush1.msra.mxu0 0.0
      %2238 = vmatprep.subr.mxu0 0.0
      %2239 = vmatpush1.msra.mxu0 0.0
      %2240 = vmatprep.subr.mxu0 0.0
      %2241 = vmatpush1.msra.mxu0 0.0
      %2242 = vmatprep.mubr.f32.mxu0 0.0
      %2243 = vmatmul.mubr.f32.gmra.mrb[0].mxu0 %v2176
      %v2244 = vpop.f32.mrb[0].mxu0
      %v2245 = vadd.f32 0.0, %v2244
      %v2246 = vpop.f32.mrb[0].mxu0
      %v2247 = vadd.f32 0.0, %v2246
      %2248 = vdwg.mxu0
      %2249 = vmatprep.subr.mxu0 %v2168
      %2250 = vmatpush1.msra.mxu0 %v2167
      %2251 = vmatprep.subr.mxu0 0.0
      %2252 = vmatpush1.msra.mxu0 0.0
      %2253 = vmatprep.subr.mxu0 0.0
      %2254 = vmatpush1.msra.mxu0 0.0
      %2255 = vmatprep.subr.mxu0 0.0
      %2256 = vmatpush1.msra.mxu0 0.0
      %2257 = vmatprep.subr.mxu0 0.0
      %2258 = vmatpush1.msra.mxu0 0.0
      %2259 = vmatprep.subr.mxu0 0.0
      %2260 = vmatpush1.msra.mxu0 0.0
      %2261 = vmatprep.subr.mxu0 0.0
      %2262 = vmatpush1.msra.mxu0 0.0
      %2263 = vmatprep.subr.mxu0 0.0
      %2264 = vmatpush1.msra.mxu0 0.0
      %2265 = vmatprep.subr.mxu0 0.0
      %2266 = vmatpush1.msra.mxu0 0.0
      %2267 = vmatprep.subr.mxu0 0.0
      %2268 = vmatpush1.msra.mxu0 0.0
      %2269 = vmatprep.subr.mxu0 0.0
      %2270 = vmatpush1.msra.mxu0 0.0
      %2271 = vmatprep.subr.mxu0 0.0
      %2272 = vmatpush1.msra.mxu0 0.0
      %2273 = vmatprep.subr.mxu0 0.0
      %2274 = vmatpush1.msra.mxu0 0.0
      %2275 = vmatprep.subr.mxu0 0.0
      %2276 = vmatpush1.msra.mxu0 0.0
      %2277 = vmatprep.subr.mxu0 0.0
      %2278 = vmatpush1.msra.mxu0 0.0
      %2279 = vmatprep.subr.mxu0 0.0
      %2280 = vmatpush1.msra.mxu0 0.0
      %2281 = vmatprep.subr.mxu0 0.0
      %2282 = vmatpush1.msra.mxu0 0.0
      %2283 = vmatprep.subr.mxu0 0.0
      %2284 = vmatpush1.msra.mxu0 0.0
      %2285 = vmatprep.subr.mxu0 0.0
      %2286 = vmatpush1.msra.mxu0 0.0
      %2287 = vmatprep.subr.mxu0 0.0
      %2288 = vmatpush1.msra.mxu0 0.0
      %2289 = vmatprep.subr.mxu0 0.0
      %2290 = vmatpush1.msra.mxu0 0.0
      %2291 = vmatprep.subr.mxu0 0.0
      %2292 = vmatpush1.msra.mxu0 0.0
      %2293 = vmatprep.subr.mxu0 0.0
      %2294 = vmatpush1.msra.mxu0 0.0
      %2295 = vmatprep.subr.mxu0 0.0
      %2296 = vmatpush1.msra.mxu0 0.0
      %2297 = vmatprep.subr.mxu0 0.0
      %2298 = vmatpush1.msra.mxu0 0.0
      %2299 = vmatprep.subr.mxu0 0.0
      %2300 = vmatpush1.msra.mxu0 0.0
      %2301 = vmatprep.subr.mxu0 0.0
      %2302 = vmatpush1.msra.mxu0 0.0
      %2303 = vmatprep.subr.mxu0 0.0
      %2304 = vmatpush1.msra.mxu0 0.0
      %2305 = vmatprep.subr.mxu0 0.0
      %2306 = vmatpush1.msra.mxu0 0.0
      %2307 = vmatprep.subr.mxu0 0.0
      %2308 = vmatpush1.msra.mxu0 0.0
      %2309 = vmatprep.subr.mxu0 0.0
      %2310 = vmatpush1.msra.mxu0 0.0
      %2311 = vmatprep.subr.mxu0 0.0
      %2312 = vmatpush1.msra.mxu0 0.0
      %2313 = vmatprep.mubr.f32.mxu0 0.0
      %2314 = vmatmul.mubr.f32.gmra.mrb[0].mxu0 %v2176
      %v2315 = vpop.f32.mrb[0].mxu0
      %v2316 = vadd.f32 0.0, %v2315
      %v2317 = vpop.f32.mrb[0].mxu0
      %v2318 = vadd.f32 0.0, %v2317
      %2319 = vdwg.mxu0
      %2320 = vmatprep.subr.mxu0 0.0
      %2321 = vmatpush1.msra.mxu0 %v2169
      %2322 = vmatprep.subr.mxu0 0.0
      %2323 = vmatpush1.msra.mxu0 0.0
      %2324 = vmatprep.subr.mxu0 0.0
      %2325 = vmatpush1.msra.mxu0 0.0
      %2326 = vmatprep.subr.mxu0 0.0
      %2327 = vmatpush1.msra.mxu0 0.0
      %2328 = vmatprep.subr.mxu0 0.0
      %2329 = vmatpush1.msra.mxu0 0.0
      %2330 = vmatprep.subr.mxu0 0.0
      %2331 = vmatpush1.msra.mxu0 0.0
      %2332 = vmatprep.subr.mxu0 0.0
      %2333 = vmatpush1.msra.mxu0 0.0
      %2334 = vmatprep.subr.mxu0 0.0
      %2335 = vmatpush1.msra.mxu0 0.0
      %2336 = vmatprep.subr.mxu0 0.0
      %2337 = vmatpush1.msra.mxu0 0.0
      %2338 = vmatprep.subr.mxu0 0.0
      %2339 = vmatpush1.msra.mxu0 0.0
      %2340 = vmatprep.subr.mxu0 0.0
      %2341 = vmatpush1.msra.mxu0 0.0
      %2342 = vmatprep.subr.mxu0 0.0
      %2343 = vmatpush1.msra.mxu0 0.0
      %2344 = vmatprep.subr.mxu0 0.0
      %2345 = vmatpush1.msra.mxu0 0.0
      %2346 = vmatprep.subr.mxu0 0.0
      %2347 = vmatpush1.msra.mxu0 0.0
      %2348 = vmatprep.subr.mxu0 0.0
      %2349 = vmatpush1.msra.mxu0 0.0
      %2350 = vmatprep.subr.mxu0 0.0
      %2351 = vmatpush1.msra.mxu0 0.0
      %2352 = vmatprep.subr.mxu0 0.0
      %2353 = vmatpush1.msra.mxu0 0.0
      %2354 = vmatprep.subr.mxu0 0.0
      %2355 = vmatpush1.msra.mxu0 0.0
      %2356 = vmatprep.subr.mxu0 0.0
      %2357 = vmatpush1.msra.mxu0 0.0
      %2358 = vmatprep.subr.mxu0 0.0
      %2359 = vmatpush1.msra.mxu0 0.0
      %2360 = vmatprep.subr.mxu0 0.0
      %2361 = vmatpush1.msra.mxu0 0.0
      %2362 = vmatprep.subr.mxu0 0.0
      %2363 = vmatpush1.msra.mxu0 0.0
      %2364 = vmatprep.subr.mxu0 0.0
      %2365 = vmatpush1.msra.mxu0 0.0
      %2366 = vmatprep.subr.mxu0 0.0
      %2367 = vmatpush1.msra.mxu0 0.0
      %2368 = vmatprep.subr.mxu0 0.0
      %2369 = vmatpush1.msra.mxu0 0.0
      %2370 = vmatprep.subr.mxu0 0.0
      %2371 = vmatpush1.msra.mxu0 0.0
      %2372 = vmatprep.subr.mxu0 0.0
      %2373 = vmatpush1.msra.mxu0 0.0
      %2374 = vmatprep.subr.mxu0 0.0
      %2375 = vmatpush1.msra.mxu0 0.0
      %2376 = vmatprep.subr.mxu0 0.0
      %2377 = vmatpush1.msra.mxu0 0.0
      %2378 = vmatprep.subr.mxu0 0.0
      %2379 = vmatpush1.msra.mxu0 0.0
      %2380 = vmatprep.subr.mxu0 0.0
      %2381 = vmatpush1.msra.mxu0 0.0
      %2382 = vmatprep.subr.mxu0 0.0
      %2383 = vmatpush1.msra.mxu0 0.0
      %2384 = vmatprep.mubr.f32.mxu0 0.0
      %2385 = vmatmul.mubr.f32.gmra.mrb[0].mxu0 %v2176
      %v2386 = vpop.f32.mrb[0].mxu0
      %v2387 = vadd.f32 0.0, %v2386
      %v2388 = vpop.f32.mrb[0].mxu0
      %2389 = vdwg.mxu0
      %v2390 = vadd.f32 %v2146, %v2245
      %v2391 = vadd.f32 %v2147, %v2247
      %v2392 = vadd.f32 %v2148, %v2316
      %v2393 = vadd.f32 %v2149, %v2318
      %v2394 = vadd.f32 %v2150, %v2387
      %v2395 = vld [vmem:[%s3] sm:$0xff]
      %2397 = vset.pattern.permute.xlu0 0
      %2398 = vperm.xlu0 %2397, %v2395
      %v2399 = vpop.permute.xlu0 %2398
      %v2401 = vadd.f32 %v2390, %v2399
      %v2402 = vadd.f32 %v2391, %v2399
      %v2403 = vadd.f32 %v2392, %v2399
      %v2404 = vadd.f32 %v2393, %v2399
      %v2405 = vadd.f32 %v2394, %v2399
      %v2406 = vmul.f32 %v2401, 0.5
      %v2407 = vmul.f32 %v2402, 0.5
      %v2408 = vmul.f32 %v2403, 0.5
      %v2409 = vmul.f32 %v2404, 0.5
      %v2410 = vmul.f32 %v2405, 0.5
      %v2411 = vmul.f32 %v2401, 0.70710677
      %v2412 = vmul.f32 %v2402, 0.70710677
      %v2413 = vmul.f32 %v2403, 0.70710677
      %v2414 = vmul.f32 %v2404, 0.70710677
      %v2415 = vmul.f32 %v2405, 0.70710677
      %v2416 = verf.f32.pop %v2411
      %v2417 = verf.f32.pop %v2412
      %v2418 = verf.f32.pop %v2413
      %v2419 = verf.f32.pop %v2414
      %v2420 = verf.f32.pop %v2415
      %v2421 = vadd.f32 %v2416, 1.0
      %v2422 = vadd.f32 %v2417, 1.0
      %v2423 = vadd.f32 %v2418, 1.0
      %v2424 = vadd.f32 %v2419, 1.0
      %v2425 = vadd.f32 %v2420, 1.0
      %v2426 = vmul.f32 %v2406, %v2421
      %v2427 = vmul.f32 %v2407, %v2422
      %v2428 = vmul.f32 %v2408, %v2423
      %v2429 = vmul.f32 %v2409, %v2424
      %v2430 = vmul.f32 %v2410, %v2425
      %v2431 = vlaneseq
      %v2432 = vand.u32 %v2431, 127
      %v2433 = vadd.s32 %v2432, 128
      %v2434 = vadd.s32 %v2432, 256
      %v2435 = vadd.s32 %v2432, 384
      %v2436 = vadd.s32 %v2432, 512
      %s2437 = smul.u32 %s20, 16
      %v2438 = vshra.s32 %v2432, 5
      %v2439 = vshra.s32 %v2433, 5
      %v2440 = vshra.s32 %v2434, 5
      %v2441 = vshra.s32 %v2435, 5
      %v2442 = vshra.s32 %v2436, 5
      %v2443 = vstv %s2437
      %v2444 = vadd.s32 %v2443, %v2438
      %v2445 = vadd.s32 %v2443, %v2439
      %v2446 = vadd.s32 %v2443, %v2440
      %v2447 = vadd.s32 %v2443, %v2441
      %v2448 = vadd.s32 %v2443, %v2442
      %v2449 = vand.u32 %v2432, 31
      %v2450 = vand.u32 %v2433, 31
      %v2451 = vand.u32 %v2434, 31
      %v2452 = vand.u32 %v2435, 31
      %v2453 = vand.u32 %v2436, 31
      %vm2454 = vcmp.ge.s32.totalorder %v2444, 1
      %vm2455 = vcmp.ge.s32.totalorder %v2445, 1
      %vm2456 = vcmp.ge.s32.totalorder %v2446, 1
      %vm2457 = vcmp.ge.s32.totalorder %v2447, 1
      %vm2458 = vcmp.ge.s32.totalorder %v2448, 1
      %vm2459 = vcmp.lt.s32.totalorder %v2444, 17
      %vm2460 = vcmp.lt.s32.totalorder %v2445, 17
      %vm2461 = vcmp.lt.s32.totalorder %v2446, 17
      %vm2462 = vcmp.lt.s32.totalorder %v2447, 17
      %vm2463 = vcmp.lt.s32.totalorder %v2448, 17
      %vm2464 = vmand %vm2454, %vm2459
      %vm2465 = vmand %vm2455, %vm2460
      %vm2466 = vmand %vm2456, %vm2461
      %vm2467 = vmand %vm2457, %vm2462
      %vm2468 = vmand %vm2458, %vm2463
      %vm2469 = vcmp.ge.s32.totalorder %v2449, 1
      %vm2470 = vcmp.ge.s32.totalorder %v2450, 1
      %vm2471 = vcmp.ge.s32.totalorder %v2451, 1
      %vm2472 = vcmp.ge.s32.totalorder %v2452, 1
      %vm2473 = vcmp.ge.s32.totalorder %v2453, 1
      %vm2474 = vmand %vm2464, %vm2469
      %vm2475 = vmand %vm2465, %vm2470
      %vm2476 = vmand %vm2466, %vm2471
      %vm2477 = vmand %vm2467, %vm2472
      %vm2478 = vmand %vm2468, %vm2473
      %vm2479 = vcmp.lt.s32.totalorder %v2449, 17
      %vm2480 = vcmp.lt.s32.totalorder %v2450, 17
      %vm2481 = vcmp.lt.s32.totalorder %v2451, 17
      %vm2482 = vcmp.lt.s32.totalorder %v2452, 17
      %vm2483 = vcmp.lt.s32.totalorder %v2453, 17
      %vm2484 = vmand %vm2474, %vm2479
      %vm2485 = vmand %vm2475, %vm2480
      %vm2486 = vmand %vm2476, %vm2481
      %vm2487 = vmand %vm2477, %vm2482
      %vm2488 = vmand %vm2478, %vm2483
      %v2489 = vsel %vm2484, 1, 0
      %v2490 = vsel %vm2485, 1, 0
      %v2491 = vsel %vm2486, 1, 0
      %v2492 = vsel %vm2487, 1, 0
      %v2493 = vsel %vm2488, 1, 0
      %vm2494 = vcmp.eq.s32.totalorder %v2489, 1
      %vm2495 = vcmp.eq.s32.totalorder %v2490, 1
      %vm2496 = vcmp.eq.s32.totalorder %v2491, 1
      %vm2497 = vcmp.eq.s32.totalorder %v2492, 1
      %vm2498 = vcmp.eq.s32.totalorder %v2493, 1
      %v2499 = vsel %vm2494, %v2426, 0.0
      %v2500 = vsel %vm2495, %v2427, 0.0
      %v2501 = vsel %vm2496, %v2428, 0.0
      %v2502 = vsel %vm2497, %v2429, 0.0
      %v2503 = vsel %vm2498, %v2430, 0.0
      %v2504 = vld [vmem:[%s2] sm:$0xff]
      %v2505 = vld [vmem:[%s2 + $0x8] sm:$0xff]
      %2511 = vrot.lane.b32.xlu0 %v2499, 127
      %v2512 = vpop.permute.xlu0 %2511
      %2513 = vrot.lane.b32.xlu0 %v2500, 127
      %v2514 = vpop.permute.xlu0 %2513
      %2515 = vrot.lane.b32.xlu0 %v2501, 127
      %v2516 = vpop.permute.xlu0 %2515
      %2517 = vrot.lane.b32.xlu0 %v2502, 127
      %v2518 = vpop.permute.xlu0 %2517
      %2519 = vrot.lane.b32.xlu0 %v2503, 127
      %v2520 = vpop.permute.xlu0 %2519
      %v2521 = vsel %vm257, %v2512, %v2514
      %v2522 = vsel %vm257, %v2514, %v2516
      %v2523 = vsel %vm257, %v2516, %v2518
      %v2524 = vsel %vm257, %v2518, %v2520
      %v2530 = vsel %vm267, %v2505, 0
      %2532 = vmatprep.subr.mxu0 %v2522
      %2533 = vmatpush1.msra.mxu0 %v2521
      %2534 = vmatprep.subr.mxu0 0.0
      %2535 = vmatpush1.msra.mxu0 0.0
      %2536 = vmatprep.subr.mxu0 0.0
      %2537 = vmatpush1.msra.mxu0 0.0
      %2538 = vmatprep.subr.mxu0 0.0
      %2539 = vmatpush1.msra.mxu0 0.0
      %2540 = vmatprep.subr.mxu0 0.0
      %2541 = vmatpush1.msra.mxu0 0.0
      %2542 = vmatprep.subr.mxu0 0.0
      %2543 = vmatpush1.msra.mxu0 0.0
      %2544 = vmatprep.subr.mxu0 0.0
      %2545 = vmatpush1.msra.mxu0 0.0
      %2546 = vmatprep.subr.mxu0 0.0
      %2547 = vmatpush1.msra.mxu0 0.0
      %2548 = vmatprep.subr.mxu0 0.0
      %2549 = vmatpush1.msra.mxu0 0.0
      %2550 = vmatprep.subr.mxu0 0.0
      %2551 = vmatpush1.msra.mxu0 0.0
      %2552 = vmatprep.subr.mxu0 0.0
      %2553 = vmatpush1.msra.mxu0 0.0
      %2554 = vmatprep.subr.mxu0 0.0
      %2555 = vmatpush1.msra.mxu0 0.0
      %2556 = vmatprep.subr.mxu0 0.0
      %2557 = vmatpush1.msra.mxu0 0.0
      %2558 = vmatprep.subr.mxu0 0.0
      %2559 = vmatpush1.msra.mxu0 0.0
      %2560 = vmatprep.subr.mxu0 0.0
      %2561 = vmatpush1.msra.mxu0 0.0
      %2562 = vmatprep.subr.mxu0 0.0
      %2563 = vmatpush1.msra.mxu0 0.0
      %2564 = vmatprep.subr.mxu0 0.0
      %2565 = vmatpush1.msra.mxu0 0.0
      %2566 = vmatprep.subr.mxu0 0.0
      %2567 = vmatpush1.msra.mxu0 0.0
      %2568 = vmatprep.subr.mxu0 0.0
      %2569 = vmatpush1.msra.mxu0 0.0
      %2570 = vmatprep.subr.mxu0 0.0
      %2571 = vmatpush1.msra.mxu0 0.0
      %2572 = vmatprep.subr.mxu0 0.0
      %2573 = vmatpush1.msra.mxu0 0.0
      %2574 = vmatprep.subr.mxu0 0.0
      %2575 = vmatpush1.msra.mxu0 0.0
      %2576 = vmatprep.subr.mxu0 0.0
      %2577 = vmatpush1.msra.mxu0 0.0
      %2578 = vmatprep.subr.mxu0 0.0
      %2579 = vmatpush1.msra.mxu0 0.0
      %2580 = vmatprep.subr.mxu0 0.0
      %2581 = vmatpush1.msra.mxu0 0.0
      %2582 = vmatprep.subr.mxu0 0.0
      %2583 = vmatpush1.msra.mxu0 0.0
      %2584 = vmatprep.subr.mxu0 0.0
      %2585 = vmatpush1.msra.mxu0 0.0
      %2586 = vmatprep.subr.mxu0 0.0
      %2587 = vmatpush1.msra.mxu0 0.0
      %2588 = vmatprep.subr.mxu0 0.0
      %2589 = vmatpush1.msra.mxu0 0.0
      %2590 = vmatprep.subr.mxu0 0.0
      %2591 = vmatpush1.msra.mxu0 0.0
      %2592 = vmatprep.subr.mxu0 0.0
      %2593 = vmatpush1.msra.mxu0 0.0
      %2594 = vmatprep.subr.mxu0 0.0
      %2595 = vmatpush1.msra.mxu0 0.0
      %2596 = vmatprep.mubr.f32.mxu0 0.0
      %2597 = vmatmul.mubr.f32.gmra.mrb[0].mxu0 %v2530
      %v2598 = vpop.f32.mrb[0].mxu0
      %v2599 = vadd.f32 0.0, %v2598
      %v2600 = vpop.f32.mrb[0].mxu0
      %v2601 = vadd.f32 0.0, %v2600
      %2602 = vdwg.mxu0
      %2603 = vmatprep.subr.mxu0 %v2524
      %2604 = vmatpush1.msra.mxu0 %v2523
      %2605 = vmatprep.subr.mxu0 0.0
      %2606 = vmatpush1.msra.mxu0 0.0
      %2607 = vmatprep.subr.mxu0 0.0
      %2608 = vmatpush1.msra.mxu0 0.0
      %2609 = vmatprep.subr.mxu0 0.0
      %2610 = vmatpush1.msra.mxu0 0.0
      %2611 = vmatprep.subr.mxu0 0.0
      %2612 = vmatpush1.msra.mxu0 0.0
      %2613 = vmatprep.subr.mxu0 0.0
      %2614 = vmatpush1.msra.mxu0 0.0
      %2615 = vmatprep.subr.mxu0 0.0
      %2616 = vmatpush1.msra.mxu0 0.0
      %2617 = vmatprep.subr.mxu0 0.0
      %2618 = vmatpush1.msra.mxu0 0.0
      %2619 = vmatprep.subr.mxu0 0.0
      %2620 = vmatpush1.msra.mxu0 0.0
      %2621 = vmatprep.subr.mxu0 0.0
      %2622 = vmatpush1.msra.mxu0 0.0
      %2623 = vmatprep.subr.mxu0 0.0
      %2624 = vmatpush1.msra.mxu0 0.0
      %2625 = vmatprep.subr.mxu0 0.0
      %2626 = vmatpush1.msra.mxu0 0.0
      %2627 = vmatprep.subr.mxu0 0.0
      %2628 = vmatpush1.msra.mxu0 0.0
      %2629 = vmatprep.subr.mxu0 0.0
      %2630 = vmatpush1.msra.mxu0 0.0
      %2631 = vmatprep.subr.mxu0 0.0
      %2632 = vmatpush1.msra.mxu0 0.0
      %2633 = vmatprep.subr.mxu0 0.0
      %2634 = vmatpush1.msra.mxu0 0.0
      %2635 = vmatprep.subr.mxu0 0.0
      %2636 = vmatpush1.msra.mxu0 0.0
      %2637 = vmatprep.subr.mxu0 0.0
      %2638 = vmatpush1.msra.mxu0 0.0
      %2639 = vmatprep.subr.mxu0 0.0
      %2640 = vmatpush1.msra.mxu0 0.0
      %2641 = vmatprep.subr.mxu0 0.0
      %2642 = vmatpush1.msra.mxu0 0.0
      %2643 = vmatprep.subr.mxu0 0.0
      %2644 = vmatpush1.msra.mxu0 0.0
      %2645 = vmatprep.subr.mxu0 0.0
      %2646 = vmatpush1.msra.mxu0 0.0
      %2647 = vmatprep.subr.mxu0 0.0
      %2648 = vmatpush1.msra.mxu0 0.0
      %2649 = vmatprep.subr.mxu0 0.0
      %2650 = vmatpush1.msra.mxu0 0.0
      %2651 = vmatprep.subr.mxu0 0.0
      %2652 = vmatpush1.msra.mxu0 0.0
      %2653 = vmatprep.subr.mxu0 0.0
      %2654 = vmatpush1.msra.mxu0 0.0
      %2655 = vmatprep.subr.mxu0 0.0
      %2656 = vmatpush1.msra.mxu0 0.0
      %2657 = vmatprep.subr.mxu0 0.0
      %2658 = vmatpush1.msra.mxu0 0.0
      %2659 = vmatprep.subr.mxu0 0.0
      %2660 = vmatpush1.msra.mxu0 0.0
      %2661 = vmatprep.subr.mxu0 0.0
      %2662 = vmatpush1.msra.mxu0 0.0
      %2663 = vmatprep.subr.mxu0 0.0
      %2664 = vmatpush1.msra.mxu0 0.0
      %2665 = vmatprep.subr.mxu0 0.0
      %2666 = vmatpush1.msra.mxu0 0.0
      %2667 = vmatprep.mubr.f32.mxu0 0.0
      %2668 = vmatmul.mubr.f32.gmra.mrb[0].mxu0 %v2530
      %v2669 = vpop.f32.mrb[0].mxu0
      %v2670 = vadd.f32 0.0, %v2669
      %v2671 = vpop.f32.mrb[0].mxu0
      %v2672 = vadd.f32 0.0, %v2671
      %2673 = vdwg.mxu0
      %v2675 = vsel %vm267, %v2504, 0
      %2677 = vmatprep.subr.mxu0 %v2500
      %2678 = vmatpush1.msra.mxu0 %v2499
      %2679 = vmatprep.subr.mxu0 0.0
      %2680 = vmatpush1.msra.mxu0 0.0
      %2681 = vmatprep.subr.mxu0 0.0
      %2682 = vmatpush1.msra.mxu0 0.0
      %2683 = vmatprep.subr.mxu0 0.0
      %2684 = vmatpush1.msra.mxu0 0.0
      %2685 = vmatprep.subr.mxu0 0.0
      %2686 = vmatpush1.msra.mxu0 0.0
      %2687 = vmatprep.subr.mxu0 0.0
      %2688 = vmatpush1.msra.mxu0 0.0
      %2689 = vmatprep.subr.mxu0 0.0
      %2690 = vmatpush1.msra.mxu0 0.0
      %2691 = vmatprep.subr.mxu0 0.0
      %2692 = vmatpush1.msra.mxu0 0.0
      %2693 = vmatprep.subr.mxu0 0.0
      %2694 = vmatpush1.msra.mxu0 0.0
      %2695 = vmatprep.subr.mxu0 0.0
      %2696 = vmatpush1.msra.mxu0 0.0
      %2697 = vmatprep.subr.mxu0 0.0
      %2698 = vmatpush1.msra.mxu0 0.0
      %2699 = vmatprep.subr.mxu0 0.0
      %2700 = vmatpush1.msra.mxu0 0.0
      %2701 = vmatprep.subr.mxu0 0.0
      %2702 = vmatpush1.msra.mxu0 0.0
      %2703 = vmatprep.subr.mxu0 0.0
      %2704 = vmatpush1.msra.mxu0 0.0
      %2705 = vmatprep.subr.mxu0 0.0
      %2706 = vmatpush1.msra.mxu0 0.0
      %2707 = vmatprep.subr.mxu0 0.0
      %2708 = vmatpush1.msra.mxu0 0.0
      %2709 = vmatprep.subr.mxu0 0.0
      %2710 = vmatpush1.msra.mxu0 0.0
      %2711 = vmatprep.subr.mxu0 0.0
      %2712 = vmatpush1.msra.mxu0 0.0
      %2713 = vmatprep.subr.mxu0 0.0
      %2714 = vmatpush1.msra.mxu0 0.0
      %2715 = vmatprep.subr.mxu0 0.0
      %2716 = vmatpush1.msra.mxu0 0.0
      %2717 = vmatprep.subr.mxu0 0.0
      %2718 = vmatpush1.msra.mxu0 0.0
      %2719 = vmatprep.subr.mxu0 0.0
      %2720 = vmatpush1.msra.mxu0 0.0
      %2721 = vmatprep.subr.mxu0 0.0
      %2722 = vmatpush1.msra.mxu0 0.0
      %2723 = vmatprep.subr.mxu0 0.0
      %2724 = vmatpush1.msra.mxu0 0.0
      %2725 = vmatprep.subr.mxu0 0.0
      %2726 = vmatpush1.msra.mxu0 0.0
      %2727 = vmatprep.subr.mxu0 0.0
      %2728 = vmatpush1.msra.mxu0 0.0
      %2729 = vmatprep.subr.mxu0 0.0
      %2730 = vmatpush1.msra.mxu0 0.0
      %2731 = vmatprep.subr.mxu0 0.0
      %2732 = vmatpush1.msra.mxu0 0.0
      %2733 = vmatprep.subr.mxu0 0.0
      %2734 = vmatpush1.msra.mxu0 0.0
      %2735 = vmatprep.subr.mxu0 0.0
      %2736 = vmatpush1.msra.mxu0 0.0
      %2737 = vmatprep.subr.mxu0 0.0
      %2738 = vmatpush1.msra.mxu0 0.0
      %2739 = vmatprep.subr.mxu0 0.0
      %2740 = vmatpush1.msra.mxu0 0.0
      %2741 = vmatprep.mubr.f32.mxu0 0.0
      %2742 = vmatmul.mubr.f32.gmra.mrb[0].mxu0 %v2675
      %v2743 = vpop.f32.mrb[0].mxu0
      %v2744 = vadd.f32 %v2599, %v2743
      %v2745 = vpop.f32.mrb[0].mxu0
      %v2746 = vadd.f32 %v2601, %v2745
      %2747 = vdwg.mxu0
      %2748 = vmatprep.subr.mxu0 %v2502
      %2749 = vmatpush1.msra.mxu0 %v2501
      %2750 = vmatprep.subr.mxu0 0.0
      %2751 = vmatpush1.msra.mxu0 0.0
      %2752 = vmatprep.subr.mxu0 0.0
      %2753 = vmatpush1.msra.mxu0 0.0
      %2754 = vmatprep.subr.mxu0 0.0
      %2755 = vmatpush1.msra.mxu0 0.0
      %2756 = vmatprep.subr.mxu0 0.0
      %2757 = vmatpush1.msra.mxu0 0.0
      %2758 = vmatprep.subr.mxu0 0.0
      %2759 = vmatpush1.msra.mxu0 0.0
      %2760 = vmatprep.subr.mxu0 0.0
      %2761 = vmatpush1.msra.mxu0 0.0
      %2762 = vmatprep.subr.mxu0 0.0
      %2763 = vmatpush1.msra.mxu0 0.0
      %2764 = vmatprep.subr.mxu0 0.0
      %2765 = vmatpush1.msra.mxu0 0.0
      %2766 = vmatprep.subr.mxu0 0.0
      %2767 = vmatpush1.msra.mxu0 0.0
      %2768 = vmatprep.subr.mxu0 0.0
      %2769 = vmatpush1.msra.mxu0 0.0
      %2770 = vmatprep.subr.mxu0 0.0
      %2771 = vmatpush1.msra.mxu0 0.0
      %2772 = vmatprep.subr.mxu0 0.0
      %2773 = vmatpush1.msra.mxu0 0.0
      %2774 = vmatprep.subr.mxu0 0.0
      %2775 = vmatpush1.msra.mxu0 0.0
      %2776 = vmatprep.subr.mxu0 0.0
      %2777 = vmatpush1.msra.mxu0 0.0
      %2778 = vmatprep.subr.mxu0 0.0
      %2779 = vmatpush1.msra.mxu0 0.0
      %2780 = vmatprep.subr.mxu0 0.0
      %2781 = vmatpush1.msra.mxu0 0.0
      %2782 = vmatprep.subr.mxu0 0.0
      %2783 = vmatpush1.msra.mxu0 0.0
      %2784 = vmatprep.subr.mxu0 0.0
      %2785 = vmatpush1.msra.mxu0 0.0
      %2786 = vmatprep.subr.mxu0 0.0
      %2787 = vmatpush1.msra.mxu0 0.0
      %2788 = vmatprep.subr.mxu0 0.0
      %2789 = vmatpush1.msra.mxu0 0.0
      %2790 = vmatprep.subr.mxu0 0.0
      %2791 = vmatpush1.msra.mxu0 0.0
      %2792 = vmatprep.subr.mxu0 0.0
      %2793 = vmatpush1.msra.mxu0 0.0
      %2794 = vmatprep.subr.mxu0 0.0
      %2795 = vmatpush1.msra.mxu0 0.0
      %2796 = vmatprep.subr.mxu0 0.0
      %2797 = vmatpush1.msra.mxu0 0.0
      %2798 = vmatprep.subr.mxu0 0.0
      %2799 = vmatpush1.msra.mxu0 0.0
      %2800 = vmatprep.subr.mxu0 0.0
      %2801 = vmatpush1.msra.mxu0 0.0
      %2802 = vmatprep.subr.mxu0 0.0
      %2803 = vmatpush1.msra.mxu0 0.0
      %2804 = vmatprep.subr.mxu0 0.0
      %2805 = vmatpush1.msra.mxu0 0.0
      %2806 = vmatprep.subr.mxu0 0.0
      %2807 = vmatpush1.msra.mxu0 0.0
      %2808 = vmatprep.subr.mxu0 0.0
      %2809 = vmatpush1.msra.mxu0 0.0
      %2810 = vmatprep.subr.mxu0 0.0
      %2811 = vmatpush1.msra.mxu0 0.0
      %2812 = vmatprep.mubr.f32.mxu0 0.0
      %2813 = vmatmul.mubr.f32.gmra.mrb[0].mxu0 %v2675
      %v2814 = vpop.f32.mrb[0].mxu0
      %v2815 = vadd.f32 %v2670, %v2814
      %v2816 = vpop.f32.mrb[0].mxu0
      %v2817 = vadd.f32 %v2672, %v2816
      %2818 = vdwg.mxu0
      %v2819 = vld [vmem:[%s2 + $0x10] sm:$0xff]
      %2820 = vrot.lane.b32.xlu0 %v2499, 126
      %v2821 = vpop.permute.xlu0 %2820
      %2822 = vrot.lane.b32.xlu0 %v2500, 126
      %v2823 = vpop.permute.xlu0 %2822
      %2824 = vrot.lane.b32.xlu0 %v2501, 126
      %v2825 = vpop.permute.xlu0 %2824
      %2826 = vrot.lane.b32.xlu0 %v2502, 126
      %v2827 = vpop.permute.xlu0 %2826
      %2828 = vrot.lane.b32.xlu0 %v2503, 126
      %v2829 = vpop.permute.xlu0 %2828
      %v2830 = vsel %vm709, %v2821, %v2823
      %v2831 = vsel %vm709, %v2823, %v2825
      %v2832 = vsel %vm709, %v2825, %v2827
      %v2833 = vsel %vm709, %v2827, %v2829
      %v2839 = vsel %vm267, %v2819, 0
      %2841 = vmatprep.subr.mxu0 %v2831
      %2842 = vmatpush1.msra.mxu0 %v2830
      %2843 = vmatprep.subr.mxu0 0.0
      %2844 = vmatpush1.msra.mxu0 0.0
      %2845 = vmatprep.subr.mxu0 0.0
      %2846 = vmatpush1.msra.mxu0 0.0
      %2847 = vmatprep.subr.mxu0 0.0
      %2848 = vmatpush1.msra.mxu0 0.0
      %2849 = vmatprep.subr.mxu0 0.0
      %2850 = vmatpush1.msra.mxu0 0.0
      %2851 = vmatprep.subr.mxu0 0.0
      %2852 = vmatpush1.msra.mxu0 0.0
      %2853 = vmatprep.subr.mxu0 0.0
      %2854 = vmatpush1.msra.mxu0 0.0
      %2855 = vmatprep.subr.mxu0 0.0
      %2856 = vmatpush1.msra.mxu0 0.0
      %2857 = vmatprep.subr.mxu0 0.0
      %2858 = vmatpush1.msra.mxu0 0.0
      %2859 = vmatprep.subr.mxu0 0.0
      %2860 = vmatpush1.msra.mxu0 0.0
      %2861 = vmatprep.subr.mxu0 0.0
      %2862 = vmatpush1.msra.mxu0 0.0
      %2863 = vmatprep.subr.mxu0 0.0
      %2864 = vmatpush1.msra.mxu0 0.0
      %2865 = vmatprep.subr.mxu0 0.0
      %2866 = vmatpush1.msra.mxu0 0.0
      %2867 = vmatprep.subr.mxu0 0.0
      %2868 = vmatpush1.msra.mxu0 0.0
      %2869 = vmatprep.subr.mxu0 0.0
      %2870 = vmatpush1.msra.mxu0 0.0
      %2871 = vmatprep.subr.mxu0 0.0
      %2872 = vmatpush1.msra.mxu0 0.0
      %2873 = vmatprep.subr.mxu0 0.0
      %2874 = vmatpush1.msra.mxu0 0.0
      %2875 = vmatprep.subr.mxu0 0.0
      %2876 = vmatpush1.msra.mxu0 0.0
      %2877 = vmatprep.subr.mxu0 0.0
      %2878 = vmatpush1.msra.mxu0 0.0
      %2879 = vmatprep.subr.mxu0 0.0
      %2880 = vmatpush1.msra.mxu0 0.0
      %2881 = vmatprep.subr.mxu0 0.0
      %2882 = vmatpush1.msra.mxu0 0.0
      %2883 = vmatprep.subr.mxu0 0.0
      %2884 = vmatpush1.msra.mxu0 0.0
      %2885 = vmatprep.subr.mxu0 0.0
      %2886 = vmatpush1.msra.mxu0 0.0
      %2887 = vmatprep.subr.mxu0 0.0
      %2888 = vmatpush1.msra.mxu0 0.0
      %2889 = vmatprep.subr.mxu0 0.0
      %2890 = vmatpush1.msra.mxu0 0.0
      %2891 = vmatprep.subr.mxu0 0.0
      %2892 = vmatpush1.msra.mxu0 0.0
      %2893 = vmatprep.subr.mxu0 0.0
      %2894 = vmatpush1.msra.mxu0 0.0
      %2895 = vmatprep.subr.mxu0 0.0
      %2896 = vmatpush1.msra.mxu0 0.0
      %2897 = vmatprep.subr.mxu0 0.0
      %2898 = vmatpush1.msra.mxu0 0.0
      %2899 = vmatprep.subr.mxu0 0.0
      %2900 = vmatpush1.msra.mxu0 0.0
      %2901 = vmatprep.subr.mxu0 0.0
      %2902 = vmatpush1.msra.mxu0 0.0
      %2903 = vmatprep.subr.mxu0 0.0
      %2904 = vmatpush1.msra.mxu0 0.0
      %2905 = vmatprep.mubr.f32.mxu0 0.0
      %2906 = vmatmul.mubr.f32.gmra.mrb[0].mxu0 %v2839
      %v2907 = vpop.f32.mrb[0].mxu0
      %v2908 = vadd.f32 0.0, %v2907
      %v2909 = vpop.f32.mrb[0].mxu0
      %v2910 = vadd.f32 0.0, %v2909
      %2911 = vdwg.mxu0
      %2912 = vmatprep.subr.mxu0 %v2833
      %2913 = vmatpush1.msra.mxu0 %v2832
      %2914 = vmatprep.subr.mxu0 0.0
      %2915 = vmatpush1.msra.mxu0 0.0
      %2916 = vmatprep.subr.mxu0 0.0
      %2917 = vmatpush1.msra.mxu0 0.0
      %2918 = vmatprep.subr.mxu0 0.0
      %2919 = vmatpush1.msra.mxu0 0.0
      %2920 = vmatprep.subr.mxu0 0.0
      %2921 = vmatpush1.msra.mxu0 0.0
      %2922 = vmatprep.subr.mxu0 0.0
      %2923 = vmatpush1.msra.mxu0 0.0
      %2924 = vmatprep.subr.mxu0 0.0
      %2925 = vmatpush1.msra.mxu0 0.0
      %2926 = vmatprep.subr.mxu0 0.0
      %2927 = vmatpush1.msra.mxu0 0.0
      %2928 = vmatprep.subr.mxu0 0.0
      %2929 = vmatpush1.msra.mxu0 0.0
      %2930 = vmatprep.subr.mxu0 0.0
      %2931 = vmatpush1.msra.mxu0 0.0
      %2932 = vmatprep.subr.mxu0 0.0
      %2933 = vmatpush1.msra.mxu0 0.0
      %2934 = vmatprep.subr.mxu0 0.0
      %2935 = vmatpush1.msra.mxu0 0.0
      %2936 = vmatprep.subr.mxu0 0.0
      %2937 = vmatpush1.msra.mxu0 0.0
      %2938 = vmatprep.subr.mxu0 0.0
      %2939 = vmatpush1.msra.mxu0 0.0
      %2940 = vmatprep.subr.mxu0 0.0
      %2941 = vmatpush1.msra.mxu0 0.0
      %2942 = vmatprep.subr.mxu0 0.0
      %2943 = vmatpush1.msra.mxu0 0.0
      %2944 = vmatprep.subr.mxu0 0.0
      %2945 = vmatpush1.msra.mxu0 0.0
      %2946 = vmatprep.subr.mxu0 0.0
      %2947 = vmatpush1.msra.mxu0 0.0
      %2948 = vmatprep.subr.mxu0 0.0
      %2949 = vmatpush1.msra.mxu0 0.0
      %2950 = vmatprep.subr.mxu0 0.0
      %2951 = vmatpush1.msra.mxu0 0.0
      %2952 = vmatprep.subr.mxu0 0.0
      %2953 = vmatpush1.msra.mxu0 0.0
      %2954 = vmatprep.subr.mxu0 0.0
      %2955 = vmatpush1.msra.mxu0 0.0
      %2956 = vmatprep.subr.mxu0 0.0
      %2957 = vmatpush1.msra.mxu0 0.0
      %2958 = vmatprep.subr.mxu0 0.0
      %2959 = vmatpush1.msra.mxu0 0.0
      %2960 = vmatprep.subr.mxu0 0.0
      %2961 = vmatpush1.msra.mxu0 0.0
      %2962 = vmatprep.subr.mxu0 0.0
      %2963 = vmatpush1.msra.mxu0 0.0
      %2964 = vmatprep.subr.mxu0 0.0
      %2965 = vmatpush1.msra.mxu0 0.0
      %2966 = vmatprep.subr.mxu0 0.0
      %2967 = vmatpush1.msra.mxu0 0.0
      %2968 = vmatprep.subr.mxu0 0.0
      %2969 = vmatpush1.msra.mxu0 0.0
      %2970 = vmatprep.subr.mxu0 0.0
      %2971 = vmatpush1.msra.mxu0 0.0
      %2972 = vmatprep.subr.mxu0 0.0
      %2973 = vmatpush1.msra.mxu0 0.0
      %2974 = vmatprep.subr.mxu0 0.0
      %2975 = vmatpush1.msra.mxu0 0.0
      %2976 = vmatprep.mubr.f32.mxu0 0.0
      %2977 = vmatmul.mubr.f32.gmra.mrb[0].mxu0 %v2839
      %v2978 = vpop.f32.mrb[0].mxu0
      %v2979 = vadd.f32 0.0, %v2978
      %v2980 = vpop.f32.mrb[0].mxu0
      %v2981 = vadd.f32 0.0, %v2980
      %2982 = vdwg.mxu0
      %v2983 = vadd.f32 %v2744, %v2908
      %v2984 = vadd.f32 %v2746, %v2910
      %v2985 = vadd.f32 %v2815, %v2979
      %v2986 = vadd.f32 %v2817, %v2981
      %v2987 = vld [vmem:[%s2 + $0x18] sm:$0xff]
      %2988 = vrot.lane.b32.xlu0 %v2499, 96
      %v2989 = vpop.permute.xlu0 %2988
      %2990 = vrot.lane.b32.xlu0 %v2500, 96
      %v2991 = vpop.permute.xlu0 %2990
      %2992 = vrot.lane.b32.xlu0 %v2501, 96
      %v2993 = vpop.permute.xlu0 %2992
      %2994 = vrot.lane.b32.xlu0 %v2502, 96
      %v2995 = vpop.permute.xlu0 %2994
      %2996 = vrot.lane.b32.xlu0 %v2503, 96
      %v2997 = vpop.permute.xlu0 %2996
      %v2998 = vsel %vm950, %v2989, %v2991
      %v2999 = vsel %vm950, %v2991, %v2993
      %v3000 = vsel %vm950, %v2993, %v2995
      %v3001 = vsel %vm950, %v2995, %v2997
      %v3007 = vsel %vm267, %v2987, 0
      %3009 = vmatprep.subr.mxu0 %v2999
      %3010 = vmatpush1.msra.mxu0 %v2998
      %3011 = vmatprep.subr.mxu0 0.0
      %3012 = vmatpush1.msra.mxu0 0.0
      %3013 = vmatprep.subr.mxu0 0.0
      %3014 = vmatpush1.msra.mxu0 0.0
      %3015 = vmatprep.subr.mxu0 0.0
      %3016 = vmatpush1.msra.mxu0 0.0
      %3017 = vmatprep.subr.mxu0 0.0
      %3018 = vmatpush1.msra.mxu0 0.0
      %3019 = vmatprep.subr.mxu0 0.0
      %3020 = vmatpush1.msra.mxu0 0.0
      %3021 = vmatprep.subr.mxu0 0.0
      %3022 = vmatpush1.msra.mxu0 0.0
      %3023 = vmatprep.subr.mxu0 0.0
      %3024 = vmatpush1.msra.mxu0 0.0
      %3025 = vmatprep.subr.mxu0 0.0
      %3026 = vmatpush1.msra.mxu0 0.0
      %3027 = vmatprep.subr.mxu0 0.0
      %3028 = vmatpush1.msra.mxu0 0.0
      %3029 = vmatprep.subr.mxu0 0.0
      %3030 = vmatpush1.msra.mxu0 0.0
      %3031 = vmatprep.subr.mxu0 0.0
      %3032 = vmatpush1.msra.mxu0 0.0
      %3033 = vmatprep.subr.mxu0 0.0
      %3034 = vmatpush1.msra.mxu0 0.0
      %3035 = vmatprep.subr.mxu0 0.0
      %3036 = vmatpush1.msra.mxu0 0.0
      %3037 = vmatprep.subr.mxu0 0.0
      %3038 = vmatpush1.msra.mxu0 0.0
      %3039 = vmatprep.subr.mxu0 0.0
      %3040 = vmatpush1.msra.mxu0 0.0
      %3041 = vmatprep.subr.mxu0 0.0
      %3042 = vmatpush1.msra.mxu0 0.0
      %3043 = vmatprep.subr.mxu0 0.0
      %3044 = vmatpush1.msra.mxu0 0.0
      %3045 = vmatprep.subr.mxu0 0.0
      %3046 = vmatpush1.msra.mxu0 0.0
      %3047 = vmatprep.subr.mxu0 0.0
      %3048 = vmatpush1.msra.mxu0 0.0
      %3049 = vmatprep.subr.mxu0 0.0
      %3050 = vmatpush1.msra.mxu0 0.0
      %3051 = vmatprep.subr.mxu0 0.0
      %3052 = vmatpush1.msra.mxu0 0.0
      %3053 = vmatprep.subr.mxu0 0.0
      %3054 = vmatpush1.msra.mxu0 0.0
      %3055 = vmatprep.subr.mxu0 0.0
      %3056 = vmatpush1.msra.mxu0 0.0
      %3057 = vmatprep.subr.mxu0 0.0
      %3058 = vmatpush1.msra.mxu0 0.0
      %3059 = vmatprep.subr.mxu0 0.0
      %3060 = vmatpush1.msra.mxu0 0.0
      %3061 = vmatprep.subr.mxu0 0.0
      %3062 = vmatpush1.msra.mxu0 0.0
      %3063 = vmatprep.subr.mxu0 0.0
      %3064 = vmatpush1.msra.mxu0 0.0
      %3065 = vmatprep.subr.mxu0 0.0
      %3066 = vmatpush1.msra.mxu0 0.0
      %3067 = vmatprep.subr.mxu0 0.0
      %3068 = vmatpush1.msra.mxu0 0.0
      %3069 = vmatprep.subr.mxu0 0.0
      %3070 = vmatpush1.msra.mxu0 0.0
      %3071 = vmatprep.subr.mxu0 0.0
      %3072 = vmatpush1.msra.mxu0 0.0
      %3073 = vmatprep.mubr.f32.mxu0 0.0
      %3074 = vmatmul.mubr.f32.gmra.mrb[0].mxu0 %v3007
      %v3075 = vpop.f32.mrb[0].mxu0
      %v3076 = vadd.f32 0.0, %v3075
      %v3077 = vpop.f32.mrb[0].mxu0
      %v3078 = vadd.f32 0.0, %v3077
      %3079 = vdwg.mxu0
      %3080 = vmatprep.subr.mxu0 %v3001
      %3081 = vmatpush1.msra.mxu0 %v3000
      %3082 = vmatprep.subr.mxu0 0.0
      %3083 = vmatpush1.msra.mxu0 0.0
      %3084 = vmatprep.subr.mxu0 0.0
      %3085 = vmatpush1.msra.mxu0 0.0
      %3086 = vmatprep.subr.mxu0 0.0
      %3087 = vmatpush1.msra.mxu0 0.0
      %3088 = vmatprep.subr.mxu0 0.0
      %3089 = vmatpush1.msra.mxu0 0.0
      %3090 = vmatprep.subr.mxu0 0.0
      %3091 = vmatpush1.msra.mxu0 0.0
      %3092 = vmatprep.subr.mxu0 0.0
      %3093 = vmatpush1.msra.mxu0 0.0
      %3094 = vmatprep.subr.mxu0 0.0
      %3095 = vmatpush1.msra.mxu0 0.0
      %3096 = vmatprep.subr.mxu0 0.0
      %3097 = vmatpush1.msra.mxu0 0.0
      %3098 = vmatprep.subr.mxu0 0.0
      %3099 = vmatpush1.msra.mxu0 0.0
      %3100 = vmatprep.subr.mxu0 0.0
      %3101 = vmatpush1.msra.mxu0 0.0
      %3102 = vmatprep.subr.mxu0 0.0
      %3103 = vmatpush1.msra.mxu0 0.0
      %3104 = vmatprep.subr.mxu0 0.0
      %3105 = vmatpush1.msra.mxu0 0.0
      %3106 = vmatprep.subr.mxu0 0.0
      %3107 = vmatpush1.msra.mxu0 0.0
      %3108 = vmatprep.subr.mxu0 0.0
      %3109 = vmatpush1.msra.mxu0 0.0
      %3110 = vmatprep.subr.mxu0 0.0
      %3111 = vmatpush1.msra.mxu0 0.0
      %3112 = vmatprep.subr.mxu0 0.0
      %3113 = vmatpush1.msra.mxu0 0.0
      %3114 = vmatprep.subr.mxu0 0.0
      %3115 = vmatpush1.msra.mxu0 0.0
      %3116 = vmatprep.subr.mxu0 0.0
      %3117 = vmatpush1.msra.mxu0 0.0
      %3118 = vmatprep.subr.mxu0 0.0
      %3119 = vmatpush1.msra.mxu0 0.0
      %3120 = vmatprep.subr.mxu0 0.0
      %3121 = vmatpush1.msra.mxu0 0.0
      %3122 = vmatprep.subr.mxu0 0.0
      %3123 = vmatpush1.msra.mxu0 0.0
      %3124 = vmatprep.subr.mxu0 0.0
      %3125 = vmatpush1.msra.mxu0 0.0
      %3126 = vmatprep.subr.mxu0 0.0
      %3127 = vmatpush1.msra.mxu0 0.0
      %3128 = vmatprep.subr.mxu0 0.0
      %3129 = vmatpush1.msra.mxu0 0.0
      %3130 = vmatprep.subr.mxu0 0.0
      %3131 = vmatpush1.msra.mxu0 0.0
      %3132 = vmatprep.subr.mxu0 0.0
      %3133 = vmatpush1.msra.mxu0 0.0
      %3134 = vmatprep.subr.mxu0 0.0
      %3135 = vmatpush1.msra.mxu0 0.0
      %3136 = vmatprep.subr.mxu0 0.0
      %3137 = vmatpush1.msra.mxu0 0.0
      %3138 = vmatprep.subr.mxu0 0.0
      %3139 = vmatpush1.msra.mxu0 0.0
      %3140 = vmatprep.subr.mxu0 0.0
      %3141 = vmatpush1.msra.mxu0 0.0
      %3142 = vmatprep.subr.mxu0 0.0
      %3143 = vmatpush1.msra.mxu0 0.0
      %3144 = vmatprep.mubr.f32.mxu0 0.0
      %3145 = vmatmul.mubr.f32.gmra.mrb[0].mxu0 %v3007
      %v3146 = vpop.f32.mrb[0].mxu0
      %v3147 = vadd.f32 0.0, %v3146
      %v3148 = vpop.f32.mrb[0].mxu0
      %v3149 = vadd.f32 0.0, %v3148
      %3150 = vdwg.mxu0
      %v3151 = vadd.f32 %v2983, %v3076
      %v3152 = vadd.f32 %v2984, %v3078
      %v3153 = vadd.f32 %v2985, %v3147
      %v3154 = vadd.f32 %v2986, %v3149
      %v3155 = vld [vmem:[%s2 + $0x20] sm:$0xff]
      %3156 = vrot.lane.b32.xlu0 %v2499, 95
      %v3157 = vpop.permute.xlu0 %3156
      %3158 = vrot.lane.b32.xlu0 %v2500, 95
      %v3159 = vpop.permute.xlu0 %3158
      %3160 = vrot.lane.b32.xlu0 %v2501, 95
      %v3161 = vpop.permute.xlu0 %3160
      %3162 = vrot.lane.b32.xlu0 %v2502, 95
      %v3163 = vpop.permute.xlu0 %3162
      %3164 = vrot.lane.b32.xlu0 %v2503, 95
      %v3165 = vpop.permute.xlu0 %3164
      %v3166 = vsel %vm1191, %v3157, %v3159
      %v3167 = vsel %vm1191, %v3159, %v3161
      %v3168 = vsel %vm1191, %v3161, %v3163
      %v3169 = vsel %vm1191, %v3163, %v3165
      %v3175 = vsel %vm267, %v3155, 0
      %3177 = vmatprep.subr.mxu0 %v3167
      %3178 = vmatpush1.msra.mxu0 %v3166
      %3179 = vmatprep.subr.mxu0 0.0
      %3180 = vmatpush1.msra.mxu0 0.0
      %3181 = vmatprep.subr.mxu0 0.0
      %3182 = vmatpush1.msra.mxu0 0.0
      %3183 = vmatprep.subr.mxu0 0.0
      %3184 = vmatpush1.msra.mxu0 0.0
      %3185 = vmatprep.subr.mxu0 0.0
      %3186 = vmatpush1.msra.mxu0 0.0
      %3187 = vmatprep.subr.mxu0 0.0
      %3188 = vmatpush1.msra.mxu0 0.0
      %3189 = vmatprep.subr.mxu0 0.0
      %3190 = vmatpush1.msra.mxu0 0.0
      %3191 = vmatprep.subr.mxu0 0.0
      %3192 = vmatpush1.msra.mxu0 0.0
      %3193 = vmatprep.subr.mxu0 0.0
      %3194 = vmatpush1.msra.mxu0 0.0
      %3195 = vmatprep.subr.mxu0 0.0
      %3196 = vmatpush1.msra.mxu0 0.0
      %3197 = vmatprep.subr.mxu0 0.0
      %3198 = vmatpush1.msra.mxu0 0.0
      %3199 = vmatprep.subr.mxu0 0.0
      %3200 = vmatpush1.msra.mxu0 0.0
      %3201 = vmatprep.subr.mxu0 0.0
      %3202 = vmatpush1.msra.mxu0 0.0
      %3203 = vmatprep.subr.mxu0 0.0
      %3204 = vmatpush1.msra.mxu0 0.0
      %3205 = vmatprep.subr.mxu0 0.0
      %3206 = vmatpush1.msra.mxu0 0.0
      %3207 = vmatprep.subr.mxu0 0.0
      %3208 = vmatpush1.msra.mxu0 0.0
      %3209 = vmatprep.subr.mxu0 0.0
      %3210 = vmatpush1.msra.mxu0 0.0
      %3211 = vmatprep.subr.mxu0 0.0
      %3212 = vmatpush1.msra.mxu0 0.0
      %3213 = vmatprep.subr.mxu0 0.0
      %3214 = vmatpush1.msra.mxu0 0.0
      %3215 = vmatprep.subr.mxu0 0.0
      %3216 = vmatpush1.msra.mxu0 0.0
      %3217 = vmatprep.subr.mxu0 0.0
      %3218 = vmatpush1.msra.mxu0 0.0
      %3219 = vmatprep.subr.mxu0 0.0
      %3220 = vmatpush1.msra.mxu0 0.0
      %3221 = vmatprep.subr.mxu0 0.0
      %3222 = vmatpush1.msra.mxu0 0.0
      %3223 = vmatprep.subr.mxu0 0.0
      %3224 = vmatpush1.msra.mxu0 0.0
      %3225 = vmatprep.subr.mxu0 0.0
      %3226 = vmatpush1.msra.mxu0 0.0
      %3227 = vmatprep.subr.mxu0 0.0
      %3228 = vmatpush1.msra.mxu0 0.0
      %3229 = vmatprep.subr.mxu0 0.0
      %3230 = vmatpush1.msra.mxu0 0.0
      %3231 = vmatprep.subr.mxu0 0.0
      %3232 = vmatpush1.msra.mxu0 0.0
      %3233 = vmatprep.subr.mxu0 0.0
      %3234 = vmatpush1.msra.mxu0 0.0
      %3235 = vmatprep.subr.mxu0 0.0
      %3236 = vmatpush1.msra.mxu0 0.0
      %3237 = vmatprep.subr.mxu0 0.0
      %3238 = vmatpush1.msra.mxu0 0.0
      %3239 = vmatprep.subr.mxu0 0.0
      %3240 = vmatpush1.msra.mxu0 0.0
      %3241 = vmatprep.mubr.f32.mxu0 0.0
      %3242 = vmatmul.mubr.f32.gmra.mrb[0].mxu0 %v3175
      %v3243 = vpop.f32.mrb[0].mxu0
      %v3244 = vadd.f32 0.0, %v3243
      %v3245 = vpop.f32.mrb[0].mxu0
      %v3246 = vadd.f32 0.0, %v3245
      %3247 = vdwg.mxu0
      %3248 = vmatprep.subr.mxu0 %v3169
      %3249 = vmatpush1.msra.mxu0 %v3168
      %3250 = vmatprep.subr.mxu0 0.0
      %3251 = vmatpush1.msra.mxu0 0.0
      %3252 = vmatprep.subr.mxu0 0.0
      %3253 = vmatpush1.msra.mxu0 0.0
      %3254 = vmatprep.subr.mxu0 0.0
      %3255 = vmatpush1.msra.mxu0 0.0
      %3256 = vmatprep.subr.mxu0 0.0
      %3257 = vmatpush1.msra.mxu0 0.0
      %3258 = vmatprep.subr.mxu0 0.0
      %3259 = vmatpush1.msra.mxu0 0.0
      %3260 = vmatprep.subr.mxu0 0.0
      %3261 = vmatpush1.msra.mxu0 0.0
      %3262 = vmatprep.subr.mxu0 0.0
      %3263 = vmatpush1.msra.mxu0 0.0
      %3264 = vmatprep.subr.mxu0 0.0
      %3265 = vmatpush1.msra.mxu0 0.0
      %3266 = vmatprep.subr.mxu0 0.0
      %3267 = vmatpush1.msra.mxu0 0.0
      %3268 = vmatprep.subr.mxu0 0.0
      %3269 = vmatpush1.msra.mxu0 0.0
      %3270 = vmatprep.subr.mxu0 0.0
      %3271 = vmatpush1.msra.mxu0 0.0
      %3272 = vmatprep.subr.mxu0 0.0
      %3273 = vmatpush1.msra.mxu0 0.0
      %3274 = vmatprep.subr.mxu0 0.0
      %3275 = vmatpush1.msra.mxu0 0.0
      %3276 = vmatprep.subr.mxu0 0.0
      %3277 = vmatpush1.msra.mxu0 0.0
      %3278 = vmatprep.subr.mxu0 0.0
      %3279 = vmatpush1.msra.mxu0 0.0
      %3280 = vmatprep.subr.mxu0 0.0
      %3281 = vmatpush1.msra.mxu0 0.0
      %3282 = vmatprep.subr.mxu0 0.0
      %3283 = vmatpush1.msra.mxu0 0.0
      %3284 = vmatprep.subr.mxu0 0.0
      %3285 = vmatpush1.msra.mxu0 0.0
      %3286 = vmatprep.subr.mxu0 0.0
      %3287 = vmatpush1.msra.mxu0 0.0
      %3288 = vmatprep.subr.mxu0 0.0
      %3289 = vmatpush1.msra.mxu0 0.0
      %3290 = vmatprep.subr.mxu0 0.0
      %3291 = vmatpush1.msra.mxu0 0.0
      %3292 = vmatprep.subr.mxu0 0.0
      %3293 = vmatpush1.msra.mxu0 0.0
      %3294 = vmatprep.subr.mxu0 0.0
      %3295 = vmatpush1.msra.mxu0 0.0
      %3296 = vmatprep.subr.mxu0 0.0
      %3297 = vmatpush1.msra.mxu0 0.0
      %3298 = vmatprep.subr.mxu0 0.0
      %3299 = vmatpush1.msra.mxu0 0.0
      %3300 = vmatprep.subr.mxu0 0.0
      %3301 = vmatpush1.msra.mxu0 0.0
      %3302 = vmatprep.subr.mxu0 0.0
      %3303 = vmatpush1.msra.mxu0 0.0
      %3304 = vmatprep.subr.mxu0 0.0
      %3305 = vmatpush1.msra.mxu0 0.0
      %3306 = vmatprep.subr.mxu0 0.0
      %3307 = vmatpush1.msra.mxu0 0.0
      %3308 = vmatprep.subr.mxu0 0.0
      %3309 = vmatpush1.msra.mxu0 0.0
      %3310 = vmatprep.subr.mxu0 0.0
      %3311 = vmatpush1.msra.mxu0 0.0
      %3312 = vmatprep.mubr.f32.mxu0 0.0
      %3313 = vmatmul.mubr.f32.gmra.mrb[0].mxu0 %v3175
      %v3314 = vpop.f32.mrb[0].mxu0
      %v3315 = vadd.f32 0.0, %v3314
      %v3316 = vpop.f32.mrb[0].mxu0
      %v3317 = vadd.f32 0.0, %v3316
      %3318 = vdwg.mxu0
      %v3319 = vadd.f32 %v3151, %v3244
      %v3320 = vadd.f32 %v3152, %v3246
      %v3321 = vadd.f32 %v3153, %v3315
      %v3322 = vadd.f32 %v3154, %v3317
      %v3323 = vld [vmem:[%s2 + $0x28] sm:$0xff]
      %3324 = vrot.lane.b32.xlu0 %v2499, 94
      %v3325 = vpop.permute.xlu0 %3324
      %3326 = vrot.lane.b32.xlu0 %v2500, 94
      %v3327 = vpop.permute.xlu0 %3326
      %3328 = vrot.lane.b32.xlu0 %v2501, 94
      %v3329 = vpop.permute.xlu0 %3328
      %3330 = vrot.lane.b32.xlu0 %v2502, 94
      %v3331 = vpop.permute.xlu0 %3330
      %3332 = vrot.lane.b32.xlu0 %v2503, 94
      %v3333 = vpop.permute.xlu0 %3332
      %v3334 = vsel %vm1432, %v3325, %v3327
      %v3335 = vsel %vm1432, %v3327, %v3329
      %v3336 = vsel %vm1432, %v3329, %v3331
      %v3337 = vsel %vm1432, %v3331, %v3333
      %v3343 = vsel %vm267, %v3323, 0
      %3345 = vmatprep.subr.mxu0 %v3335
      %3346 = vmatpush1.msra.mxu0 %v3334
      %3347 = vmatprep.subr.mxu0 0.0
      %3348 = vmatpush1.msra.mxu0 0.0
      %3349 = vmatprep.subr.mxu0 0.0
      %3350 = vmatpush1.msra.mxu0 0.0
      %3351 = vmatprep.subr.mxu0 0.0
      %3352 = vmatpush1.msra.mxu0 0.0
      %3353 = vmatprep.subr.mxu0 0.0
      %3354 = vmatpush1.msra.mxu0 0.0
      %3355 = vmatprep.subr.mxu0 0.0
      %3356 = vmatpush1.msra.mxu0 0.0
      %3357 = vmatprep.subr.mxu0 0.0
      %3358 = vmatpush1.msra.mxu0 0.0
      %3359 = vmatprep.subr.mxu0 0.0
      %3360 = vmatpush1.msra.mxu0 0.0
      %3361 = vmatprep.subr.mxu0 0.0
      %3362 = vmatpush1.msra.mxu0 0.0
      %3363 = vmatprep.subr.mxu0 0.0
      %3364 = vmatpush1.msra.mxu0 0.0
      %3365 = vmatprep.subr.mxu0 0.0
      %3366 = vmatpush1.msra.mxu0 0.0
      %3367 = vmatprep.subr.mxu0 0.0
      %3368 = vmatpush1.msra.mxu0 0.0
      %3369 = vmatprep.subr.mxu0 0.0
      %3370 = vmatpush1.msra.mxu0 0.0
      %3371 = vmatprep.subr.mxu0 0.0
      %3372 = vmatpush1.msra.mxu0 0.0
      %3373 = vmatprep.subr.mxu0 0.0
      %3374 = vmatpush1.msra.mxu0 0.0
      %3375 = vmatprep.subr.mxu0 0.0
      %3376 = vmatpush1.msra.mxu0 0.0
      %3377 = vmatprep.subr.mxu0 0.0
      %3378 = vmatpush1.msra.mxu0 0.0
      %3379 = vmatprep.subr.mxu0 0.0
      %3380 = vmatpush1.msra.mxu0 0.0
      %3381 = vmatprep.subr.mxu0 0.0
      %3382 = vmatpush1.msra.mxu0 0.0
      %3383 = vmatprep.subr.mxu0 0.0
      %3384 = vmatpush1.msra.mxu0 0.0
      %3385 = vmatprep.subr.mxu0 0.0
      %3386 = vmatpush1.msra.mxu0 0.0
      %3387 = vmatprep.subr.mxu0 0.0
      %3388 = vmatpush1.msra.mxu0 0.0
      %3389 = vmatprep.subr.mxu0 0.0
      %3390 = vmatpush1.msra.mxu0 0.0
      %3391 = vmatprep.subr.mxu0 0.0
      %3392 = vmatpush1.msra.mxu0 0.0
      %3393 = vmatprep.subr.mxu0 0.0
      %3394 = vmatpush1.msra.mxu0 0.0
      %3395 = vmatprep.subr.mxu0 0.0
      %3396 = vmatpush1.msra.mxu0 0.0
      %3397 = vmatprep.subr.mxu0 0.0
      %3398 = vmatpush1.msra.mxu0 0.0
      %3399 = vmatprep.subr.mxu0 0.0
      %3400 = vmatpush1.msra.mxu0 0.0
      %3401 = vmatprep.subr.mxu0 0.0
      %3402 = vmatpush1.msra.mxu0 0.0
      %3403 = vmatprep.subr.mxu0 0.0
      %3404 = vmatpush1.msra.mxu0 0.0
      %3405 = vmatprep.subr.mxu0 0.0
      %3406 = vmatpush1.msra.mxu0 0.0
      %3407 = vmatprep.subr.mxu0 0.0
      %3408 = vmatpush1.msra.mxu0 0.0
      %3409 = vmatprep.mubr.f32.mxu0 0.0
      %3410 = vmatmul.mubr.f32.gmra.mrb[0].mxu0 %v3343
      %v3411 = vpop.f32.mrb[0].mxu0
      %v3412 = vadd.f32 0.0, %v3411
      %v3413 = vpop.f32.mrb[0].mxu0
      %v3414 = vadd.f32 0.0, %v3413
      %3415 = vdwg.mxu0
      %3416 = vmatprep.subr.mxu0 %v3337
      %3417 = vmatpush1.msra.mxu0 %v3336
      %3418 = vmatprep.subr.mxu0 0.0
      %3419 = vmatpush1.msra.mxu0 0.0
      %3420 = vmatprep.subr.mxu0 0.0
      %3421 = vmatpush1.msra.mxu0 0.0
      %3422 = vmatprep.subr.mxu0 0.0
      %3423 = vmatpush1.msra.mxu0 0.0
      %3424 = vmatprep.subr.mxu0 0.0
      %3425 = vmatpush1.msra.mxu0 0.0
      %3426 = vmatprep.subr.mxu0 0.0
      %3427 = vmatpush1.msra.mxu0 0.0
      %3428 = vmatprep.subr.mxu0 0.0
      %3429 = vmatpush1.msra.mxu0 0.0
      %3430 = vmatprep.subr.mxu0 0.0
      %3431 = vmatpush1.msra.mxu0 0.0
      %3432 = vmatprep.subr.mxu0 0.0
      %3433 = vmatpush1.msra.mxu0 0.0
      %3434 = vmatprep.subr.mxu0 0.0
      %3435 = vmatpush1.msra.mxu0 0.0
      %3436 = vmatprep.subr.mxu0 0.0
      %3437 = vmatpush1.msra.mxu0 0.0
      %3438 = vmatprep.subr.mxu0 0.0
      %3439 = vmatpush1.msra.mxu0 0.0
      %3440 = vmatprep.subr.mxu0 0.0
      %3441 = vmatpush1.msra.mxu0 0.0
      %3442 = vmatprep.subr.mxu0 0.0
      %3443 = vmatpush1.msra.mxu0 0.0
      %3444 = vmatprep.subr.mxu0 0.0
      %3445 = vmatpush1.msra.mxu0 0.0
      %3446 = vmatprep.subr.mxu0 0.0
      %3447 = vmatpush1.msra.mxu0 0.0
      %3448 = vmatprep.subr.mxu0 0.0
      %3449 = vmatpush1.msra.mxu0 0.0
      %3450 = vmatprep.subr.mxu0 0.0
      %3451 = vmatpush1.msra.mxu0 0.0
      %3452 = vmatprep.subr.mxu0 0.0
      %3453 = vmatpush1.msra.mxu0 0.0
      %3454 = vmatprep.subr.mxu0 0.0
      %3455 = vmatpush1.msra.mxu0 0.0
      %3456 = vmatprep.subr.mxu0 0.0
      %3457 = vmatpush1.msra.mxu0 0.0
      %3458 = vmatprep.subr.mxu0 0.0
      %3459 = vmatpush1.msra.mxu0 0.0
      %3460 = vmatprep.subr.mxu0 0.0
      %3461 = vmatpush1.msra.mxu0 0.0
      %3462 = vmatprep.subr.mxu0 0.0
      %3463 = vmatpush1.msra.mxu0 0.0
      %3464 = vmatprep.subr.mxu0 0.0
      %3465 = vmatpush1.msra.mxu0 0.0
      %3466 = vmatprep.subr.mxu0 0.0
      %3467 = vmatpush1.msra.mxu0 0.0
      %3468 = vmatprep.subr.mxu0 0.0
      %3469 = vmatpush1.msra.mxu0 0.0
      %3470 = vmatprep.subr.mxu0 0.0
      %3471 = vmatpush1.msra.mxu0 0.0
      %3472 = vmatprep.subr.mxu0 0.0
      %3473 = vmatpush1.msra.mxu0 0.0
      %3474 = vmatprep.subr.mxu0 0.0
      %3475 = vmatpush1.msra.mxu0 0.0
      %3476 = vmatprep.subr.mxu0 0.0
      %3477 = vmatpush1.msra.mxu0 0.0
      %3478 = vmatprep.subr.mxu0 0.0
      %3479 = vmatpush1.msra.mxu0 0.0
      %3480 = vmatprep.mubr.f32.mxu0 0.0
      %3481 = vmatmul.mubr.f32.gmra.mrb[0].mxu0 %v3343
      %v3482 = vpop.f32.mrb[0].mxu0
      %v3483 = vadd.f32 0.0, %v3482
      %v3484 = vpop.f32.mrb[0].mxu0
      %v3485 = vadd.f32 0.0, %v3484
      %3486 = vdwg.mxu0
      %v3487 = vadd.f32 %v3319, %v3412
      %v3488 = vadd.f32 %v3320, %v3414
      %v3489 = vadd.f32 %v3321, %v3483
      %v3490 = vadd.f32 %v3322, %v3485
      %v3491 = vld [vmem:[%s2 + $0x30] sm:$0xff]
      %3492 = vrot.lane.b32.xlu0 %v2499, 64
      %v3493 = vpop.permute.xlu0 %3492
      %3494 = vrot.lane.b32.xlu0 %v2500, 64
      %v3495 = vpop.permute.xlu0 %3494
      %3496 = vrot.lane.b32.xlu0 %v2501, 64
      %v3497 = vpop.permute.xlu0 %3496
      %3498 = vrot.lane.b32.xlu0 %v2502, 64
      %v3499 = vpop.permute.xlu0 %3498
      %3500 = vrot.lane.b32.xlu0 %v2503, 64
      %v3501 = vpop.permute.xlu0 %3500
      %v3502 = vsel %vm1676, %v3493, %v3495
      %v3503 = vsel %vm1676, %v3495, %v3497
      %v3504 = vsel %vm1676, %v3497, %v3499
      %v3505 = vsel %vm1676, %v3499, %v3501
      %v3511 = vsel %vm267, %v3491, 0
      %3513 = vmatprep.subr.mxu0 %v3503
      %3514 = vmatpush1.msra.mxu0 %v3502
      %3515 = vmatprep.subr.mxu0 0.0
      %3516 = vmatpush1.msra.mxu0 0.0
      %3517 = vmatprep.subr.mxu0 0.0
      %3518 = vmatpush1.msra.mxu0 0.0
      %3519 = vmatprep.subr.mxu0 0.0
      %3520 = vmatpush1.msra.mxu0 0.0
      %3521 = vmatprep.subr.mxu0 0.0
      %3522 = vmatpush1.msra.mxu0 0.0
      %3523 = vmatprep.subr.mxu0 0.0
      %3524 = vmatpush1.msra.mxu0 0.0
      %3525 = vmatprep.subr.mxu0 0.0
      %3526 = vmatpush1.msra.mxu0 0.0
      %3527 = vmatprep.subr.mxu0 0.0
      %3528 = vmatpush1.msra.mxu0 0.0
      %3529 = vmatprep.subr.mxu0 0.0
      %3530 = vmatpush1.msra.mxu0 0.0
      %3531 = vmatprep.subr.mxu0 0.0
      %3532 = vmatpush1.msra.mxu0 0.0
      %3533 = vmatprep.subr.mxu0 0.0
      %3534 = vmatpush1.msra.mxu0 0.0
      %3535 = vmatprep.subr.mxu0 0.0
      %3536 = vmatpush1.msra.mxu0 0.0
      %3537 = vmatprep.subr.mxu0 0.0
      %3538 = vmatpush1.msra.mxu0 0.0
      %3539 = vmatprep.subr.mxu0 0.0
      %3540 = vmatpush1.msra.mxu0 0.0
      %3541 = vmatprep.subr.mxu0 0.0
      %3542 = vmatpush1.msra.mxu0 0.0
      %3543 = vmatprep.subr.mxu0 0.0
      %3544 = vmatpush1.msra.mxu0 0.0
      %3545 = vmatprep.subr.mxu0 0.0
      %3546 = vmatpush1.msra.mxu0 0.0
      %3547 = vmatprep.subr.mxu0 0.0
      %3548 = vmatpush1.msra.mxu0 0.0
      %3549 = vmatprep.subr.mxu0 0.0
      %3550 = vmatpush1.msra.mxu0 0.0
      %3551 = vmatprep.subr.mxu0 0.0
      %3552 = vmatpush1.msra.mxu0 0.0
      %3553 = vmatprep.subr.mxu0 0.0
      %3554 = vmatpush1.msra.mxu0 0.0
      %3555 = vmatprep.subr.mxu0 0.0
      %3556 = vmatpush1.msra.mxu0 0.0
      %3557 = vmatprep.subr.mxu0 0.0
      %3558 = vmatpush1.msra.mxu0 0.0
      %3559 = vmatprep.subr.mxu0 0.0
      %3560 = vmatpush1.msra.mxu0 0.0
      %3561 = vmatprep.subr.mxu0 0.0
      %3562 = vmatpush1.msra.mxu0 0.0
      %3563 = vmatprep.subr.mxu0 0.0
      %3564 = vmatpush1.msra.mxu0 0.0
      %3565 = vmatprep.subr.mxu0 0.0
      %3566 = vmatpush1.msra.mxu0 0.0
      %3567 = vmatprep.subr.mxu0 0.0
      %3568 = vmatpush1.msra.mxu0 0.0
      %3569 = vmatprep.subr.mxu0 0.0
      %3570 = vmatpush1.msra.mxu0 0.0
      %3571 = vmatprep.subr.mxu0 0.0
      %3572 = vmatpush1.msra.mxu0 0.0
      %3573 = vmatprep.subr.mxu0 0.0
      %3574 = vmatpush1.msra.mxu0 0.0
      %3575 = vmatprep.subr.mxu0 0.0
      %3576 = vmatpush1.msra.mxu0 0.0
      %3577 = vmatprep.mubr.f32.mxu0 0.0
      %3578 = vmatmul.mubr.f32.gmra.mrb[0].mxu0 %v3511
      %v3579 = vpop.f32.mrb[0].mxu0
      %v3580 = vadd.f32 0.0, %v3579
      %v3581 = vpop.f32.mrb[0].mxu0
      %v3582 = vadd.f32 0.0, %v3581
      %3583 = vdwg.mxu0
      %3584 = vmatprep.subr.mxu0 %v3505
      %3585 = vmatpush1.msra.mxu0 %v3504
      %3586 = vmatprep.subr.mxu0 0.0
      %3587 = vmatpush1.msra.mxu0 0.0
      %3588 = vmatprep.subr.mxu0 0.0
      %3589 = vmatpush1.msra.mxu0 0.0
      %3590 = vmatprep.subr.mxu0 0.0
      %3591 = vmatpush1.msra.mxu0 0.0
      %3592 = vmatprep.subr.mxu0 0.0
      %3593 = vmatpush1.msra.mxu0 0.0
      %3594 = vmatprep.subr.mxu0 0.0
      %3595 = vmatpush1.msra.mxu0 0.0
      %3596 = vmatprep.subr.mxu0 0.0
      %3597 = vmatpush1.msra.mxu0 0.0
      %3598 = vmatprep.subr.mxu0 0.0
      %3599 = vmatpush1.msra.mxu0 0.0
      %3600 = vmatprep.subr.mxu0 0.0
      %3601 = vmatpush1.msra.mxu0 0.0
      %3602 = vmatprep.subr.mxu0 0.0
      %3603 = vmatpush1.msra.mxu0 0.0
      %3604 = vmatprep.subr.mxu0 0.0
      %3605 = vmatpush1.msra.mxu0 0.0
      %3606 = vmatprep.subr.mxu0 0.0
      %3607 = vmatpush1.msra.mxu0 0.0
      %3608 = vmatprep.subr.mxu0 0.0
      %3609 = vmatpush1.msra.mxu0 0.0
      %3610 = vmatprep.subr.mxu0 0.0
      %3611 = vmatpush1.msra.mxu0 0.0
      %3612 = vmatprep.subr.mxu0 0.0
      %3613 = vmatpush1.msra.mxu0 0.0
      %3614 = vmatprep.subr.mxu0 0.0
      %3615 = vmatpush1.msra.mxu0 0.0
      %3616 = vmatprep.subr.mxu0 0.0
      %3617 = vmatpush1.msra.mxu0 0.0
      %3618 = vmatprep.subr.mxu0 0.0
      %3619 = vmatpush1.msra.mxu0 0.0
      %3620 = vmatprep.subr.mxu0 0.0
      %3621 = vmatpush1.msra.mxu0 0.0
      %3622 = vmatprep.subr.mxu0 0.0
      %3623 = vmatpush1.msra.mxu0 0.0
      %3624 = vmatprep.subr.mxu0 0.0
      %3625 = vmatpush1.msra.mxu0 0.0
      %3626 = vmatprep.subr.mxu0 0.0
      %3627 = vmatpush1.msra.mxu0 0.0
      %3628 = vmatprep.subr.mxu0 0.0
      %3629 = vmatpush1.msra.mxu0 0.0
      %3630 = vmatprep.subr.mxu0 0.0
      %3631 = vmatpush1.msra.mxu0 0.0
      %3632 = vmatprep.subr.mxu0 0.0
      %3633 = vmatpush1.msra.mxu0 0.0
      %3634 = vmatprep.subr.mxu0 0.0
      %3635 = vmatpush1.msra.mxu0 0.0
      %3636 = vmatprep.subr.mxu0 0.0
      %3637 = vmatpush1.msra.mxu0 0.0
      %3638 = vmatprep.subr.mxu0 0.0
      %3639 = vmatpush1.msra.mxu0 0.0
      %3640 = vmatprep.subr.mxu0 0.0
      %3641 = vmatpush1.msra.mxu0 0.0
      %3642 = vmatprep.subr.mxu0 0.0
      %3643 = vmatpush1.msra.mxu0 0.0
      %3644 = vmatprep.subr.mxu0 0.0
      %3645 = vmatpush1.msra.mxu0 0.0
      %3646 = vmatprep.subr.mxu0 0.0
      %3647 = vmatpush1.msra.mxu0 0.0
      %3648 = vmatprep.mubr.f32.mxu0 0.0
      %3649 = vmatmul.mubr.f32.gmra.mrb[0].mxu0 %v3511
      %v3650 = vpop.f32.mrb[0].mxu0
      %v3651 = vadd.f32 0.0, %v3650
      %v3652 = vpop.f32.mrb[0].mxu0
      %v3653 = vadd.f32 0.0, %v3652
      %3654 = vdwg.mxu0
      %v3655 = vadd.f32 %v3487, %v3580
      %v3656 = vadd.f32 %v3488, %v3582
      %v3657 = vadd.f32 %v3489, %v3651
      %v3658 = vadd.f32 %v3490, %v3653
      %v3659 = vld [vmem:[%s2 + $0x38] sm:$0xff]
      %3660 = vrot.lane.b32.xlu0 %v2499, 63
      %v3661 = vpop.permute.xlu0 %3660
      %3662 = vrot.lane.b32.xlu0 %v2500, 63
      %v3663 = vpop.permute.xlu0 %3662
      %3664 = vrot.lane.b32.xlu0 %v2501, 63
      %v3665 = vpop.permute.xlu0 %3664
      %3666 = vrot.lane.b32.xlu0 %v2502, 63
      %v3667 = vpop.permute.xlu0 %3666
      %3668 = vrot.lane.b32.xlu0 %v2503, 63
      %v3669 = vpop.permute.xlu0 %3668
      %v3670 = vsel %vm1920, %v3661, %v3663
      %v3671 = vsel %vm1920, %v3663, %v3665
      %v3672 = vsel %vm1920, %v3665, %v3667
      %v3673 = vsel %vm1920, %v3667, %v3669
      %v3679 = vsel %vm267, %v3659, 0
      %3681 = vmatprep.subr.mxu0 %v3671
      %3682 = vmatpush1.msra.mxu0 %v3670
      %3683 = vmatprep.subr.mxu0 0.0
      %3684 = vmatpush1.msra.mxu0 0.0
      %3685 = vmatprep.subr.mxu0 0.0
      %3686 = vmatpush1.msra.mxu0 0.0
      %3687 = vmatprep.subr.mxu0 0.0
      %3688 = vmatpush1.msra.mxu0 0.0
      %3689 = vmatprep.subr.mxu0 0.0
      %3690 = vmatpush1.msra.mxu0 0.0
      %3691 = vmatprep.subr.mxu0 0.0
      %3692 = vmatpush1.msra.mxu0 0.0
      %3693 = vmatprep.subr.mxu0 0.0
      %3694 = vmatpush1.msra.mxu0 0.0
      %3695 = vmatprep.subr.mxu0 0.0
      %3696 = vmatpush1.msra.mxu0 0.0
      %3697 = vmatprep.subr.mxu0 0.0
      %3698 = vmatpush1.msra.mxu0 0.0
      %3699 = vmatprep.subr.mxu0 0.0
      %3700 = vmatpush1.msra.mxu0 0.0
      %3701 = vmatprep.subr.mxu0 0.0
      %3702 = vmatpush1.msra.mxu0 0.0
      %3703 = vmatprep.subr.mxu0 0.0
      %3704 = vmatpush1.msra.mxu0 0.0
      %3705 = vmatprep.subr.mxu0 0.0
      %3706 = vmatpush1.msra.mxu0 0.0
      %3707 = vmatprep.subr.mxu0 0.0
      %3708 = vmatpush1.msra.mxu0 0.0
      %3709 = vmatprep.subr.mxu0 0.0
      %3710 = vmatpush1.msra.mxu0 0.0
      %3711 = vmatprep.subr.mxu0 0.0
      %3712 = vmatpush1.msra.mxu0 0.0
      %3713 = vmatprep.subr.mxu0 0.0
      %3714 = vmatpush1.msra.mxu0 0.0
      %3715 = vmatprep.subr.mxu0 0.0
      %3716 = vmatpush1.msra.mxu0 0.0
      %3717 = vmatprep.subr.mxu0 0.0
      %3718 = vmatpush1.msra.mxu0 0.0
      %3719 = vmatprep.subr.mxu0 0.0
      %3720 = vmatpush1.msra.mxu0 0.0
      %3721 = vmatprep.subr.mxu0 0.0
      %3722 = vmatpush1.msra.mxu0 0.0
      %3723 = vmatprep.subr.mxu0 0.0
      %3724 = vmatpush1.msra.mxu0 0.0
      %3725 = vmatprep.subr.mxu0 0.0
      %3726 = vmatpush1.msra.mxu0 0.0
      %3727 = vmatprep.subr.mxu0 0.0
      %3728 = vmatpush1.msra.mxu0 0.0
      %3729 = vmatprep.subr.mxu0 0.0
      %3730 = vmatpush1.msra.mxu0 0.0
      %3731 = vmatprep.subr.mxu0 0.0
      %3732 = vmatpush1.msra.mxu0 0.0
      %3733 = vmatprep.subr.mxu0 0.0
      %3734 = vmatpush1.msra.mxu0 0.0
      %3735 = vmatprep.subr.mxu0 0.0
      %3736 = vmatpush1.msra.mxu0 0.0
      %3737 = vmatprep.subr.mxu0 0.0
      %3738 = vmatpush1.msra.mxu0 0.0
      %3739 = vmatprep.subr.mxu0 0.0
      %3740 = vmatpush1.msra.mxu0 0.0
      %3741 = vmatprep.subr.mxu0 0.0
      %3742 = vmatpush1.msra.mxu0 0.0
      %3743 = vmatprep.subr.mxu0 0.0
      %3744 = vmatpush1.msra.mxu0 0.0
      %3745 = vmatprep.mubr.f32.mxu0 0.0
      %3746 = vmatmul.mubr.f32.gmra.mrb[0].mxu0 %v3679
      %v3747 = vpop.f32.mrb[0].mxu0
      %v3748 = vadd.f32 0.0, %v3747
      %v3749 = vpop.f32.mrb[0].mxu0
      %v3750 = vadd.f32 0.0, %v3749
      %3751 = vdwg.mxu0
      %3752 = vmatprep.subr.mxu0 %v3673
      %3753 = vmatpush1.msra.mxu0 %v3672
      %3754 = vmatprep.subr.mxu0 0.0
      %3755 = vmatpush1.msra.mxu0 0.0
      %3756 = vmatprep.subr.mxu0 0.0
      %3757 = vmatpush1.msra.mxu0 0.0
      %3758 = vmatprep.subr.mxu0 0.0
      %3759 = vmatpush1.msra.mxu0 0.0
      %3760 = vmatprep.subr.mxu0 0.0
      %3761 = vmatpush1.msra.mxu0 0.0
      %3762 = vmatprep.subr.mxu0 0.0
      %3763 = vmatpush1.msra.mxu0 0.0
      %3764 = vmatprep.subr.mxu0 0.0
      %3765 = vmatpush1.msra.mxu0 0.0
      %3766 = vmatprep.subr.mxu0 0.0
      %3767 = vmatpush1.msra.mxu0 0.0
      %3768 = vmatprep.subr.mxu0 0.0
      %3769 = vmatpush1.msra.mxu0 0.0
      %3770 = vmatprep.subr.mxu0 0.0
      %3771 = vmatpush1.msra.mxu0 0.0
      %3772 = vmatprep.subr.mxu0 0.0
      %3773 = vmatpush1.msra.mxu0 0.0
      %3774 = vmatprep.subr.mxu0 0.0
      %3775 = vmatpush1.msra.mxu0 0.0
      %3776 = vmatprep.subr.mxu0 0.0
      %3777 = vmatpush1.msra.mxu0 0.0
      %3778 = vmatprep.subr.mxu0 0.0
      %3779 = vmatpush1.msra.mxu0 0.0
      %3780 = vmatprep.subr.mxu0 0.0
      %3781 = vmatpush1.msra.mxu0 0.0
      %3782 = vmatprep.subr.mxu0 0.0
      %3783 = vmatpush1.msra.mxu0 0.0
      %3784 = vmatprep.subr.mxu0 0.0
      %3785 = vmatpush1.msra.mxu0 0.0
      %3786 = vmatprep.subr.mxu0 0.0
      %3787 = vmatpush1.msra.mxu0 0.0
      %3788 = vmatprep.subr.mxu0 0.0
      %3789 = vmatpush1.msra.mxu0 0.0
      %3790 = vmatprep.subr.mxu0 0.0
      %3791 = vmatpush1.msra.mxu0 0.0
      %3792 = vmatprep.subr.mxu0 0.0
      %3793 = vmatpush1.msra.mxu0 0.0
      %3794 = vmatprep.subr.mxu0 0.0
      %3795 = vmatpush1.msra.mxu0 0.0
      %3796 = vmatprep.subr.mxu0 0.0
      %3797 = vmatpush1.msra.mxu0 0.0
      %3798 = vmatprep.subr.mxu0 0.0
      %3799 = vmatpush1.msra.mxu0 0.0
      %3800 = vmatprep.subr.mxu0 0.0
      %3801 = vmatpush1.msra.mxu0 0.0
      %3802 = vmatprep.subr.mxu0 0.0
      %3803 = vmatpush1.msra.mxu0 0.0
      %3804 = vmatprep.subr.mxu0 0.0
      %3805 = vmatpush1.msra.mxu0 0.0
      %3806 = vmatprep.subr.mxu0 0.0
      %3807 = vmatpush1.msra.mxu0 0.0
      %3808 = vmatprep.subr.mxu0 0.0
      %3809 = vmatpush1.msra.mxu0 0.0
      %3810 = vmatprep.subr.mxu0 0.0
      %3811 = vmatpush1.msra.mxu0 0.0
      %3812 = vmatprep.subr.mxu0 0.0
      %3813 = vmatpush1.msra.mxu0 0.0
      %3814 = vmatprep.subr.mxu0 0.0
      %3815 = vmatpush1.msra.mxu0 0.0
      %3816 = vmatprep.mubr.f32.mxu0 0.0
      %3817 = vmatmul.mubr.f32.gmra.mrb[0].mxu0 %v3679
      %v3818 = vpop.f32.mrb[0].mxu0
      %v3819 = vadd.f32 0.0, %v3818
      %v3820 = vpop.f32.mrb[0].mxu0
      %v3821 = vadd.f32 0.0, %v3820
      %3822 = vdwg.mxu0
      %v3823 = vadd.f32 %v3655, %v3748
      %v3824 = vadd.f32 %v3656, %v3750
      %v3825 = vadd.f32 %v3657, %v3819
      %v3826 = vadd.f32 %v3658, %v3821
      %v3827 = vld [vmem:[%s2 + $0x40] sm:$0xff]
      %3828 = vrot.lane.b32.xlu0 %v2499, 62
      %v3829 = vpop.permute.xlu0 %3828
      %3830 = vrot.lane.b32.xlu0 %v2500, 62
      %v3831 = vpop.permute.xlu0 %3830
      %3832 = vrot.lane.b32.xlu0 %v2501, 62
      %v3833 = vpop.permute.xlu0 %3832
      %3834 = vrot.lane.b32.xlu0 %v2502, 62
      %v3835 = vpop.permute.xlu0 %3834
      %3836 = vrot.lane.b32.xlu0 %v2503, 62
      %v3837 = vpop.permute.xlu0 %3836
      %v3838 = vsel %vm2164, %v3829, %v3831
      %v3839 = vsel %vm2164, %v3831, %v3833
      %v3840 = vsel %vm2164, %v3833, %v3835
      %v3841 = vsel %vm2164, %v3835, %v3837
      %v3847 = vsel %vm267, %v3827, 0
      %3849 = vmatprep.subr.mxu0 %v3839
      %3850 = vmatpush1.msra.mxu0 %v3838
      %3851 = vmatprep.subr.mxu0 0.0
      %3852 = vmatpush1.msra.mxu0 0.0
      %3853 = vmatprep.subr.mxu0 0.0
      %3854 = vmatpush1.msra.mxu0 0.0
      %3855 = vmatprep.subr.mxu0 0.0
      %3856 = vmatpush1.msra.mxu0 0.0
      %3857 = vmatprep.subr.mxu0 0.0
      %3858 = vmatpush1.msra.mxu0 0.0
      %3859 = vmatprep.subr.mxu0 0.0
      %3860 = vmatpush1.msra.mxu0 0.0
      %3861 = vmatprep.subr.mxu0 0.0
      %3862 = vmatpush1.msra.mxu0 0.0
      %3863 = vmatprep.subr.mxu0 0.0
      %3864 = vmatpush1.msra.mxu0 0.0
      %3865 = vmatprep.subr.mxu0 0.0
      %3866 = vmatpush1.msra.mxu0 0.0
      %3867 = vmatprep.subr.mxu0 0.0
      %3868 = vmatpush1.msra.mxu0 0.0
      %3869 = vmatprep.subr.mxu0 0.0
      %3870 = vmatpush1.msra.mxu0 0.0
      %3871 = vmatprep.subr.mxu0 0.0
      %3872 = vmatpush1.msra.mxu0 0.0
      %3873 = vmatprep.subr.mxu0 0.0
      %3874 = vmatpush1.msra.mxu0 0.0
      %3875 = vmatprep.subr.mxu0 0.0
      %3876 = vmatpush1.msra.mxu0 0.0
      %3877 = vmatprep.subr.mxu0 0.0
      %3878 = vmatpush1.msra.mxu0 0.0
      %3879 = vmatprep.subr.mxu0 0.0
      %3880 = vmatpush1.msra.mxu0 0.0
      %3881 = vmatprep.subr.mxu0 0.0
      %3882 = vmatpush1.msra.mxu0 0.0
      %3883 = vmatprep.subr.mxu0 0.0
      %3884 = vmatpush1.msra.mxu0 0.0
      %3885 = vmatprep.subr.mxu0 0.0
      %3886 = vmatpush1.msra.mxu0 0.0
      %3887 = vmatprep.subr.mxu0 0.0
      %3888 = vmatpush1.msra.mxu0 0.0
      %3889 = vmatprep.subr.mxu0 0.0
      %3890 = vmatpush1.msra.mxu0 0.0
      %3891 = vmatprep.subr.mxu0 0.0
      %3892 = vmatpush1.msra.mxu0 0.0
      %3893 = vmatprep.subr.mxu0 0.0
      %3894 = vmatpush1.msra.mxu0 0.0
      %3895 = vmatprep.subr.mxu0 0.0
      %3896 = vmatpush1.msra.mxu0 0.0
      %3897 = vmatprep.subr.mxu0 0.0
      %3898 = vmatpush1.msra.mxu0 0.0
      %3899 = vmatprep.subr.mxu0 0.0
      %3900 = vmatpush1.msra.mxu0 0.0
      %3901 = vmatprep.subr.mxu0 0.0
      %3902 = vmatpush1.msra.mxu0 0.0
      %3903 = vmatprep.subr.mxu0 0.0
      %3904 = vmatpush1.msra.mxu0 0.0
      %3905 = vmatprep.subr.mxu0 0.0
      %3906 = vmatpush1.msra.mxu0 0.0
      %3907 = vmatprep.subr.mxu0 0.0
      %3908 = vmatpush1.msra.mxu0 0.0
      %3909 = vmatprep.subr.mxu0 0.0
      %3910 = vmatpush1.msra.mxu0 0.0
      %3911 = vmatprep.subr.mxu0 0.0
      %3912 = vmatpush1.msra.mxu0 0.0
      %3913 = vmatprep.mubr.f32.mxu0 0.0
      %3914 = vmatmul.mubr.f32.gmra.mrb[0].mxu0 %v3847
      %v3915 = vpop.f32.mrb[0].mxu0
      %v3916 = vadd.f32 0.0, %v3915
      %v3917 = vpop.f32.mrb[0].mxu0
      %v3918 = vadd.f32 0.0, %v3917
      %3919 = vdwg.mxu0
      %3920 = vmatprep.subr.mxu0 %v3841
      %3921 = vmatpush1.msra.mxu0 %v3840
      %3922 = vmatprep.subr.mxu0 0.0
      %3923 = vmatpush1.msra.mxu0 0.0
      %3924 = vmatprep.subr.mxu0 0.0
      %3925 = vmatpush1.msra.mxu0 0.0
      %3926 = vmatprep.subr.mxu0 0.0
      %3927 = vmatpush1.msra.mxu0 0.0
      %3928 = vmatprep.subr.mxu0 0.0
      %3929 = vmatpush1.msra.mxu0 0.0
      %3930 = vmatprep.subr.mxu0 0.0
      %3931 = vmatpush1.msra.mxu0 0.0
      %3932 = vmatprep.subr.mxu0 0.0
      %3933 = vmatpush1.msra.mxu0 0.0
      %3934 = vmatprep.subr.mxu0 0.0
      %3935 = vmatpush1.msra.mxu0 0.0
      %3936 = vmatprep.subr.mxu0 0.0
      %3937 = vmatpush1.msra.mxu0 0.0
      %3938 = vmatprep.subr.mxu0 0.0
      %3939 = vmatpush1.msra.mxu0 0.0
      %3940 = vmatprep.subr.mxu0 0.0
      %3941 = vmatpush1.msra.mxu0 0.0
      %3942 = vmatprep.subr.mxu0 0.0
      %3943 = vmatpush1.msra.mxu0 0.0
      %3944 = vmatprep.subr.mxu0 0.0
      %3945 = vmatpush1.msra.mxu0 0.0
      %3946 = vmatprep.subr.mxu0 0.0
      %3947 = vmatpush1.msra.mxu0 0.0
      %3948 = vmatprep.subr.mxu0 0.0
      %3949 = vmatpush1.msra.mxu0 0.0
      %3950 = vmatprep.subr.mxu0 0.0
      %3951 = vmatpush1.msra.mxu0 0.0
      %3952 = vmatprep.subr.mxu0 0.0
      %3953 = vmatpush1.msra.mxu0 0.0
      %3954 = vmatprep.subr.mxu0 0.0
      %3955 = vmatpush1.msra.mxu0 0.0
      %3956 = vmatprep.subr.mxu0 0.0
      %3957 = vmatpush1.msra.mxu0 0.0
      %3958 = vmatprep.subr.mxu0 0.0
      %3959 = vmatpush1.msra.mxu0 0.0
      %3960 = vmatprep.subr.mxu0 0.0
      %3961 = vmatpush1.msra.mxu0 0.0
      %3962 = vmatprep.subr.mxu0 0.0
      %3963 = vmatpush1.msra.mxu0 0.0
      %3964 = vmatprep.subr.mxu0 0.0
      %3965 = vmatpush1.msra.mxu0 0.0
      %3966 = vmatprep.subr.mxu0 0.0
      %3967 = vmatpush1.msra.mxu0 0.0
      %3968 = vmatprep.subr.mxu0 0.0
      %3969 = vmatpush1.msra.mxu0 0.0
      %3970 = vmatprep.subr.mxu0 0.0
      %3971 = vmatpush1.msra.mxu0 0.0
      %3972 = vmatprep.subr.mxu0 0.0
      %3973 = vmatpush1.msra.mxu0 0.0
      %3974 = vmatprep.subr.mxu0 0.0
      %3975 = vmatpush1.msra.mxu0 0.0
      %3976 = vmatprep.subr.mxu0 0.0
      %3977 = vmatpush1.msra.mxu0 0.0
      %3978 = vmatprep.subr.mxu0 0.0
      %3979 = vmatpush1.msra.mxu0 0.0
      %3980 = vmatprep.subr.mxu0 0.0
      %3981 = vmatpush1.msra.mxu0 0.0
      %3982 = vmatprep.subr.mxu0 0.0
      %3983 = vmatpush1.msra.mxu0 0.0
      %3984 = vmatprep.mubr.f32.mxu0 0.0
      %3985 = vmatmul.mubr.f32.gmra.mrb[0].mxu0 %v3847
      %v3986 = vpop.f32.mrb[0].mxu0
      %v3987 = vadd.f32 0.0, %v3986
      %v3988 = vpop.f32.mrb[0].mxu0
      %v3989 = vadd.f32 0.0, %v3988
      %3990 = vdwg.mxu0
      %v3991 = vadd.f32 %v3823, %v3916
      %v3992 = vadd.f32 %v3824, %v3918
      %v3993 = vadd.f32 %v3825, %v3987
      %v3994 = vadd.f32 %v3826, %v3989
      %3995 = vset.pattern.permute.xlu0 1
      %3996 = vperm.xlu0 %3995, %v2395
      %v3997 = vpop.permute.xlu0 %3996
      %v3999 = vadd.f32 %v3991, %v3997
      %v4000 = vadd.f32 %v3992, %v3997
      %v4001 = vadd.f32 %v3993, %v3997
      %v4002 = vadd.f32 %v3994, %v3997
      %v4003 = vmul.f32 %v3999, 0.5
      %v4004 = vmul.f32 %v4000, 0.5
      %v4005 = vmul.f32 %v4001, 0.5
      %v4006 = vmul.f32 %v4002, 0.5
      %v4007 = vmul.f32 %v3999, 0.70710677
      %v4008 = vmul.f32 %v4000, 0.70710677
      %v4009 = vmul.f32 %v4001, 0.70710677
      %v4010 = vmul.f32 %v4002, 0.70710677
      %v4011 = verf.f32.pop %v4007
      %v4012 = verf.f32.pop %v4008
      %v4013 = verf.f32.pop %v4009
      %v4014 = verf.f32.pop %v4010
      %v4015 = vadd.f32 %v4011, 1.0
      %v4016 = vadd.f32 %v4012, 1.0
      %v4017 = vadd.f32 %v4013, 1.0
      %v4018 = vadd.f32 %v4014, 1.0
      %v4019 = vmul.f32 %v4003, %v4015
      %v4020 = vmul.f32 %v4004, %v4016
      %v4021 = vmul.f32 %v4005, %v4017
      %v4022 = vmul.f32 %v4006, %v4018
      %4023 = vst [vmem:[%s233] sm:$0xff] %v4019
      %4024 = vst [vmem:[%s233 + $0x8] sm:$0xff] %v4020
      %4025 = vst [vmem:[%s233 + $0x10] sm:$0xff] %v4021
      %4026 = vst [vmem:[%s233 + $0x18] sm:$0xff] %v4022
      %p4027 = scmp.lt.s32.totalorder %s19, 1
      %s4028 = scalar_select %p4027, %s19, 1
      %p4029 = scmp.lt.s32.totalorder %s20, 0
      %s4030 = scalar_select %p4029, %s20, 0
      %s4031 = smul.addr %s4030, 4
      %s4032 = smul.addr %s4028, 4
      %s4033 = sadd.s32 %s4031, %s4032
      %s4034 = smul.addr %s4033, 8
      %s4035 = scalar_lea.vmem %s4, %s4034
      // Predicated region
      $region37: #{_lambda_.1} parent=35 // pred_check
        %p4036 = pneg %p138
      $region38: #{_lambda_.1} parent=35 // pred_check_branch
        %4038 = sbr.rel (%p4036) target = $region40
      $region39: #{_lambda_.1} parent=35 // pred_region
        _
      $region40: #{_lambda_.1} parent=35 // pred_fallthru
        _
    $region36: #{_lambda_.1} parent=5 // pred_fallthru
      _
    %p4039 = scmp.le.s32.totalorder 2, %s10
    // Predicated region
    $region41: #{_lambda_.1} parent=5 // pred_check
      %p4040 = pneg %p4039
    $region42: #{_lambda_.1} parent=5 // pred_check_branch
      %4042 = sbr.rel (%p4040) target = $region44
    $region43: #{_lambda_.1} parent=5 // pred_region
      %s4043 = ssub.s32 %s10, 2
      // Predicated region
      $region45: #{_lambda_.1} parent=43 // pred_check
        %p4044 = pneg %p144
      $region46: #{_lambda_.1} parent=43 // pred_check_branch
        %4046 = sbr.rel (%p4044) target = $region48
      $region47: #{_lambda_.1} parent=43 // pred_region
        %p4047 = scmp.lt.s32.totalorder %s21, 1
        %s4048 = scalar_select %p4047, %s21, 1
        %p4049 = scmp.lt.s32.totalorder %s22, 0
        %s4050 = scalar_select %p4049, %s22, 0
        %s4051 = smul.addr %s4050, 4
        %s4052 = smul.addr %s4048, 4
        %s4053 = sadd.s32 %s4051, %s4052
        %s4054 = smul.addr %s4053, 8
        %s4055 = scalar_lea.vmem %s4, %s4054
      $region48: #{_lambda_.1} parent=43 // pred_fallthru
        _
    $region44: #{_lambda_.1} parent=5 // pred_fallthru
      _
  $region6: #{_lambda_.1} parent=0 // loop_footer
    %s14 = sadd.s32 1, %s10
  $region7: #{_lambda_.1} parent=0 // loop_footer_branch
    %9 = sbr.rel target = $region3
  $region8: #{_lambda_.1} parent=0 // loop_exit
    _

</llo_original>
